<compile_context>
chip_gen: v6e
topology: v6e:2x2x1
jax: 0.10.0
libtpu: 0.0.40
codegen_flags: <defaults>
</compile_context>

<pallas_src>
import jax
import jax.numpy as jnp
from jax import lax
from jax.experimental import pallas as pl
from jax.experimental.pallas import tpu as pltpu

K = 9           # conv kernel size (9x9)
PAD = 8 // 2    # padding = 4, exactly as in the PyTorch module


def _resblock_interp_kernel(xt_ref, aver_ref, w9_ref, b9_ref,
                            w1_ref, b1_ref, w2t_ref, b2t_ref, out_ref):
    # xt_ref  : (1, TH+2P, W+2P, cin)  row tile of the padded input (+halo), NHWC
    # aver_ref: (1, 3, TH, W)          residual, NCHW
    # w9_ref  : (K, K*cin, 64)         9x9 conv weights folded over (dx, cin)
    # w1_ref  : (64, 64), w2t_ref: (3, 64) (transposed), biases b9/b1 (1,64), b2t (3,1)
    # out_ref : (1, 3, TH, W)          NCHW (W on lanes -> lane-dense stores)
    th = out_ref.shape[2]
    w = out_ref.shape[3]
    kc = w9_ref.shape[1]              # K * cin
    cdtype = w9_ref.dtype

    xt = xt_ref[0]                    # (TH+2P, W+2P, cin)

    # Build the 9 dx-shifted, channel-concatenated planes ONCE (before the dy
    # loop): shifted[r, x, dx*cin + c] == xt[r, x + dx, c].
    shifted = jnp.concatenate([xt[:, dx:dx + w, :] for dx in range(K)], axis=-1)

    # 9x9 conv as 9 MXU matmuls with contraction depth K*cin (f32 accumulate).
    # The per-dy slice is along the major dim and the reshape keeps the lane
    # dim (K*cin) in place, so both are (near-)free.
    def tap(dy):
        patch = shifted[dy:dy + th].reshape(th * w, kc)
        return jnp.dot(patch, w9_ref[dy], preferred_element_type=jnp.float32)

    acc = tap(0)
    for dy in range(1, K):            # short static loop, kept unrolled
        acc = acc + tap(dy)

    h = jnp.maximum(acc + b9_ref[...], 0.0).astype(cdtype)       # (TH*W, 64)

    # 1x1 conv 64 -> 64 + relu.
    h = jnp.dot(h, w1_ref[...], preferred_element_type=jnp.float32) + b1_ref[...]
    h = jnp.maximum(h, 0.0).astype(cdtype)                       # (TH*W, 64)

    # Final 1x1 conv 64 -> 3 computed transposed -> (3, TH*W): the spatial
    # axis stays on lanes so the NCHW residual-add and store are lane-dense.
    y = lax.dot_general(w2t_ref[...], h, (((1,), (1,)), ((), ())),
                        preferred_element_type=jnp.float32)      # (3, TH*W)
    y = y + b2t_ref[...]                                         # (3, 1) bias
    y = y.reshape(3, th, w) + aver_ref[0]
    out_ref[0] = y.astype(out_ref.dtype)


def _tile_vmem_bytes(th, w):
    """Rough per-grid-step VMEM estimate (minor dims pad to 128 lanes, bf16 compute)."""
    r8 = lambda n: -(-n // 8) * 8
    r128 = lambda n: -(-n // 128) * 128
    thp, wp = th + 2 * PAD, w + 2 * PAD
    inp = 2 * thp * r8(wp) * 128 * 2            # double-buffered input row tile
    shifted = thp * r8(w) * 128 * 2             # dx-folded planes (54 -> 128 lanes)
    patch = r8(th * w) * 128 * 2                # one materialized per-dy patch
    acc = r8(th * w) * 128 * 4                  # f32 accumulator (64 -> 128 lanes)
    act = 2 * r8(th * w) * 128 * 2              # bf16 activations of the 1x1 convs
    io = 4 * 3 * r8(th) * r128(w) * 4           # double-buffered aver + out blocks
    return inp + shifted + patch + acc + act + io


def _choose_tile_h(h, w, budget=20 * 1024 * 1024):
    # Whole image per grid step when it fits; otherwise the largest row tile
    # (multiple of 8, required by the aver/out BlockSpecs) under a VMEM budget
    # that keeps actual usage well below v7x's 64 MiB VMEM.
    if _tile_vmem_bytes(h, w) <= budget:
        return h
    for th in (512, 256, 128, 64, 32, 16, 8):
        if th < h and _tile_vmem_bytes(th, w) <= budget:
            return th
    return 8


def resnet_interp_forward(frames, params, *, tile_h=None,
                          compute_dtype=jnp.bfloat16):
    """frames: (B, 2, 3, H, W) float32 (NCHW per frame, like PyTorch).
    Returns (B, 3, H, W) float32."""
    B, F, C, H, W = frames.shape
    assert F == 2 and C == 3, "task='interp' expects 2 frames of 3 channels"
    w9, b9, w1, b1, w2, b2 = params
    cin = F * C
    cmid = w9.shape[-1]

    aver = frames.mean(axis=1)                        # (B, 3, H, W), NCHW
    x = frames.reshape(B, cin, H, W)                  # == torch.cat over channels

    th = min(H, tile_h if tile_h is not None else _choose_tile_h(H, W))
    if th < H:
        assert th % 8 == 0, "row tile must be a multiple of 8"
    nt = pl.cdiv(H, th)
    hpad = nt * th
    thp = th + 2 * PAD
    wp = W + 2 * PAD

    # NHWC, conv-padded (and bottom-padded to a multiple of the row tile).
    x_nhwc = jnp.transpose(x, (0, 2, 3, 1)).astype(compute_dtype)     # (B,H,W,6)
    xpad = jnp.pad(x_nhwc, ((0, 0), (PAD, PAD + hpad - H), (PAD, PAD), (0, 0)))

    # Row tiles with their +/-PAD halo rows materialized so plain Blocked
    # BlockSpecs can pipeline them: (B*nT, TH+2P, W+2P, cin).
    if nt == 1:
        xtiles = xpad
    else:
        rows = jnp.arange(nt)[:, None] * th + jnp.arange(thp)[None, :]
        xtiles = xpad[:, rows].reshape(B * nt, thp, wp, cin)

    aver_p = aver if hpad == H else jnp.pad(
        aver, ((0, 0), (0, 0), (0, hpad - H), (0, 0)))

    # Weights: fold (dx, cin) into the 9x9 conv contraction dim; apply the
    # last 1x1 conv transposed so the kernel epilogue is lane-dense NCHW.
    w9f = w9.reshape(K, K * cin, cmid).astype(compute_dtype)
    w1c = w1.astype(compute_dtype)
    w2t = w2.T.astype(compute_dtype)                  # (3, 64)
    b9r = b9.reshape(1, cmid).astype(jnp.float32)
    b1r = b1.reshape(1, cmid).astype(jnp.float32)
    b2t = b2.reshape(-1, 1).astype(jnp.float32)       # (3, 1)

    flops = 2 * B * H * W * (K * K * cin * cmid + cmid * cmid + cmid * 3)
    bytes_accessed = int(
        xtiles.size * xtiles.dtype.itemsize + aver_p.size * 4
        + B * 3 * hpad * W * 4
        + w9f.size * w9f.dtype.itemsize + w1c.size * w1c.dtype.itemsize
        + w2t.size * w2t.dtype.itemsize + (b9r.size + b1r.size + b2t.size) * 4)

    out = pl.pallas_call(
        _resblock_interp_kernel,
        out_shape=jax.ShapeDtypeStruct((B, 3, hpad, W), jnp.float32),
        grid_spec=pltpu.PrefetchScalarGridSpec(
            num_scalar_prefetch=0,
            grid=(B, nt),
            in_specs=[
                pl.BlockSpec((1, thp, wp, cin),   lambda b, t: (b * nt + t, 0, 0, 0)),
                pl.BlockSpec((1, 3, th, W),       lambda b, t: (b, 0, t, 0)),
                pl.BlockSpec((K, K * cin, cmid),  lambda b, t: (0, 0, 0)),
                pl.BlockSpec((1, cmid),           lambda b, t: (0, 0)),
                pl.BlockSpec((cmid, cmid),        lambda b, t: (0, 0)),
                pl.BlockSpec((1, cmid),           lambda b, t: (0, 0)),
                pl.BlockSpec((3, cmid),           lambda b, t: (0, 0)),
                pl.BlockSpec((3, 1),              lambda b, t: (0, 0)),
            ],
            out_specs=pl.BlockSpec((1, 3, th, W), lambda b, t: (b, 0, t, 0)),
        ),
        compiler_params=pltpu.CompilerParams(
            dimension_semantics=("parallel", "parallel"),
            vmem_limit_bytes=48 * 1024 * 1024,
        ),
        cost_estimate=pl.CostEstimate(
            flops=flops, transcendentals=0, bytes_accessed=bytes_accessed),
    )(xtiles, aver_p, w9f, b9r, w1c, b1r, w2t, b2t)

    return out if hpad == H else out[:, :, :H, :]


def _reference_forward(frames, params):
    """Pure-JAX float32 reference mirroring the PyTorch graph (NCHW)."""
    w9, b9, w1, b1, w2, b2 = params
    B, F, C, H, W = frames.shape
    aver = frames.mean(axis=1)
    x = frames.reshape(B, F * C, H, W)
    w9_oihw = jnp.transpose(w9, (3, 2, 0, 1))
    y = lax.conv_general_dilated(x, w9_oihw, (1, 1), [(PAD, PAD), (PAD, PAD)],
                                 dimension_numbers=("NCHW", "OIHW", "NCHW"))
    y = jax.nn.relu(y + b9.reshape(1, 64, 1, 1))
    y = jax.nn.relu(jnp.einsum("bchw,cd->bdhw", y, w1) + b1.reshape(1, 64, 1, 1))
    y = jnp.einsum("bchw,cd->bdhw", y, w2) + b2.reshape(1, 3, 1, 1)
    return y + aver


def init_params(key, cin=6):
    """Deterministic synthetic weights (shapes match the PyTorch layers used by 'interp')."""
    ks = jax.random.split(key, 6)
    s = 0.05
    w9 = s * jax.random.normal(ks[0], (K, K, cin, 64), jnp.float32)   # conv_3x2_64_9x9
    b9 = s * jax.random.normal(ks[1], (1, 64), jnp.float32)
    w1 = s * jax.random.normal(ks[2], (64, 64), jnp.float32)          # conv_64_64_1x1
    b1 = s * jax.random.normal(ks[3], (1, 64), jnp.float32)
    w2 = s * jax.random.normal(ks[4], (64, 3), jnp.float32)           # conv_64_3_1x1
    b2 = s * jax.random.normal(ks[5], (1, 3), jnp.float32)
    return (w9, b9, w1, b1, w2, b2)


if __name__ == "__main__":
    key = jax.random.PRNGKey(0)
    k_frames, k_params = jax.random.split(key)

    B, F, C, H, W = 2, 2, 3, 16, 16
    frames = jax.random.normal(k_frames, (B, F, C, H, W), jnp.float32)
    params = init_params(k_params, cin=F * C)

    ref = jax.block_until_ready(_reference_forward(frames, params))

    # Default path: whole image per grid step (grid = (B, 1)).
    out = jax.block_until_ready(resnet_interp_forward(frames, params))
    assert out.shape == (B, 3, H, W), out.shape
    err = float(jnp.max(jnp.abs(out - ref)))
    assert jnp.allclose(out, ref, rtol=5e-2, atol=5e-2), err

    # Forced row-tiling path: grid = (B, 2) with halo'd 8-row tiles.
    out_t = jax.block_until_ready(resnet_interp_forward(frames, params, tile_h=8))
    err_t = float(jnp.max(jnp.abs(out_t - ref)))
    assert jnp.allclose(out_t, ref, rtol=5e-2, atol=5e-2), err_t

    print("KERNEL_OK")
</pallas_src>

<mosaic_0001>
module attributes {stable_mosaic.version = 11 : i64} {
  func.func @_resblock_interp_kernel(%arg0: i32, %arg1: i32, %arg2: memref<1x24x24x6xbf16, #tpu.memory_space<vmem>>, %arg3: memref<1x3x16x16xf32, #tpu.memory_space<vmem>>, %arg4: memref<9x54x64xbf16, #tpu.memory_space<vmem>>, %arg5: memref<1x64xf32, #tpu.memory_space<vmem>>, %arg6: memref<64x64xbf16, #tpu.memory_space<vmem>>, %arg7: memref<1x64xf32, #tpu.memory_space<vmem>>, %arg8: memref<3x64xbf16, #tpu.memory_space<vmem>>, %arg9: memref<3x1xf32, #tpu.memory_space<vmem>>, %arg10: memref<1x3x16x16xf32, #tpu.memory_space<vmem>>) attributes {dimension_semantics = [#tpu.dimension_semantics<parallel>, #tpu.dimension_semantics<parallel>], iteration_bounds = array<i64: 2, 1>, scalar_prefetch = 0 : i64, scratch_operands = 0 : i64, tpu.core_type = #tpu.core_type<tc>, window_params = [{transform_indices = @transform_0, window_bounds = array<i64: 1, 24, 24, 6>}, {transform_indices = @transform_1, window_bounds = array<i64: 1, 3, 16, 16>}, {pipeline_mode = #tpu.pipeline_mode<synchronous>, transform_indices = @transform_2, window_bounds = array<i64: 9, 54, 64>}, {pipeline_mode = #tpu.pipeline_mode<synchronous>, transform_indices = @transform_3, window_bounds = array<i64: 1, 64>}, {pipeline_mode = #tpu.pipeline_mode<synchronous>, transform_indices = @transform_4, window_bounds = array<i64: 64, 64>}, {pipeline_mode = #tpu.pipeline_mode<synchronous>, transform_indices = @transform_5, window_bounds = array<i64: 1, 64>}, {pipeline_mode = #tpu.pipeline_mode<synchronous>, transform_indices = @transform_6, window_bounds = array<i64: 3, 64>}, {pipeline_mode = #tpu.pipeline_mode<synchronous>, transform_indices = @transform_7, window_bounds = array<i64: 3, 1>}, {transform_indices = @transform_8, window_bounds = array<i64: 1, 3, 16, 16>}]} {
    %c0 = arith.constant 0 : index
    %c0_0 = arith.constant 0 : index
    %c0_1 = arith.constant 0 : index
    %c0_2 = arith.constant 0 : index
    %0 = vector.load %arg2[%c0, %c0_0, %c0_1, %c0_2] : memref<1x24x24x6xbf16, #tpu.memory_space<vmem>>, vector<1x24x24x6xbf16>
    %1 = vector.shape_cast %0 : vector<1x24x24x6xbf16> to vector<24x24x6xbf16>
    %2 = vector.extract_strided_slice %1 {offsets = [0, 0, 0], sizes = [24, 16, 6], strides = [1, 1, 1]} : vector<24x24x6xbf16> to vector<24x16x6xbf16>
    %3 = vector.extract_strided_slice %1 {offsets = [0, 1, 0], sizes = [24, 16, 6], strides = [1, 1, 1]} : vector<24x24x6xbf16> to vector<24x16x6xbf16>
    %4 = vector.extract_strided_slice %1 {offsets = [0, 2, 0], sizes = [24, 16, 6], strides = [1, 1, 1]} : vector<24x24x6xbf16> to vector<24x16x6xbf16>
    %5 = vector.extract_strided_slice %1 {offsets = [0, 3, 0], sizes = [24, 16, 6], strides = [1, 1, 1]} : vector<24x24x6xbf16> to vector<24x16x6xbf16>
    %6 = vector.extract_strided_slice %1 {offsets = [0, 4, 0], sizes = [24, 16, 6], strides = [1, 1, 1]} : vector<24x24x6xbf16> to vector<24x16x6xbf16>
    %7 = vector.extract_strided_slice %1 {offsets = [0, 5, 0], sizes = [24, 16, 6], strides = [1, 1, 1]} : vector<24x24x6xbf16> to vector<24x16x6xbf16>
    %8 = vector.extract_strided_slice %1 {offsets = [0, 6, 0], sizes = [24, 16, 6], strides = [1, 1, 1]} : vector<24x24x6xbf16> to vector<24x16x6xbf16>
    %9 = vector.extract_strided_slice %1 {offsets = [0, 7, 0], sizes = [24, 16, 6], strides = [1, 1, 1]} : vector<24x24x6xbf16> to vector<24x16x6xbf16>
    %10 = vector.extract_strided_slice %1 {offsets = [0, 8, 0], sizes = [24, 16, 6], strides = [1, 1, 1]} : vector<24x24x6xbf16> to vector<24x16x6xbf16>
    %11 = tpu.concatenate %2, %3, %4, %5, %6, %7, %8, %9, %10 in 2 : vector<24x16x6xbf16>, vector<24x16x6xbf16>, vector<24x16x6xbf16>, vector<24x16x6xbf16>, vector<24x16x6xbf16>, vector<24x16x6xbf16>, vector<24x16x6xbf16>, vector<24x16x6xbf16>, vector<24x16x6xbf16> -> vector<24x16x54xbf16>
    %12 = vector.extract_strided_slice %11 {offsets = [0, 0, 0], sizes = [16, 16, 54], strides = [1, 1, 1]} : vector<24x16x54xbf16> to vector<16x16x54xbf16>
    %13 = vector.shape_cast %12 : vector<16x16x54xbf16> to vector<256x54xbf16>
    %c0_3 = arith.constant 0 : index
    %c0_4 = arith.constant 0 : index
    %c0_5 = arith.constant 0 : index
    %14 = vector.load %arg4[%c0_3, %c0_4, %c0_5] : memref<9x54x64xbf16, #tpu.memory_space<vmem>>, vector<1x54x64xbf16>
    %15 = vector.shape_cast %14 : vector<1x54x64xbf16> to vector<54x64xbf16>
    %cst = arith.constant dense<0.000000e+00> : vector<256x64xf32>
    %16 = tpu.matmul %13, %15, %cst {dimension_numbers = #tpu.dot_dimension_numbers<[1], [0], [0], [1], [0, 0, 1, 1], [], []>} : vector<256x54xbf16>, vector<54x64xbf16>, vector<256x64xf32> -> vector<256x64xf32>
    %17 = vector.extract_strided_slice %11 {offsets = [1, 0, 0], sizes = [16, 16, 54], strides = [1, 1, 1]} : vector<24x16x54xbf16> to vector<16x16x54xbf16>
    %18 = vector.shape_cast %17 : vector<16x16x54xbf16> to vector<256x54xbf16>
    %c1 = arith.constant 1 : index
    %c0_6 = arith.constant 0 : index
    %c0_7 = arith.constant 0 : index
    %19 = vector.load %arg4[%c1, %c0_6, %c0_7] : memref<9x54x64xbf16, #tpu.memory_space<vmem>>, vector<1x54x64xbf16>
    %20 = vector.shape_cast %19 : vector<1x54x64xbf16> to vector<54x64xbf16>
    %cst_8 = arith.constant dense<0.000000e+00> : vector<256x64xf32>
    %21 = tpu.matmul %18, %20, %cst_8 {dimension_numbers = #tpu.dot_dimension_numbers<[1], [0], [0], [1], [0, 0, 1, 1], [], []>} : vector<256x54xbf16>, vector<54x64xbf16>, vector<256x64xf32> -> vector<256x64xf32>
    %22 = arith.addf %16, %21 : vector<256x64xf32>
    %23 = vector.extract_strided_slice %11 {offsets = [2, 0, 0], sizes = [16, 16, 54], strides = [1, 1, 1]} : vector<24x16x54xbf16> to vector<16x16x54xbf16>
    %24 = vector.shape_cast %23 : vector<16x16x54xbf16> to vector<256x54xbf16>
    %c2 = arith.constant 2 : index
    %c0_9 = arith.constant 0 : index
    %c0_10 = arith.constant 0 : index
    %25 = vector.load %arg4[%c2, %c0_9, %c0_10] : memref<9x54x64xbf16, #tpu.memory_space<vmem>>, vector<1x54x64xbf16>
    %26 = vector.shape_cast %25 : vector<1x54x64xbf16> to vector<54x64xbf16>
    %cst_11 = arith.constant dense<0.000000e+00> : vector<256x64xf32>
    %27 = tpu.matmul %24, %26, %cst_11 {dimension_numbers = #tpu.dot_dimension_numbers<[1], [0], [0], [1], [0, 0, 1, 1], [], []>} : vector<256x54xbf16>, vector<54x64xbf16>, vector<256x64xf32> -> vector<256x64xf32>
    %28 = arith.addf %22, %27 : vector<256x64xf32>
    %29 = vector.extract_strided_slice %11 {offsets = [3, 0, 0], sizes = [16, 16, 54], strides = [1, 1, 1]} : vector<24x16x54xbf16> to vector<16x16x54xbf16>
    %30 = vector.shape_cast %29 : vector<16x16x54xbf16> to vector<256x54xbf16>
    %c3 = arith.constant 3 : index
    %c0_12 = arith.constant 0 : index
    %c0_13 = arith.constant 0 : index
    %31 = vector.load %arg4[%c3, %c0_12, %c0_13] : memref<9x54x64xbf16, #tpu.memory_space<vmem>>, vector<1x54x64xbf16>
    %32 = vector.shape_cast %31 : vector<1x54x64xbf16> to vector<54x64xbf16>
    %cst_14 = arith.constant dense<0.000000e+00> : vector<256x64xf32>
    %33 = tpu.matmul %30, %32, %cst_14 {dimension_numbers = #tpu.dot_dimension_numbers<[1], [0], [0], [1], [0, 0, 1, 1], [], []>} : vector<256x54xbf16>, vector<54x64xbf16>, vector<256x64xf32> -> vector<256x64xf32>
    %34 = arith.addf %28, %33 : vector<256x64xf32>
    %35 = vector.extract_strided_slice %11 {offsets = [4, 0, 0], sizes = [16, 16, 54], strides = [1, 1, 1]} : vector<24x16x54xbf16> to vector<16x16x54xbf16>
    %36 = vector.shape_cast %35 : vector<16x16x54xbf16> to vector<256x54xbf16>
    %c4 = arith.constant 4 : index
    %c0_15 = arith.constant 0 : index
    %c0_16 = arith.constant 0 : index
    %37 = vector.load %arg4[%c4, %c0_15, %c0_16] : memref<9x54x64xbf16, #tpu.memory_space<vmem>>, vector<1x54x64xbf16>
    %38 = vector.shape_cast %37 : vector<1x54x64xbf16> to vector<54x64xbf16>
    %cst_17 = arith.constant dense<0.000000e+00> : vector<256x64xf32>
    %39 = tpu.matmul %36, %38, %cst_17 {dimension_numbers = #tpu.dot_dimension_numbers<[1], [0], [0], [1], [0, 0, 1, 1], [], []>} : vector<256x54xbf16>, vector<54x64xbf16>, vector<256x64xf32> -> vector<256x64xf32>
    %40 = arith.addf %34, %39 : vector<256x64xf32>
    %41 = vector.extract_strided_slice %11 {offsets = [5, 0, 0], sizes = [16, 16, 54], strides = [1, 1, 1]} : vector<24x16x54xbf16> to vector<16x16x54xbf16>
    %42 = vector.shape_cast %41 : vector<16x16x54xbf16> to vector<256x54xbf16>
    %c5 = arith.constant 5 : index
    %c0_18 = arith.constant 0 : index
    %c0_19 = arith.constant 0 : index
    %43 = vector.load %arg4[%c5, %c0_18, %c0_19] : memref<9x54x64xbf16, #tpu.memory_space<vmem>>, vector<1x54x64xbf16>
    %44 = vector.shape_cast %43 : vector<1x54x64xbf16> to vector<54x64xbf16>
    %cst_20 = arith.constant dense<0.000000e+00> : vector<256x64xf32>
    %45 = tpu.matmul %42, %44, %cst_20 {dimension_numbers = #tpu.dot_dimension_numbers<[1], [0], [0], [1], [0, 0, 1, 1], [], []>} : vector<256x54xbf16>, vector<54x64xbf16>, vector<256x64xf32> -> vector<256x64xf32>
    %46 = arith.addf %40, %45 : vector<256x64xf32>
    %47 = vector.extract_strided_slice %11 {offsets = [6, 0, 0], sizes = [16, 16, 54], strides = [1, 1, 1]} : vector<24x16x54xbf16> to vector<16x16x54xbf16>
    %48 = vector.shape_cast %47 : vector<16x16x54xbf16> to vector<256x54xbf16>
    %c6 = arith.constant 6 : index
    %c0_21 = arith.constant 0 : index
    %c0_22 = arith.constant 0 : index
    %49 = vector.load %arg4[%c6, %c0_21, %c0_22] : memref<9x54x64xbf16, #tpu.memory_space<vmem>>, vector<1x54x64xbf16>
    %50 = vector.shape_cast %49 : vector<1x54x64xbf16> to vector<54x64xbf16>
    %cst_23 = arith.constant dense<0.000000e+00> : vector<256x64xf32>
    %51 = tpu.matmul %48, %50, %cst_23 {dimension_numbers = #tpu.dot_dimension_numbers<[1], [0], [0], [1], [0, 0, 1, 1], [], []>} : vector<256x54xbf16>, vector<54x64xbf16>, vector<256x64xf32> -> vector<256x64xf32>
    %52 = arith.addf %46, %51 : vector<256x64xf32>
    %53 = vector.extract_strided_slice %11 {offsets = [7, 0, 0], sizes = [16, 16, 54], strides = [1, 1, 1]} : vector<24x16x54xbf16> to vector<16x16x54xbf16>
    %54 = vector.shape_cast %53 : vector<16x16x54xbf16> to vector<256x54xbf16>
    %c7 = arith.constant 7 : index
    %c0_24 = arith.constant 0 : index
    %c0_25 = arith.constant 0 : index
    %55 = vector.load %arg4[%c7, %c0_24, %c0_25] : memref<9x54x64xbf16, #tpu.memory_space<vmem>>, vector<1x54x64xbf16>
    %56 = vector.shape_cast %55 : vector<1x54x64xbf16> to vector<54x64xbf16>
    %cst_26 = arith.constant dense<0.000000e+00> : vector<256x64xf32>
    %57 = tpu.matmul %54, %56, %cst_26 {dimension_numbers = #tpu.dot_dimension_numbers<[1], [0], [0], [1], [0, 0, 1, 1], [], []>} : vector<256x54xbf16>, vector<54x64xbf16>, vector<256x64xf32> -> vector<256x64xf32>
    %58 = arith.addf %52, %57 : vector<256x64xf32>
    %59 = vector.extract_strided_slice %11 {offsets = [8, 0, 0], sizes = [16, 16, 54], strides = [1, 1, 1]} : vector<24x16x54xbf16> to vector<16x16x54xbf16>
    %60 = vector.shape_cast %59 : vector<16x16x54xbf16> to vector<256x54xbf16>
    %c8 = arith.constant 8 : index
    %c0_27 = arith.constant 0 : index
    %c0_28 = arith.constant 0 : index
    %61 = vector.load %arg4[%c8, %c0_27, %c0_28] : memref<9x54x64xbf16, #tpu.memory_space<vmem>>, vector<1x54x64xbf16>
    %62 = vector.shape_cast %61 : vector<1x54x64xbf16> to vector<54x64xbf16>
    %cst_29 = arith.constant dense<0.000000e+00> : vector<256x64xf32>
    %63 = tpu.matmul %60, %62, %cst_29 {dimension_numbers = #tpu.dot_dimension_numbers<[1], [0], [0], [1], [0, 0, 1, 1], [], []>} : vector<256x54xbf16>, vector<54x64xbf16>, vector<256x64xf32> -> vector<256x64xf32>
    %64 = arith.addf %58, %63 : vector<256x64xf32>
    %c0_30 = arith.constant 0 : index
    %c0_31 = arith.constant 0 : index
    %65 = vector.load %arg5[%c0_30, %c0_31] : memref<1x64xf32, #tpu.memory_space<vmem>>, vector<1x64xf32>
    %66 = vector.broadcast %65 : vector<1x64xf32> to vector<256x64xf32>
    %67 = arith.addf %64, %66 : vector<256x64xf32>
    %cst_32 = arith.constant 0.000000e+00 : f32
    %68 = vector.broadcast %cst_32 : f32 to vector<256x64xf32>
    %69 = arith.maximumf %67, %68 : vector<256x64xf32>
    %70 = arith.truncf %69 : vector<256x64xf32> to vector<256x64xbf16>
    %c0_33 = arith.constant 0 : index
    %c0_34 = arith.constant 0 : index
    %71 = vector.load %arg6[%c0_33, %c0_34] : memref<64x64xbf16, #tpu.memory_space<vmem>>, vector<64x64xbf16>
    %cst_35 = arith.constant dense<0.000000e+00> : vector<256x64xf32>
    %72 = tpu.matmul %70, %71, %cst_35 {dimension_numbers = #tpu.dot_dimension_numbers<[1], [0], [0], [1], [0, 0, 1, 1], [], []>} : vector<256x64xbf16>, vector<64x64xbf16>, vector<256x64xf32> -> vector<256x64xf32>
    %c0_36 = arith.constant 0 : index
    %c0_37 = arith.constant 0 : index
    %73 = vector.load %arg7[%c0_36, %c0_37] : memref<1x64xf32, #tpu.memory_space<vmem>>, vector<1x64xf32>
    %74 = vector.broadcast %73 : vector<1x64xf32> to vector<256x64xf32>
    %75 = arith.addf %72, %74 : vector<256x64xf32>
    %cst_38 = arith.constant 0.000000e+00 : f32
    %76 = vector.broadcast %cst_38 : f32 to vector<256x64xf32>
    %77 = arith.maximumf %75, %76 : vector<256x64xf32>
    %78 = arith.truncf %77 : vector<256x64xf32> to vector<256x64xbf16>
    %c0_39 = arith.constant 0 : index
    %c0_40 = arith.constant 0 : index
    %79 = vector.load %arg8[%c0_39, %c0_40] : memref<3x64xbf16, #tpu.memory_space<vmem>>, vector<3x64xbf16>
    %cst_41 = arith.constant dense<0.000000e+00> : vector<3x256xf32>
    %80 = tpu.matmul %79, %78, %cst_41 {dimension_numbers = #tpu.dot_dimension_numbers<[1], [1], [0], [0], [0, 0, 1, 0], [], []>} : vector<3x64xbf16>, vector<256x64xbf16>, vector<3x256xf32> -> vector<3x256xf32>
    %c0_42 = arith.constant 0 : index
    %c0_43 = arith.constant 0 : index
    %81 = vector.load %arg9[%c0_42, %c0_43] : memref<3x1xf32, #tpu.memory_space<vmem>>, vector<3x1xf32>
    %82 = vector.broadcast %81 : vector<3x1xf32> to vector<3x256xf32>
    %83 = arith.addf %80, %82 : vector<3x256xf32>
    %84 = vector.shape_cast %83 : vector<3x256xf32> to vector<3x16x16xf32>
    %c0_44 = arith.constant 0 : index
    %c0_45 = arith.constant 0 : index
    %c0_46 = arith.constant 0 : index
    %c0_47 = arith.constant 0 : index
    %85 = vector.load %arg3[%c0_44, %c0_45, %c0_46, %c0_47] : memref<1x3x16x16xf32, #tpu.memory_space<vmem>>, vector<1x3x16x16xf32>
    %86 = vector.shape_cast %85 : vector<1x3x16x16xf32> to vector<3x16x16xf32>
    %87 = arith.addf %84, %86 : vector<3x16x16xf32>
    %c0_48 = arith.constant 0 : index
    %c0_49 = arith.constant 0 : index
    %c0_50 = arith.constant 0 : index
    %c0_51 = arith.constant 0 : index
    %88 = vector.load %arg10[%c0_48, %c0_49, %c0_50, %c0_51] : memref<1x3x16x16xf32, #tpu.memory_space<vmem>>, vector<1x3x16x16xf32>
    %89 = vector.shape_cast %88 : vector<1x3x16x16xf32> to vector<3x16x16xf32>
    %90 = vector.shape_cast %87 : vector<3x16x16xf32> to vector<1x3x16x16xf32>
    tpu.vector_store %arg10[%c0_48, %c0_49, %c0_50, %c0_51], %90 {strides = array<i32>} : memref<1x3x16x16xf32, #tpu.memory_space<vmem>>, vector<1x3x16x16xf32>,
    return
  }
  func.func @transform_0(%arg0: i32, %arg1: i32) -> (i32, i32, i32, i32) {
    %c1_i32 = arith.constant 1 : i32
    %0 = arith.muli %arg0, %c1_i32 : i32
    %1 = arith.addi %0, %arg1 : i32
    %c0_i32 = arith.constant 0 : i32
    %c0_i32_0 = arith.constant 0 : i32
    %c0_i32_1 = arith.constant 0 : i32
    %c0_i32_2 = arith.constant 0 : i32
    return %1, %c0_i32, %c0_i32_0, %c0_i32_1 : i32, i32, i32, i32
  }
  func.func @transform_1(%arg0: i32, %arg1: i32) -> (i32, i32, i32, i32) {
    %c0_i32 = arith.constant 0 : i32
    %c0_i32_0 = arith.constant 0 : i32
    %c0_i32_1 = arith.constant 0 : i32
    return %arg0, %c0_i32, %arg1, %c0_i32_0 : i32, i32, i32, i32
  }
  func.func @transform_2(%arg0: i32, %arg1: i32) -> (i32, i32, i32) {
    %c0_i32 = arith.constant 0 : i32
    %c0_i32_0 = arith.constant 0 : i32
    %c0_i32_1 = arith.constant 0 : i32
    %c0_i32_2 = arith.constant 0 : i32
    return %c0_i32, %c0_i32_0, %c0_i32_1 : i32, i32, i32
  }
  func.func @transform_3(%arg0: i32, %arg1: i32) -> (i32, i32) {
    %c0_i32 = arith.constant 0 : i32
    %c0_i32_0 = arith.constant 0 : i32
    %c0_i32_1 = arith.constant 0 : i32
    return %c0_i32, %c0_i32_0 : i32, i32
  }
  func.func @transform_4(%arg0: i32, %arg1: i32) -> (i32, i32) {
    %c0_i32 = arith.constant 0 : i32
    %c0_i32_0 = arith.constant 0 : i32
    %c0_i32_1 = arith.constant 0 : i32
    return %c0_i32, %c0_i32_0 : i32, i32
  }
  func.func @transform_5(%arg0: i32, %arg1: i32) -> (i32, i32) {
    %c0_i32 = arith.constant 0 : i32
    %c0_i32_0 = arith.constant 0 : i32
    %c0_i32_1 = arith.constant 0 : i32
    return %c0_i32, %c0_i32_0 : i32, i32
  }
  func.func @transform_6(%arg0: i32, %arg1: i32) -> (i32, i32) {
    %c0_i32 = arith.constant 0 : i32
    %c0_i32_0 = arith.constant 0 : i32
    %c0_i32_1 = arith.constant 0 : i32
    return %c0_i32, %c0_i32_0 : i32, i32
  }
  func.func @transform_7(%arg0: i32, %arg1: i32) -> (i32, i32) {
    %c0_i32 = arith.constant 0 : i32
    %c0_i32_0 = arith.constant 0 : i32
    %c0_i32_1 = arith.constant 0 : i32
    return %c0_i32, %c0_i32_0 : i32, i32
  }
  func.func @transform_8(%arg0: i32, %arg1: i32) -> (i32, i32, i32, i32) {
    %c0_i32 = arith.constant 0 : i32
    %c0_i32_0 = arith.constant 0 : i32
    %c0_i32_1 = arith.constant 0 : i32
    return %arg0, %c0_i32, %arg1, %c0_i32_0 : i32, i32, i32, i32
  }
}

</mosaic_0001>

<llo_original>
// kernel: tpu_custom_call.1
$region0: #{tpu_custom_call.1}
  #allocation0 [shape = 'u32[]', space=smem, size = 0x4, offset = 0x4, fixed_abs, tag = 'smem constant byte address 0x4 - core index']
  #allocation1 [shape = 'u32[144,128]{1,0:T(1,128)}', space=vmem, size = 0x12000, scoped, tag = 'internal scratch']
  %s0 = inlined_call_operand.vmem [shape: bf16[2,24,24,6], index: 0, kind: input, shape index: {}]
  %s1 = inlined_call_operand.vmem [shape: f32[2,3,16,16], index: 1, kind: input, shape index: {}]
  %s2 = inlined_call_operand.vmem [shape: bf16[9,54,64], index: 2, kind: input, shape index: {}]
  %s3 = inlined_call_operand.vmem [shape: f32[1,64], index: 3, kind: input, shape index: {}]
  %s4 = inlined_call_operand.vmem [shape: bf16[64,64], index: 4, kind: input, shape index: {}]
  %s5 = inlined_call_operand.vmem [shape: f32[1,64], index: 5, kind: input, shape index: {}]
  %s6 = inlined_call_operand.vmem [shape: bf16[3,64], index: 6, kind: input, shape index: {}]
  %s7 = inlined_call_operand.vmem [shape: f32[3,1], index: 7, kind: input, shape index: {}]
  %s8 = inlined_call_operand.hbm [shape: f32[2,3,16,16], index: 8, kind: output, shape index: {}]
  %s9 = sld [smem:[#allocation0]]
  $region65: #{tpu_custom_call.1} parent=0
    _
  %s11 = ssub.s32 1, %s9
  %s12 = scalar_select 0, %s11, %s9
  $region1: #{tpu_custom_call.1} parent=0
    #allocation2 [shape = 'u8[49152]{0}', space=vmem, size = 0xc000, scoped, tag = 'output window, operand 0']
    #allocation3 [shape = 's32[2]{0}', space=sflag, size = 0x8, scoped, tag = 'scoped memory for tpu_custom_call.1']
    %13 = vsyncpa [#allocation3], 0
    %s14 = scalar_lea.sflag [#allocation3], 1
    %15 = vsyncpa %s14, 0
    loop: start=0, step=1, limit=4
    $region2: #{tpu_custom_call.1} parent=1 // loop_pre_header
      _
    $region3: #{tpu_custom_call.1} parent=1 // loop_header
      %s17 = sphi 0, %s21
      %p18 = scmp.ge.s32.totalorder %s17, 4
      %s24 = sphi 0, %s36
      %s25 = sphi 0, %s32
      %s26 = sphi 0, %s24
      %s27 = sphi 0, %s25
      %s28 = sphi 0, %s26
      %s29 = sphi 0, %s27
      %s41 = sphi 0, %s43
      %s44 = sphi 0, %s41
      %s45 = sphi 0, %s44
      %s61 = sphi 0, %s45
      %s69 = sphi 0, %s71
      %s72 = sphi 0, %s69
      %s73 = sphi 0, %s72
      %s89 = sphi 0, %s73
      %s93 = sphi 0, %s93
      %s95 = sphi 0, %s93
      %s96 = sphi 0, %s95
      %s110 = sphi 0, %s96
      %s114 = sphi 0, %s114
      %s116 = sphi 0, %s114
      %s117 = sphi 0, %s116
      %s131 = sphi 0, %s117
      %s135 = sphi 0, %s135
      %s137 = sphi 0, %s135
      %s138 = sphi 0, %s137
      %s152 = sphi 0, %s138
      %s156 = sphi 0, %s156
      %s158 = sphi 0, %s156
      %s159 = sphi 0, %s158
      %s173 = sphi 0, %s159
      %s177 = sphi 0, %s177
      %s179 = sphi 0, %s177
      %s180 = sphi 0, %s179
      %s194 = sphi 0, %s180
      %s198 = sphi 0, %s198
      %s200 = sphi 0, %s198
      %s201 = sphi 0, %s200
      %s215 = sphi 0, %s201
      %s223 = sphi 0, %s225
      %s226 = sphi 0, %s223
      %s227 = sphi 0, %s226
      %s243 = sphi 0, %s227
    $region4: #{tpu_custom_call.1} parent=1 // loop_header_branch
      %20 = sbr.rel (%p18) target = $region8
    $region5: #{tpu_custom_call.1} parent=1 // loop_body
      %s22 = ssub.s32 %s17, 1
      %s23 = ssub.s32 %s17, 2
      %s30 = sadd.s32 1, %s25
      %p31 = scmp.ge.s32.totalorder %s30, 1
      %s32 = scalar_select %p31, 0, %s30
      %s33 = sadd.s32 1, %s24
      %s34 = scalar_select %p31, %s33, %s24
      %p35 = scmp.ge.s32.totalorder %s34, 2
      %s36 = scalar_select %p35, 0, %s34
      %s37 = sadd.s32 %s24, %s25
      %s38 = sadd.s32 %s36, %s32
      %s39 = ssub.s32 %s37, %s38
      %p40 = scmp.eq.s32.totalorder %s39, 0
      %s42 = sadd.s32 %s41, 1
      %s43 = scalar_select %p40, %s41, %s42
      %p46 = pneg %p40
      %p47 = scmp.eq.s32.totalorder %s17, 1
      %p48 = por %p46, %p47
      %p49 = scmp.ne.s32.totalorder %s41, %s44
      %p50 = scmp.eq.s32.totalorder %s17, 0
      %p51 = por %p49, %p50
      %p52 = scmp.ne.s32.totalorder %s41, %s44
      %p53 = scmp.eq.s32.totalorder %s22, 1
      %p54 = por %p52, %p53
      %p55 = scmp.ne.s32.totalorder %s44, %s45
      %p56 = scmp.eq.s32.totalorder %s22, 0
      %p57 = por %p55, %p56
      %p58 = scmp.ne.s32.totalorder %s44, %s45
      %p59 = scmp.eq.s32.totalorder %s23, 1
      %p60 = por %p58, %p59
      %p62 = scmp.ne.s32.totalorder %s45, %s61
      %p63 = scmp.eq.s32.totalorder %s23, 0
      %p64 = por %p62, %p63
      %s65 = ssub.s32 %s24, %s36
      %s66 = ssub.s32 %s25, %s32
      %s67 = sor.u32 %s65, %s66
      %p68 = scmp.eq.s32.totalorder %s67, 0
      %s70 = sadd.s32 %s69, 1
      %s71 = scalar_select %p68, %s69, %s70
      %p74 = pneg %p68
      %p75 = scmp.eq.s32.totalorder %s17, 1
      %p76 = por %p74, %p75
      %p77 = scmp.ne.s32.totalorder %s69, %s72
      %p78 = scmp.eq.s32.totalorder %s17, 0
      %p79 = por %p77, %p78
      %p80 = scmp.ne.s32.totalorder %s69, %s72
      %p81 = scmp.eq.s32.totalorder %s22, 1
      %p82 = por %p80, %p81
      %p83 = scmp.ne.s32.totalorder %s72, %s73
      %p84 = scmp.eq.s32.totalorder %s22, 0
      %p85 = por %p83, %p84
      %p86 = scmp.ne.s32.totalorder %s72, %s73
      %p87 = scmp.eq.s32.totalorder %s23, 1
      %p88 = por %p86, %p87
      %p90 = scmp.ne.s32.totalorder %s73, %s89
      %p91 = scmp.eq.s32.totalorder %s23, 0
      %p92 = por %p90, %p91
      %s94 = sadd.s32 %s93, 1
      %p97 = scmp.eq.s32.totalorder %s17, 1
      %p98 = scmp.ne.s32.totalorder %s93, %s95
      %p99 = scmp.eq.s32.totalorder %s17, 0
      %p100 = por %p98, %p99
      %p101 = scmp.ne.s32.totalorder %s93, %s95
      %p102 = scmp.eq.s32.totalorder %s22, 1
      %p103 = por %p101, %p102
      %p104 = scmp.ne.s32.totalorder %s95, %s96
      %p105 = scmp.eq.s32.totalorder %s22, 0
      %p106 = por %p104, %p105
      %p107 = scmp.ne.s32.totalorder %s95, %s96
      %p108 = scmp.eq.s32.totalorder %s23, 1
      %p109 = por %p107, %p108
      %p111 = scmp.ne.s32.totalorder %s96, %s110
      %p112 = scmp.eq.s32.totalorder %s23, 0
      %p113 = por %p111, %p112
      %s115 = sadd.s32 %s114, 1
      %p118 = scmp.eq.s32.totalorder %s17, 1
      %p119 = scmp.ne.s32.totalorder %s114, %s116
      %p120 = scmp.eq.s32.totalorder %s17, 0
      %p121 = por %p119, %p120
      %p122 = scmp.ne.s32.totalorder %s114, %s116
      %p123 = scmp.eq.s32.totalorder %s22, 1
      %p124 = por %p122, %p123
      %p125 = scmp.ne.s32.totalorder %s116, %s117
      %p126 = scmp.eq.s32.totalorder %s22, 0
      %p127 = por %p125, %p126
      %p128 = scmp.ne.s32.totalorder %s116, %s117
      %p129 = scmp.eq.s32.totalorder %s23, 1
      %p130 = por %p128, %p129
      %p132 = scmp.ne.s32.totalorder %s117, %s131
      %p133 = scmp.eq.s32.totalorder %s23, 0
      %p134 = por %p132, %p133
      %s136 = sadd.s32 %s135, 1
      %p139 = scmp.eq.s32.totalorder %s17, 1
      %p140 = scmp.ne.s32.totalorder %s135, %s137
      %p141 = scmp.eq.s32.totalorder %s17, 0
      %p142 = por %p140, %p141
      %p143 = scmp.ne.s32.totalorder %s135, %s137
      %p144 = scmp.eq.s32.totalorder %s22, 1
      %p145 = por %p143, %p144
      %p146 = scmp.ne.s32.totalorder %s137, %s138
      %p147 = scmp.eq.s32.totalorder %s22, 0
      %p148 = por %p146, %p147
      %p149 = scmp.ne.s32.totalorder %s137, %s138
      %p150 = scmp.eq.s32.totalorder %s23, 1
      %p151 = por %p149, %p150
      %p153 = scmp.ne.s32.totalorder %s138, %s152
      %p154 = scmp.eq.s32.totalorder %s23, 0
      %p155 = por %p153, %p154
      %s157 = sadd.s32 %s156, 1
      %p160 = scmp.eq.s32.totalorder %s17, 1
      %p161 = scmp.ne.s32.totalorder %s156, %s158
      %p162 = scmp.eq.s32.totalorder %s17, 0
      %p163 = por %p161, %p162
      %p164 = scmp.ne.s32.totalorder %s156, %s158
      %p165 = scmp.eq.s32.totalorder %s22, 1
      %p166 = por %p164, %p165
      %p167 = scmp.ne.s32.totalorder %s158, %s159
      %p168 = scmp.eq.s32.totalorder %s22, 0
      %p169 = por %p167, %p168
      %p170 = scmp.ne.s32.totalorder %s158, %s159
      %p171 = scmp.eq.s32.totalorder %s23, 1
      %p172 = por %p170, %p171
      %p174 = scmp.ne.s32.totalorder %s159, %s173
      %p175 = scmp.eq.s32.totalorder %s23, 0
      %p176 = por %p174, %p175
      %s178 = sadd.s32 %s177, 1
      %p181 = scmp.eq.s32.totalorder %s17, 1
      %p182 = scmp.ne.s32.totalorder %s177, %s179
      %p183 = scmp.eq.s32.totalorder %s17, 0
      %p184 = por %p182, %p183
      %p185 = scmp.ne.s32.totalorder %s177, %s179
      %p186 = scmp.eq.s32.totalorder %s22, 1
      %p187 = por %p185, %p186
      %p188 = scmp.ne.s32.totalorder %s179, %s180
      %p189 = scmp.eq.s32.totalorder %s22, 0
      %p190 = por %p188, %p189
      %p191 = scmp.ne.s32.totalorder %s179, %s180
      %p192 = scmp.eq.s32.totalorder %s23, 1
      %p193 = por %p191, %p192
      %p195 = scmp.ne.s32.totalorder %s180, %s194
      %p196 = scmp.eq.s32.totalorder %s23, 0
      %p197 = por %p195, %p196
      %s199 = sadd.s32 %s198, 1
      %p202 = scmp.eq.s32.totalorder %s17, 1
      %p203 = scmp.ne.s32.totalorder %s198, %s200
      %p204 = scmp.eq.s32.totalorder %s17, 0
      %p205 = por %p203, %p204
      %p206 = scmp.ne.s32.totalorder %s198, %s200
      %p207 = scmp.eq.s32.totalorder %s22, 1
      %p208 = por %p206, %p207
      %p209 = scmp.ne.s32.totalorder %s200, %s201
      %p210 = scmp.eq.s32.totalorder %s22, 0
      %p211 = por %p209, %p210
      %p212 = scmp.ne.s32.totalorder %s200, %s201
      %p213 = scmp.eq.s32.totalorder %s23, 1
      %p214 = por %p212, %p213
      %p216 = scmp.ne.s32.totalorder %s201, %s215
      %p217 = scmp.eq.s32.totalorder %s23, 0
      %p218 = por %p216, %p217
      %s219 = ssub.s32 %s24, %s36
      %s220 = ssub.s32 %s25, %s32
      %s221 = sor.u32 %s219, %s220
      %p222 = scmp.eq.s32.totalorder %s221, 0
      %s224 = sadd.s32 %s223, 1
      %s225 = scalar_select %p222, %s223, %s224
      %p228 = pneg %p222
      %p229 = scmp.eq.s32.totalorder %s17, 1
      %p230 = por %p228, %p229
      %p231 = scmp.ne.s32.totalorder %s223, %s226
      %p232 = scmp.eq.s32.totalorder %s17, 0
      %p233 = por %p231, %p232
      %p234 = scmp.ne.s32.totalorder %s223, %s226
      %p235 = scmp.eq.s32.totalorder %s22, 1
      %p236 = por %p234, %p235
      %p237 = scmp.ne.s32.totalorder %s226, %s227
      %p238 = scmp.eq.s32.totalorder %s22, 0
      %p239 = por %p237, %p238
      %p240 = scmp.ne.s32.totalorder %s226, %s227
      %p241 = scmp.eq.s32.totalorder %s23, 1
      %p242 = por %p240, %p241
      %p244 = scmp.ne.s32.totalorder %s227, %s243
      %p245 = scmp.eq.s32.totalorder %s23, 0
      %p246 = por %p244, %p245
      %p247 = scmp.le.s32.totalorder 1, %s17
      %p248 = scmp.lt.s32.totalorder %s17, 3
      %p249 = pnand %p247, %p248
      %p250 = pneg %p249
      // Predicated region
      $region9: #{tpu_custom_call.1} parent=5 // pred_check
        _
      $region10: #{tpu_custom_call.1} parent=5 // pred_check_branch
        %252 = sbr.rel (%p249) target = $region12
      $region11: #{tpu_custom_call.1} parent=5 // pred_region
        %s253 = ssub.s32 %s17, 1
        // Predicated region
        $region13: #{tpu_custom_call.1} parent=11 // pred_check
          %p254 = pneg %p106
        $region14: #{tpu_custom_call.1} parent=11 // pred_check_branch
          %256 = sbr.rel (%p254) target = $region16
        $region15: #{tpu_custom_call.1} parent=11 // pred_region
          _
        $region16: #{tpu_custom_call.1} parent=11 // pred_fallthru
          _
        // Predicated region
        $region17: #{tpu_custom_call.1} parent=11 // pred_check
          %p257 = pneg %p127
        $region18: #{tpu_custom_call.1} parent=11 // pred_check_branch
          %259 = sbr.rel (%p257) target = $region20
        $region19: #{tpu_custom_call.1} parent=11 // pred_region
          _
        $region20: #{tpu_custom_call.1} parent=11 // pred_fallthru
          _
        // Predicated region
        $region21: #{tpu_custom_call.1} parent=11 // pred_check
          %p260 = pneg %p148
        $region22: #{tpu_custom_call.1} parent=11 // pred_check_branch
          %262 = sbr.rel (%p260) target = $region24
        $region23: #{tpu_custom_call.1} parent=11 // pred_region
          _
        $region24: #{tpu_custom_call.1} parent=11 // pred_fallthru
          _
        // Predicated region
        $region25: #{tpu_custom_call.1} parent=11 // pred_check
          %p263 = pneg %p169
        $region26: #{tpu_custom_call.1} parent=11 // pred_check_branch
          %265 = sbr.rel (%p263) target = $region28
        $region27: #{tpu_custom_call.1} parent=11 // pred_region
          _
        $region28: #{tpu_custom_call.1} parent=11 // pred_fallthru
          _
        // Predicated region
        $region29: #{tpu_custom_call.1} parent=11 // pred_check
          %p266 = pneg %p190
        $region30: #{tpu_custom_call.1} parent=11 // pred_check_branch
          %268 = sbr.rel (%p266) target = $region32
        $region31: #{tpu_custom_call.1} parent=11 // pred_region
          _
        $region32: #{tpu_custom_call.1} parent=11 // pred_fallthru
          _
        // Predicated region
        $region33: #{tpu_custom_call.1} parent=11 // pred_check
          %p269 = pneg %p211
        $region34: #{tpu_custom_call.1} parent=11 // pred_check_branch
          %271 = sbr.rel (%p269) target = $region36
        $region35: #{tpu_custom_call.1} parent=11 // pred_region
          _
        $region36: #{tpu_custom_call.1} parent=11 // pred_fallthru
          _
      $region12: #{tpu_custom_call.1} parent=5 // pred_fallthru
        _
      %p272 = scmp.lt.s32.totalorder %s17, 2
      // Predicated region
      $region37: #{tpu_custom_call.1} parent=5 // pred_check
        %p273 = pneg %p272
      $region38: #{tpu_custom_call.1} parent=5 // pred_check_branch
        %275 = sbr.rel (%p273) target = $region40
      $region39: #{tpu_custom_call.1} parent=5 // pred_region
        // Predicated region
        $region41: #{tpu_custom_call.1} parent=39 // pred_check
          %p276 = pneg %p51
        $region42: #{tpu_custom_call.1} parent=39 // pred_check_branch
          %278 = sbr.rel (%p276) target = $region44
        $region43: #{tpu_custom_call.1} parent=39 // pred_region
          %s279 = sadd.s32 %s24, %s25
          %p280 = scmp.lt.s32.totalorder %s279, 1
          %s281 = scalar_select %p280, %s279, 1
          %s282 = smul.addr %s281, 72
          %s283 = smul.addr %s282, 4
          %s284 = scalar_lea.vmem %s0, %s283
          %s285 = sadd.s32 %s24, %s25
        $region44: #{tpu_custom_call.1} parent=39 // pred_fallthru
          _
        // Predicated region
        $region45: #{tpu_custom_call.1} parent=39 // pred_check
          %p286 = pneg %p79
        $region46: #{tpu_custom_call.1} parent=39 // pred_check_branch
          %288 = sbr.rel (%p286) target = $region48
        $region47: #{tpu_custom_call.1} parent=39 // pred_region
          %s289 = smul.u32 2, %s25
          %p290 = scmp.lt.s32.totalorder %s24, 1
          %s291 = scalar_select %p290, %s24, 1
          %p292 = scmp.lt.s32.totalorder %s289, 1
          %s293 = scalar_select %p292, %s289, 1
          %s294 = smul.addr %s291, 6
          %s295 = sadd.s32 %s293, %s294
          %s296 = smul.addr %s295, 8
          %s297 = scalar_lea.vmem %s1, %s296
          %s298 = smul.u32 2, %s25
        $region48: #{tpu_custom_call.1} parent=39 // pred_fallthru
          _
      $region40: #{tpu_custom_call.1} parent=5 // pred_fallthru
        _
      %p299 = scmp.le.s32.totalorder 1, %s17
      %p300 = scmp.lt.s32.totalorder %s17, 3
      %p301 = pnand %p299, %p300
      %p302 = pneg %p301
      // Predicated region
      $region49: #{tpu_custom_call.1} parent=5 // pred_check
        _
      $region50: #{tpu_custom_call.1} parent=5 // pred_check_branch
        %304 = sbr.rel (%p301) target = $region52
      $region51: #{tpu_custom_call.1} parent=5 // pred_region
        %s305 = ssub.s32 %s17, 1
        %s306 = sadd.s32 %s26, %s27
        %p307 = scmp.lt.s32.totalorder %s306, 1
        %s308 = scalar_select %p307, %s306, 1
        %s309 = smul.addr %s308, 72
        %s310 = smul.addr %s309, 4
        %s311 = scalar_lea.vmem %s0, %s310
        %p312 = pneg %p57
        %p313 = pneg %p54
        %s314 = smul.u32 2, %s27
        %p315 = scmp.lt.s32.totalorder %s26, 1
        %s316 = scalar_select %p315, %s26, 1
        %p317 = scmp.lt.s32.totalorder %s314, 1
        %s318 = scalar_select %p317, %s314, 1
        %s319 = smul.addr %s316, 6
        %s320 = sadd.s32 %s318, %s319
        %s321 = smul.addr %s320, 8
        %s322 = scalar_lea.vmem %s1, %s321
        %p323 = pneg %p85
        %p324 = pneg %p82
        %p325 = pneg %p106
        %p326 = pneg %p103
        %p327 = pneg %p127
        %p328 = pneg %p124
        %p329 = pneg %p148
        %p330 = pneg %p145
        %p331 = pneg %p169
        %p332 = pneg %p166
        %p333 = pneg %p190
        %p334 = pneg %p187
        %p335 = pneg %p211
        %p336 = pneg %p208
        %p337 = pneg %p239
        %p338 = pneg %p236
        %s339 = sand.u32 %s226, 1
        %s340 = scalar_lea.sflag [#allocation3], %s339
        %s341 = sand.u32 %s226, 1
        %s342 = smul.addr %s341, 48
        %s343 = scalar_lea.vmem [#allocation2], %s342
        %s344 = sadd.s32 %s26, %s27
        %p345 = scmp.lt.s32.totalorder %s344, 1
        %s346 = scalar_select %p345, %s344, 1
        %s347 = smul.addr %s346, 72
        %s348 = smul.addr %s347, 4
        %s349 = scalar_lea.vmem %s0, %s348
        %s350 = sadd.s32 %s26, %s27
        %s351 = smul.u32 2, %s27
        %p352 = scmp.lt.s32.totalorder %s26, 1
        %s353 = scalar_select %p352, %s26, 1
        %p354 = scmp.lt.s32.totalorder %s351, 1
        %s355 = scalar_select %p354, %s351, 1
        %s356 = smul.addr %s353, 6
        %s357 = sadd.s32 %s355, %s356
        %s358 = smul.addr %s357, 8
        %s359 = scalar_lea.vmem %s1, %s358
        %s360 = smul.u32 2, %s27
        %s361 = smul.u32 2, %s27
        %v363 = vld [vmem:[%s349] sm:$0xf]
        %v364 = vld [vmem:[%s349 + $0x4] sm:$0xf]
        %v365 = vld [vmem:[%s349 + $0x8] sm:$0xf]
        %v366 = vld [vmem:[%s349 + $0xc] sm:$0xf]
        %v367 = vld [vmem:[%s349 + $0x10] sm:$0xf]
        %v368 = vld [vmem:[%s349 + $0x14] sm:$0xf]
        %v369 = vld [vmem:[%s349 + $0x18] sm:$0xf]
        %v370 = vld [vmem:[%s349 + $0x1c] sm:$0xf]
        %v371 = vld [vmem:[%s349 + $0x20] sm:$0xf]
        %v372 = vld [vmem:[%s349 + $0x24] sm:$0xf]
        %v373 = vld [vmem:[%s349 + $0x28] sm:$0xf]
        %v374 = vld [vmem:[%s349 + $0x2c] sm:$0xf]
        %v375 = vld [vmem:[%s349 + $0x30] sm:$0xf]
        %v376 = vld [vmem:[%s349 + $0x34] sm:$0xf]
        %v377 = vld [vmem:[%s349 + $0x38] sm:$0xf]
        %v378 = vld [vmem:[%s349 + $0x3c] sm:$0xf]
        %v379 = vld [vmem:[%s349 + $0x40] sm:$0xf]
        %v380 = vld [vmem:[%s349 + $0x44] sm:$0xf]
        %v381 = vld [vmem:[%s349 + $0x48] sm:$0xf]
        %v382 = vld [vmem:[%s349 + $0x4c] sm:$0xf]
        %v383 = vld [vmem:[%s349 + $0x50] sm:$0xf]
        %v384 = vld [vmem:[%s349 + $0x54] sm:$0xf]
        %v385 = vld [vmem:[%s349 + $0x58] sm:$0xf]
        %v386 = vld [vmem:[%s349 + $0x5c] sm:$0xf]
        %v387 = vld [vmem:[%s349 + $0x60] sm:$0xf]
        %v388 = vld [vmem:[%s349 + $0x64] sm:$0xf]
        %v389 = vld [vmem:[%s349 + $0x68] sm:$0xf]
        %v390 = vld [vmem:[%s349 + $0x6c] sm:$0xf]
        %v391 = vld [vmem:[%s349 + $0x70] sm:$0xf]
        %v392 = vld [vmem:[%s349 + $0x74] sm:$0xf]
        %v393 = vld [vmem:[%s349 + $0x78] sm:$0xf]
        %v394 = vld [vmem:[%s349 + $0x7c] sm:$0xf]
        %v395 = vld [vmem:[%s349 + $0x80] sm:$0xf]
        %v396 = vld [vmem:[%s349 + $0x84] sm:$0xf]
        %v397 = vld [vmem:[%s349 + $0x88] sm:$0xf]
        %v398 = vld [vmem:[%s349 + $0x8c] sm:$0xf]
        %v399 = vld [vmem:[%s349 + $0x90] sm:$0xf]
        %v400 = vld [vmem:[%s349 + $0x94] sm:$0xf]
        %v401 = vld [vmem:[%s349 + $0x98] sm:$0xf]
        %v402 = vld [vmem:[%s349 + $0x9c] sm:$0xf]
        %v403 = vld [vmem:[%s349 + $0xa0] sm:$0xf]
        %v404 = vld [vmem:[%s349 + $0xa4] sm:$0xf]
        %v405 = vld [vmem:[%s349 + $0xa8] sm:$0xf]
        %v406 = vld [vmem:[%s349 + $0xac] sm:$0xf]
        %v407 = vld [vmem:[%s349 + $0xb0] sm:$0xf]
        %v408 = vld [vmem:[%s349 + $0xb4] sm:$0xf]
        %v409 = vld [vmem:[%s349 + $0xb8] sm:$0xf]
        %v410 = vld [vmem:[%s349 + $0xbc] sm:$0xf]
        %v411 = vld [vmem:[%s349 + $0xc0] sm:$0xf]
        %v412 = vld [vmem:[%s349 + $0xc4] sm:$0xf]
        %v413 = vld [vmem:[%s349 + $0xc8] sm:$0xf]
        %v414 = vld [vmem:[%s349 + $0xcc] sm:$0xf]
        %v415 = vld [vmem:[%s349 + $0xd0] sm:$0xf]
        %v416 = vld [vmem:[%s349 + $0xd4] sm:$0xf]
        %v417 = vld [vmem:[%s349 + $0xd8] sm:$0xf]
        %v418 = vld [vmem:[%s349 + $0xdc] sm:$0xf]
        %v419 = vld [vmem:[%s349 + $0xe0] sm:$0xf]
        %v420 = vld [vmem:[%s349 + $0xe4] sm:$0xf]
        %v421 = vld [vmem:[%s349 + $0xe8] sm:$0xf]
        %v422 = vld [vmem:[%s349 + $0xec] sm:$0xf]
        %v423 = vld [vmem:[%s349 + $0xf0] sm:$0xf]
        %v424 = vld [vmem:[%s349 + $0xf4] sm:$0xf]
        %v425 = vld [vmem:[%s349 + $0xf8] sm:$0xf]
        %v426 = vld [vmem:[%s349 + $0xfc] sm:$0xf]
        %v427 = vld [vmem:[%s349 + $0x100] sm:$0xf]
        %v428 = vld [vmem:[%s349 + $0x104] sm:$0xf]
        %v429 = vld [vmem:[%s349 + $0x108] sm:$0xf]
        %v430 = vld [vmem:[%s349 + $0x10c] sm:$0xf]
        %v431 = vld [vmem:[%s349 + $0x110] sm:$0xf]
        %v432 = vld [vmem:[%s349 + $0x114] sm:$0xf]
        %v433 = vld [vmem:[%s349 + $0x118] sm:$0xf]
        %v434 = vld [vmem:[%s349 + $0x11c] sm:$0xf]
        %v483 = vunpack.c.l.b16 %v363
        %v484 = vunpack.c.l.b16 %v364
        %v485 = vunpack.c.l.b16 %v366
        %v486 = vunpack.c.l.b16 %v367
        %v487 = vunpack.c.l.b16 %v369
        %v488 = vunpack.c.l.b16 %v370
        %v489 = vunpack.c.l.b16 %v372
        %v490 = vunpack.c.l.b16 %v373
        %v491 = vunpack.c.l.b16 %v375
        %v492 = vunpack.c.l.b16 %v376
        %v493 = vunpack.c.l.b16 %v378
        %v494 = vunpack.c.l.b16 %v379
        %v495 = vunpack.c.l.b16 %v381
        %v496 = vunpack.c.l.b16 %v382
        %v497 = vunpack.c.l.b16 %v384
        %v498 = vunpack.c.l.b16 %v385
        %v499 = vunpack.c.l.b16 %v387
        %v500 = vunpack.c.l.b16 %v388
        %v501 = vunpack.c.l.b16 %v390
        %v502 = vunpack.c.l.b16 %v391
        %v503 = vunpack.c.l.b16 %v393
        %v504 = vunpack.c.l.b16 %v394
        %v505 = vunpack.c.l.b16 %v396
        %v506 = vunpack.c.l.b16 %v397
        %v507 = vunpack.c.l.b16 %v399
        %v508 = vunpack.c.l.b16 %v400
        %v509 = vunpack.c.l.b16 %v402
        %v510 = vunpack.c.l.b16 %v403
        %v511 = vunpack.c.l.b16 %v405
        %v512 = vunpack.c.l.b16 %v406
        %v513 = vunpack.c.l.b16 %v408
        %v514 = vunpack.c.l.b16 %v409
        %v515 = vunpack.c.l.b16 %v411
        %v516 = vunpack.c.l.b16 %v412
        %v517 = vunpack.c.l.b16 %v414
        %v518 = vunpack.c.l.b16 %v415
        %v519 = vunpack.c.l.b16 %v417
        %v520 = vunpack.c.l.b16 %v418
        %v521 = vunpack.c.l.b16 %v420
        %v522 = vunpack.c.l.b16 %v421
        %v523 = vunpack.c.l.b16 %v423
        %v524 = vunpack.c.l.b16 %v424
        %v525 = vunpack.c.l.b16 %v426
        %v526 = vunpack.c.l.b16 %v427
        %v527 = vunpack.c.l.b16 %v429
        %v528 = vunpack.c.l.b16 %v430
        %v529 = vunpack.c.l.b16 %v432
        %v530 = vunpack.c.l.b16 %v433
        %v531 = vpack.c.b16 %v484, %v483
        %v532 = vpack.c.b16 %v486, %v485
        %v533 = vpack.c.b16 %v488, %v487
        %v534 = vpack.c.b16 %v490, %v489
        %v535 = vpack.c.b16 %v492, %v491
        %v536 = vpack.c.b16 %v494, %v493
        %v537 = vpack.c.b16 %v496, %v495
        %v538 = vpack.c.b16 %v498, %v497
        %v539 = vpack.c.b16 %v500, %v499
        %v540 = vpack.c.b16 %v502, %v501
        %v541 = vpack.c.b16 %v504, %v503
        %v542 = vpack.c.b16 %v506, %v505
        %v543 = vpack.c.b16 %v508, %v507
        %v544 = vpack.c.b16 %v510, %v509
        %v545 = vpack.c.b16 %v512, %v511
        %v546 = vpack.c.b16 %v514, %v513
        %v547 = vpack.c.b16 %v516, %v515
        %v548 = vpack.c.b16 %v518, %v517
        %v549 = vpack.c.b16 %v520, %v519
        %v550 = vpack.c.b16 %v522, %v521
        %v551 = vpack.c.b16 %v524, %v523
        %v552 = vpack.c.b16 %v526, %v525
        %v553 = vpack.c.b16 %v528, %v527
        %v554 = vpack.c.b16 %v530, %v529
        %v579 = vunpack.c.l.b16 %v365
        %v580 = vunpack.c.l.b16 %v368
        %v581 = vunpack.c.l.b16 %v371
        %v582 = vunpack.c.l.b16 %v374
        %v583 = vunpack.c.l.b16 %v377
        %v584 = vunpack.c.l.b16 %v380
        %v585 = vunpack.c.l.b16 %v383
        %v586 = vunpack.c.l.b16 %v386
        %v587 = vunpack.c.l.b16 %v389
        %v588 = vunpack.c.l.b16 %v392
        %v589 = vunpack.c.l.b16 %v395
        %v590 = vunpack.c.l.b16 %v398
        %v591 = vunpack.c.l.b16 %v401
        %v592 = vunpack.c.l.b16 %v404
        %v593 = vunpack.c.l.b16 %v407
        %v594 = vunpack.c.l.b16 %v410
        %v595 = vunpack.c.l.b16 %v413
        %v596 = vunpack.c.l.b16 %v416
        %v597 = vunpack.c.l.b16 %v419
        %v598 = vunpack.c.l.b16 %v422
        %v599 = vunpack.c.l.b16 %v425
        %v600 = vunpack.c.l.b16 %v428
        %v601 = vunpack.c.l.b16 %v431
        %v602 = vunpack.c.l.b16 %v434
        %v603 = vpack.c.b16 %v579, %v579
        %v604 = vpack.c.b16 %v580, %v580
        %v605 = vpack.c.b16 %v581, %v581
        %v606 = vpack.c.b16 %v582, %v582
        %v607 = vpack.c.b16 %v583, %v583
        %v608 = vpack.c.b16 %v584, %v584
        %v609 = vpack.c.b16 %v585, %v585
        %v610 = vpack.c.b16 %v586, %v586
        %v611 = vpack.c.b16 %v587, %v587
        %v612 = vpack.c.b16 %v588, %v588
        %v613 = vpack.c.b16 %v589, %v589
        %v614 = vpack.c.b16 %v590, %v590
        %v615 = vpack.c.b16 %v591, %v591
        %v616 = vpack.c.b16 %v592, %v592
        %v617 = vpack.c.b16 %v593, %v593
        %v618 = vpack.c.b16 %v594, %v594
        %v619 = vpack.c.b16 %v595, %v595
        %v620 = vpack.c.b16 %v596, %v596
        %v621 = vpack.c.b16 %v597, %v597
        %v622 = vpack.c.b16 %v598, %v598
        %v623 = vpack.c.b16 %v599, %v599
        %v624 = vpack.c.b16 %v600, %v600
        %v625 = vpack.c.b16 %v601, %v601
        %v626 = vpack.c.b16 %v602, %v602
        %vm627 = vsmask.f32 7424
        %v629 = vshrl.u32 %v531, 16
        %v631 = vshll.u32 %v531, 16
        %v633 = vrot.slane %v631, 1
        %v634 = vor.u32 %v629, %v633
        %v636 = vshll.u32 %v603, 16
        %v638 = vrot.slane %v636, 1
        %v639 = vsel %vm627, %v634, %v638
        %v641 = vshrl.u32 %v532, 16
        %v643 = vshll.u32 %v532, 16
        %v645 = vrot.slane %v643, 1
        %v646 = vor.u32 %v641, %v645
        %v648 = vshll.u32 %v604, 16
        %v650 = vrot.slane %v648, 1
        %v651 = vsel %vm627, %v646, %v650
        %v653 = vshrl.u32 %v533, 16
        %v655 = vshll.u32 %v533, 16
        %v657 = vrot.slane %v655, 1
        %v658 = vor.u32 %v653, %v657
        %v660 = vshll.u32 %v605, 16
        %v662 = vrot.slane %v660, 1
        %v663 = vsel %vm627, %v658, %v662
        %v665 = vshrl.u32 %v534, 16
        %v667 = vshll.u32 %v534, 16
        %v669 = vrot.slane %v667, 1
        %v670 = vor.u32 %v665, %v669
        %v672 = vshll.u32 %v606, 16
        %v674 = vrot.slane %v672, 1
        %v675 = vsel %vm627, %v670, %v674
        %v677 = vshrl.u32 %v535, 16
        %v679 = vshll.u32 %v535, 16
        %v681 = vrot.slane %v679, 1
        %v682 = vor.u32 %v677, %v681
        %v684 = vshll.u32 %v607, 16
        %v686 = vrot.slane %v684, 1
        %v687 = vsel %vm627, %v682, %v686
        %v689 = vshrl.u32 %v536, 16
        %v691 = vshll.u32 %v536, 16
        %v693 = vrot.slane %v691, 1
        %v694 = vor.u32 %v689, %v693
        %v696 = vshll.u32 %v608, 16
        %v698 = vrot.slane %v696, 1
        %v699 = vsel %vm627, %v694, %v698
        %v701 = vshrl.u32 %v537, 16
        %v703 = vshll.u32 %v537, 16
        %v705 = vrot.slane %v703, 1
        %v706 = vor.u32 %v701, %v705
        %v708 = vshll.u32 %v609, 16
        %v710 = vrot.slane %v708, 1
        %v711 = vsel %vm627, %v706, %v710
        %v713 = vshrl.u32 %v538, 16
        %v715 = vshll.u32 %v538, 16
        %v717 = vrot.slane %v715, 1
        %v718 = vor.u32 %v713, %v717
        %v720 = vshll.u32 %v610, 16
        %v722 = vrot.slane %v720, 1
        %v723 = vsel %vm627, %v718, %v722
        %v725 = vshrl.u32 %v539, 16
        %v727 = vshll.u32 %v539, 16
        %v729 = vrot.slane %v727, 1
        %v730 = vor.u32 %v725, %v729
        %v732 = vshll.u32 %v611, 16
        %v734 = vrot.slane %v732, 1
        %v735 = vsel %vm627, %v730, %v734
        %v737 = vshrl.u32 %v540, 16
        %v739 = vshll.u32 %v540, 16
        %v741 = vrot.slane %v739, 1
        %v742 = vor.u32 %v737, %v741
        %v744 = vshll.u32 %v612, 16
        %v746 = vrot.slane %v744, 1
        %v747 = vsel %vm627, %v742, %v746
        %v749 = vshrl.u32 %v541, 16
        %v751 = vshll.u32 %v541, 16
        %v753 = vrot.slane %v751, 1
        %v754 = vor.u32 %v749, %v753
        %v756 = vshll.u32 %v613, 16
        %v758 = vrot.slane %v756, 1
        %v759 = vsel %vm627, %v754, %v758
        %v761 = vshrl.u32 %v542, 16
        %v763 = vshll.u32 %v542, 16
        %v765 = vrot.slane %v763, 1
        %v766 = vor.u32 %v761, %v765
        %v768 = vshll.u32 %v614, 16
        %v770 = vrot.slane %v768, 1
        %v771 = vsel %vm627, %v766, %v770
        %v773 = vshrl.u32 %v543, 16
        %v775 = vshll.u32 %v543, 16
        %v777 = vrot.slane %v775, 1
        %v778 = vor.u32 %v773, %v777
        %v780 = vshll.u32 %v615, 16
        %v782 = vrot.slane %v780, 1
        %v783 = vsel %vm627, %v778, %v782
        %v785 = vshrl.u32 %v544, 16
        %v787 = vshll.u32 %v544, 16
        %v789 = vrot.slane %v787, 1
        %v790 = vor.u32 %v785, %v789
        %v792 = vshll.u32 %v616, 16
        %v794 = vrot.slane %v792, 1
        %v795 = vsel %vm627, %v790, %v794
        %v797 = vshrl.u32 %v545, 16
        %v799 = vshll.u32 %v545, 16
        %v801 = vrot.slane %v799, 1
        %v802 = vor.u32 %v797, %v801
        %v804 = vshll.u32 %v617, 16
        %v806 = vrot.slane %v804, 1
        %v807 = vsel %vm627, %v802, %v806
        %v809 = vshrl.u32 %v546, 16
        %v811 = vshll.u32 %v546, 16
        %v813 = vrot.slane %v811, 1
        %v814 = vor.u32 %v809, %v813
        %v816 = vshll.u32 %v618, 16
        %v818 = vrot.slane %v816, 1
        %v819 = vsel %vm627, %v814, %v818
        %v821 = vshrl.u32 %v547, 16
        %v823 = vshll.u32 %v547, 16
        %v825 = vrot.slane %v823, 1
        %v826 = vor.u32 %v821, %v825
        %v828 = vshll.u32 %v619, 16
        %v830 = vrot.slane %v828, 1
        %v831 = vsel %vm627, %v826, %v830
        %v833 = vshrl.u32 %v548, 16
        %v835 = vshll.u32 %v548, 16
        %v837 = vrot.slane %v835, 1
        %v838 = vor.u32 %v833, %v837
        %v840 = vshll.u32 %v620, 16
        %v842 = vrot.slane %v840, 1
        %v843 = vsel %vm627, %v838, %v842
        %v845 = vshrl.u32 %v549, 16
        %v847 = vshll.u32 %v549, 16
        %v849 = vrot.slane %v847, 1
        %v850 = vor.u32 %v845, %v849
        %v852 = vshll.u32 %v621, 16
        %v854 = vrot.slane %v852, 1
        %v855 = vsel %vm627, %v850, %v854
        %v857 = vshrl.u32 %v550, 16
        %v859 = vshll.u32 %v550, 16
        %v861 = vrot.slane %v859, 1
        %v862 = vor.u32 %v857, %v861
        %v864 = vshll.u32 %v622, 16
        %v866 = vrot.slane %v864, 1
        %v867 = vsel %vm627, %v862, %v866
        %v869 = vshrl.u32 %v551, 16
        %v871 = vshll.u32 %v551, 16
        %v873 = vrot.slane %v871, 1
        %v874 = vor.u32 %v869, %v873
        %v876 = vshll.u32 %v623, 16
        %v878 = vrot.slane %v876, 1
        %v879 = vsel %vm627, %v874, %v878
        %v881 = vshrl.u32 %v552, 16
        %v883 = vshll.u32 %v552, 16
        %v885 = vrot.slane %v883, 1
        %v886 = vor.u32 %v881, %v885
        %v888 = vshll.u32 %v624, 16
        %v890 = vrot.slane %v888, 1
        %v891 = vsel %vm627, %v886, %v890
        %v893 = vshrl.u32 %v553, 16
        %v895 = vshll.u32 %v553, 16
        %v897 = vrot.slane %v895, 1
        %v898 = vor.u32 %v893, %v897
        %v900 = vshll.u32 %v625, 16
        %v902 = vrot.slane %v900, 1
        %v903 = vsel %vm627, %v898, %v902
        %v905 = vshrl.u32 %v554, 16
        %v907 = vshll.u32 %v554, 16
        %v909 = vrot.slane %v907, 1
        %v910 = vor.u32 %v905, %v909
        %v912 = vshll.u32 %v626, 16
        %v914 = vrot.slane %v912, 1
        %v915 = vsel %vm627, %v910, %v914
        %916 = vrot.lane.b32.xlu0 %v639, 6
        %v917 = vpop.permute.xlu0 %916
        %918 = vrot.lane.b32.xlu0 %v651, 6
        %v919 = vpop.permute.xlu0 %918
        %920 = vrot.lane.b32.xlu0 %v663, 6
        %v921 = vpop.permute.xlu0 %920
        %922 = vrot.lane.b32.xlu0 %v675, 6
        %v923 = vpop.permute.xlu0 %922
        %924 = vrot.lane.b32.xlu0 %v687, 6
        %v925 = vpop.permute.xlu0 %924
        %926 = vrot.lane.b32.xlu0 %v699, 6
        %v927 = vpop.permute.xlu0 %926
        %928 = vrot.lane.b32.xlu0 %v711, 6
        %v929 = vpop.permute.xlu0 %928
        %930 = vrot.lane.b32.xlu0 %v723, 6
        %v931 = vpop.permute.xlu0 %930
        %932 = vrot.lane.b32.xlu0 %v735, 6
        %v933 = vpop.permute.xlu0 %932
        %934 = vrot.lane.b32.xlu0 %v747, 6
        %v935 = vpop.permute.xlu0 %934
        %936 = vrot.lane.b32.xlu0 %v759, 6
        %v937 = vpop.permute.xlu0 %936
        %938 = vrot.lane.b32.xlu0 %v771, 6
        %v939 = vpop.permute.xlu0 %938
        %940 = vrot.lane.b32.xlu0 %v783, 6
        %v941 = vpop.permute.xlu0 %940
        %942 = vrot.lane.b32.xlu0 %v795, 6
        %v943 = vpop.permute.xlu0 %942
        %944 = vrot.lane.b32.xlu0 %v807, 6
        %v945 = vpop.permute.xlu0 %944
        %946 = vrot.lane.b32.xlu0 %v819, 6
        %v947 = vpop.permute.xlu0 %946
        %948 = vrot.lane.b32.xlu0 %v831, 6
        %v949 = vpop.permute.xlu0 %948
        %950 = vrot.lane.b32.xlu0 %v843, 6
        %v951 = vpop.permute.xlu0 %950
        %952 = vrot.lane.b32.xlu0 %v855, 6
        %v953 = vpop.permute.xlu0 %952
        %954 = vrot.lane.b32.xlu0 %v867, 6
        %v955 = vpop.permute.xlu0 %954
        %956 = vrot.lane.b32.xlu0 %v879, 6
        %v957 = vpop.permute.xlu0 %956
        %958 = vrot.lane.b32.xlu0 %v891, 6
        %v959 = vpop.permute.xlu0 %958
        %960 = vrot.lane.b32.xlu0 %v903, 6
        %v961 = vpop.permute.xlu0 %960
        %962 = vrot.lane.b32.xlu0 %v915, 6
        %v963 = vpop.permute.xlu0 %962
        %vm964 = vcmask 1046528
        %v965 = vrot.slane %v531, 1
        %v966 = vrot.slane %v603, 1
        %v967 = vsel %vm964, %v965, %v966
        %v968 = vrot.slane %v532, 1
        %v969 = vrot.slane %v604, 1
        %v970 = vsel %vm964, %v968, %v969
        %v971 = vrot.slane %v533, 1
        %v972 = vrot.slane %v605, 1
        %v973 = vsel %vm964, %v971, %v972
        %v974 = vrot.slane %v534, 1
        %v975 = vrot.slane %v606, 1
        %v976 = vsel %vm964, %v974, %v975
        %v977 = vrot.slane %v535, 1
        %v978 = vrot.slane %v607, 1
        %v979 = vsel %vm964, %v977, %v978
        %v980 = vrot.slane %v536, 1
        %v981 = vrot.slane %v608, 1
        %v982 = vsel %vm964, %v980, %v981
        %v983 = vrot.slane %v537, 1
        %v984 = vrot.slane %v609, 1
        %v985 = vsel %vm964, %v983, %v984
        %v986 = vrot.slane %v538, 1
        %v987 = vrot.slane %v610, 1
        %v988 = vsel %vm964, %v986, %v987
        %v989 = vrot.slane %v539, 1
        %v990 = vrot.slane %v611, 1
        %v991 = vsel %vm964, %v989, %v990
        %v992 = vrot.slane %v540, 1
        %v993 = vrot.slane %v612, 1
        %v994 = vsel %vm964, %v992, %v993
        %v995 = vrot.slane %v541, 1
        %v996 = vrot.slane %v613, 1
        %v997 = vsel %vm964, %v995, %v996
        %v998 = vrot.slane %v542, 1
        %v999 = vrot.slane %v614, 1
        %v1000 = vsel %vm964, %v998, %v999
        %v1001 = vrot.slane %v543, 1
        %v1002 = vrot.slane %v615, 1
        %v1003 = vsel %vm964, %v1001, %v1002
        %v1004 = vrot.slane %v544, 1
        %v1005 = vrot.slane %v616, 1
        %v1006 = vsel %vm964, %v1004, %v1005
        %v1007 = vrot.slane %v545, 1
        %v1008 = vrot.slane %v617, 1
        %v1009 = vsel %vm964, %v1007, %v1008
        %v1010 = vrot.slane %v546, 1
        %v1011 = vrot.slane %v618, 1
        %v1012 = vsel %vm964, %v1010, %v1011
        %v1013 = vrot.slane %v547, 1
        %v1014 = vrot.slane %v619, 1
        %v1015 = vsel %vm964, %v1013, %v1014
        %v1016 = vrot.slane %v548, 1
        %v1017 = vrot.slane %v620, 1
        %v1018 = vsel %vm964, %v1016, %v1017
        %v1019 = vrot.slane %v549, 1
        %v1020 = vrot.slane %v621, 1
        %v1021 = vsel %vm964, %v1019, %v1020
        %v1022 = vrot.slane %v550, 1
        %v1023 = vrot.slane %v622, 1
        %v1024 = vsel %vm964, %v1022, %v1023
        %v1025 = vrot.slane %v551, 1
        %v1026 = vrot.slane %v623, 1
        %v1027 = vsel %vm964, %v1025, %v1026
        %v1028 = vrot.slane %v552, 1
        %v1029 = vrot.slane %v624, 1
        %v1030 = vsel %vm964, %v1028, %v1029
        %v1031 = vrot.slane %v553, 1
        %v1032 = vrot.slane %v625, 1
        %v1033 = vsel %vm964, %v1031, %v1032
        %v1034 = vrot.slane %v554, 1
        %v1035 = vrot.slane %v626, 1
        %v1036 = vsel %vm964, %v1034, %v1035
        %1037 = vrot.lane.b32.xlu0 %v967, 12
        %v1038 = vpop.permute.xlu0 %1037
        %1039 = vrot.lane.b32.xlu0 %v970, 12
        %v1040 = vpop.permute.xlu0 %1039
        %1041 = vrot.lane.b32.xlu0 %v973, 12
        %v1042 = vpop.permute.xlu0 %1041
        %1043 = vrot.lane.b32.xlu0 %v976, 12
        %v1044 = vpop.permute.xlu0 %1043
        %1045 = vrot.lane.b32.xlu0 %v979, 12
        %v1046 = vpop.permute.xlu0 %1045
        %1047 = vrot.lane.b32.xlu0 %v982, 12
        %v1048 = vpop.permute.xlu0 %1047
        %1049 = vrot.lane.b32.xlu0 %v985, 12
        %v1050 = vpop.permute.xlu0 %1049
        %1051 = vrot.lane.b32.xlu0 %v988, 12
        %v1052 = vpop.permute.xlu0 %1051
        %1053 = vrot.lane.b32.xlu0 %v991, 12
        %v1054 = vpop.permute.xlu0 %1053
        %1055 = vrot.lane.b32.xlu0 %v994, 12
        %v1056 = vpop.permute.xlu0 %1055
        %1057 = vrot.lane.b32.xlu0 %v997, 12
        %v1058 = vpop.permute.xlu0 %1057
        %1059 = vrot.lane.b32.xlu0 %v1000, 12
        %v1060 = vpop.permute.xlu0 %1059
        %1061 = vrot.lane.b32.xlu0 %v1003, 12
        %v1062 = vpop.permute.xlu0 %1061
        %1063 = vrot.lane.b32.xlu0 %v1006, 12
        %v1064 = vpop.permute.xlu0 %1063
        %1065 = vrot.lane.b32.xlu0 %v1009, 12
        %v1066 = vpop.permute.xlu0 %1065
        %1067 = vrot.lane.b32.xlu0 %v1012, 12
        %v1068 = vpop.permute.xlu0 %1067
        %1069 = vrot.lane.b32.xlu0 %v1015, 12
        %v1070 = vpop.permute.xlu0 %1069
        %1071 = vrot.lane.b32.xlu0 %v1018, 12
        %v1072 = vpop.permute.xlu0 %1071
        %1073 = vrot.lane.b32.xlu0 %v1021, 12
        %v1074 = vpop.permute.xlu0 %1073
        %1075 = vrot.lane.b32.xlu0 %v1024, 12
        %v1076 = vpop.permute.xlu0 %1075
        %1077 = vrot.lane.b32.xlu0 %v1027, 12
        %v1078 = vpop.permute.xlu0 %1077
        %1079 = vrot.lane.b32.xlu0 %v1030, 12
        %v1080 = vpop.permute.xlu0 %1079
        %1081 = vrot.lane.b32.xlu0 %v1033, 12
        %v1082 = vpop.permute.xlu0 %1081
        %1083 = vrot.lane.b32.xlu0 %v1036, 12
        %v1084 = vpop.permute.xlu0 %1083
        %vm1085 = vsmask.f32 6400
        %v1086 = vrot.slane %v629, 1
        %v1087 = vrot.slane %v631, 2
        %v1088 = vor.u32 %v1086, %v1087
        %v1089 = vshrl.u32 %v603, 16
        %v1091 = vrot.slane %v1089, 1
        %v1092 = vrot.slane %v636, 2
        %v1093 = vor.u32 %v1091, %v1092
        %v1094 = vsel %vm1085, %v1088, %v1093
        %v1095 = vrot.slane %v641, 1
        %v1096 = vrot.slane %v643, 2
        %v1097 = vor.u32 %v1095, %v1096
        %v1098 = vshrl.u32 %v604, 16
        %v1100 = vrot.slane %v1098, 1
        %v1101 = vrot.slane %v648, 2
        %v1102 = vor.u32 %v1100, %v1101
        %v1103 = vsel %vm1085, %v1097, %v1102
        %v1104 = vrot.slane %v653, 1
        %v1105 = vrot.slane %v655, 2
        %v1106 = vor.u32 %v1104, %v1105
        %v1107 = vshrl.u32 %v605, 16
        %v1109 = vrot.slane %v1107, 1
        %v1110 = vrot.slane %v660, 2
        %v1111 = vor.u32 %v1109, %v1110
        %v1112 = vsel %vm1085, %v1106, %v1111
        %v1113 = vrot.slane %v665, 1
        %v1114 = vrot.slane %v667, 2
        %v1115 = vor.u32 %v1113, %v1114
        %v1116 = vshrl.u32 %v606, 16
        %v1118 = vrot.slane %v1116, 1
        %v1119 = vrot.slane %v672, 2
        %v1120 = vor.u32 %v1118, %v1119
        %v1121 = vsel %vm1085, %v1115, %v1120
        %v1122 = vrot.slane %v677, 1
        %v1123 = vrot.slane %v679, 2
        %v1124 = vor.u32 %v1122, %v1123
        %v1125 = vshrl.u32 %v607, 16
        %v1127 = vrot.slane %v1125, 1
        %v1128 = vrot.slane %v684, 2
        %v1129 = vor.u32 %v1127, %v1128
        %v1130 = vsel %vm1085, %v1124, %v1129
        %v1131 = vrot.slane %v689, 1
        %v1132 = vrot.slane %v691, 2
        %v1133 = vor.u32 %v1131, %v1132
        %v1134 = vshrl.u32 %v608, 16
        %v1136 = vrot.slane %v1134, 1
        %v1137 = vrot.slane %v696, 2
        %v1138 = vor.u32 %v1136, %v1137
        %v1139 = vsel %vm1085, %v1133, %v1138
        %v1140 = vrot.slane %v701, 1
        %v1141 = vrot.slane %v703, 2
        %v1142 = vor.u32 %v1140, %v1141
        %v1143 = vshrl.u32 %v609, 16
        %v1145 = vrot.slane %v1143, 1
        %v1146 = vrot.slane %v708, 2
        %v1147 = vor.u32 %v1145, %v1146
        %v1148 = vsel %vm1085, %v1142, %v1147
        %v1149 = vrot.slane %v713, 1
        %v1150 = vrot.slane %v715, 2
        %v1151 = vor.u32 %v1149, %v1150
        %v1152 = vshrl.u32 %v610, 16
        %v1154 = vrot.slane %v1152, 1
        %v1155 = vrot.slane %v720, 2
        %v1156 = vor.u32 %v1154, %v1155
        %v1157 = vsel %vm1085, %v1151, %v1156
        %v1158 = vrot.slane %v725, 1
        %v1159 = vrot.slane %v727, 2
        %v1160 = vor.u32 %v1158, %v1159
        %v1161 = vshrl.u32 %v611, 16
        %v1163 = vrot.slane %v1161, 1
        %v1164 = vrot.slane %v732, 2
        %v1165 = vor.u32 %v1163, %v1164
        %v1166 = vsel %vm1085, %v1160, %v1165
        %v1167 = vrot.slane %v737, 1
        %v1168 = vrot.slane %v739, 2
        %v1169 = vor.u32 %v1167, %v1168
        %v1170 = vshrl.u32 %v612, 16
        %v1172 = vrot.slane %v1170, 1
        %v1173 = vrot.slane %v744, 2
        %v1174 = vor.u32 %v1172, %v1173
        %v1175 = vsel %vm1085, %v1169, %v1174
        %v1176 = vrot.slane %v749, 1
        %v1177 = vrot.slane %v751, 2
        %v1178 = vor.u32 %v1176, %v1177
        %v1179 = vshrl.u32 %v613, 16
        %v1181 = vrot.slane %v1179, 1
        %v1182 = vrot.slane %v756, 2
        %v1183 = vor.u32 %v1181, %v1182
        %v1184 = vsel %vm1085, %v1178, %v1183
        %v1185 = vrot.slane %v761, 1
        %v1186 = vrot.slane %v763, 2
        %v1187 = vor.u32 %v1185, %v1186
        %v1188 = vshrl.u32 %v614, 16
        %v1190 = vrot.slane %v1188, 1
        %v1191 = vrot.slane %v768, 2
        %v1192 = vor.u32 %v1190, %v1191
        %v1193 = vsel %vm1085, %v1187, %v1192
        %v1194 = vrot.slane %v773, 1
        %v1195 = vrot.slane %v775, 2
        %v1196 = vor.u32 %v1194, %v1195
        %v1197 = vshrl.u32 %v615, 16
        %v1199 = vrot.slane %v1197, 1
        %v1200 = vrot.slane %v780, 2
        %v1201 = vor.u32 %v1199, %v1200
        %v1202 = vsel %vm1085, %v1196, %v1201
        %v1203 = vrot.slane %v785, 1
        %v1204 = vrot.slane %v787, 2
        %v1205 = vor.u32 %v1203, %v1204
        %v1206 = vshrl.u32 %v616, 16
        %v1208 = vrot.slane %v1206, 1
        %v1209 = vrot.slane %v792, 2
        %v1210 = vor.u32 %v1208, %v1209
        %v1211 = vsel %vm1085, %v1205, %v1210
        %v1212 = vrot.slane %v797, 1
        %v1213 = vrot.slane %v799, 2
        %v1214 = vor.u32 %v1212, %v1213
        %v1215 = vshrl.u32 %v617, 16
        %v1217 = vrot.slane %v1215, 1
        %v1218 = vrot.slane %v804, 2
        %v1219 = vor.u32 %v1217, %v1218
        %v1220 = vsel %vm1085, %v1214, %v1219
        %v1221 = vrot.slane %v809, 1
        %v1222 = vrot.slane %v811, 2
        %v1223 = vor.u32 %v1221, %v1222
        %v1224 = vshrl.u32 %v618, 16
        %v1226 = vrot.slane %v1224, 1
        %v1227 = vrot.slane %v816, 2
        %v1228 = vor.u32 %v1226, %v1227
        %v1229 = vsel %vm1085, %v1223, %v1228
        %v1230 = vrot.slane %v821, 1
        %v1231 = vrot.slane %v823, 2
        %v1232 = vor.u32 %v1230, %v1231
        %v1233 = vshrl.u32 %v619, 16
        %v1235 = vrot.slane %v1233, 1
        %v1236 = vrot.slane %v828, 2
        %v1237 = vor.u32 %v1235, %v1236
        %v1238 = vsel %vm1085, %v1232, %v1237
        %v1239 = vrot.slane %v833, 1
        %v1240 = vrot.slane %v835, 2
        %v1241 = vor.u32 %v1239, %v1240
        %v1242 = vshrl.u32 %v620, 16
        %v1244 = vrot.slane %v1242, 1
        %v1245 = vrot.slane %v840, 2
        %v1246 = vor.u32 %v1244, %v1245
        %v1247 = vsel %vm1085, %v1241, %v1246
        %v1248 = vrot.slane %v845, 1
        %v1249 = vrot.slane %v847, 2
        %v1250 = vor.u32 %v1248, %v1249
        %v1251 = vshrl.u32 %v621, 16
        %v1253 = vrot.slane %v1251, 1
        %v1254 = vrot.slane %v852, 2
        %v1255 = vor.u32 %v1253, %v1254
        %v1256 = vsel %vm1085, %v1250, %v1255
        %v1257 = vrot.slane %v857, 1
        %v1258 = vrot.slane %v859, 2
        %v1259 = vor.u32 %v1257, %v1258
        %v1260 = vshrl.u32 %v622, 16
        %v1262 = vrot.slane %v1260, 1
        %v1263 = vrot.slane %v864, 2
        %v1264 = vor.u32 %v1262, %v1263
        %v1265 = vsel %vm1085, %v1259, %v1264
        %v1266 = vrot.slane %v869, 1
        %v1267 = vrot.slane %v871, 2
        %v1268 = vor.u32 %v1266, %v1267
        %v1269 = vshrl.u32 %v623, 16
        %v1271 = vrot.slane %v1269, 1
        %v1272 = vrot.slane %v876, 2
        %v1273 = vor.u32 %v1271, %v1272
        %v1274 = vsel %vm1085, %v1268, %v1273
        %v1275 = vrot.slane %v881, 1
        %v1276 = vrot.slane %v883, 2
        %v1277 = vor.u32 %v1275, %v1276
        %v1278 = vshrl.u32 %v624, 16
        %v1280 = vrot.slane %v1278, 1
        %v1281 = vrot.slane %v888, 2
        %v1282 = vor.u32 %v1280, %v1281
        %v1283 = vsel %vm1085, %v1277, %v1282
        %v1284 = vrot.slane %v893, 1
        %v1285 = vrot.slane %v895, 2
        %v1286 = vor.u32 %v1284, %v1285
        %v1287 = vshrl.u32 %v625, 16
        %v1289 = vrot.slane %v1287, 1
        %v1290 = vrot.slane %v900, 2
        %v1291 = vor.u32 %v1289, %v1290
        %v1292 = vsel %vm1085, %v1286, %v1291
        %v1293 = vrot.slane %v905, 1
        %v1294 = vrot.slane %v907, 2
        %v1295 = vor.u32 %v1293, %v1294
        %v1296 = vshrl.u32 %v626, 16
        %v1298 = vrot.slane %v1296, 1
        %v1299 = vrot.slane %v912, 2
        %v1300 = vor.u32 %v1298, %v1299
        %v1301 = vsel %vm1085, %v1295, %v1300
        %1302 = vrot.lane.b32.xlu0 %v1094, 18
        %v1303 = vpop.permute.xlu0 %1302
        %1304 = vrot.lane.b32.xlu0 %v1103, 18
        %v1305 = vpop.permute.xlu0 %1304
        %1306 = vrot.lane.b32.xlu0 %v1112, 18
        %v1307 = vpop.permute.xlu0 %1306
        %1308 = vrot.lane.b32.xlu0 %v1121, 18
        %v1309 = vpop.permute.xlu0 %1308
        %1310 = vrot.lane.b32.xlu0 %v1130, 18
        %v1311 = vpop.permute.xlu0 %1310
        %1312 = vrot.lane.b32.xlu0 %v1139, 18
        %v1313 = vpop.permute.xlu0 %1312
        %1314 = vrot.lane.b32.xlu0 %v1148, 18
        %v1315 = vpop.permute.xlu0 %1314
        %1316 = vrot.lane.b32.xlu0 %v1157, 18
        %v1317 = vpop.permute.xlu0 %1316
        %1318 = vrot.lane.b32.xlu0 %v1166, 18
        %v1319 = vpop.permute.xlu0 %1318
        %1320 = vrot.lane.b32.xlu0 %v1175, 18
        %v1321 = vpop.permute.xlu0 %1320
        %1322 = vrot.lane.b32.xlu0 %v1184, 18
        %v1323 = vpop.permute.xlu0 %1322
        %1324 = vrot.lane.b32.xlu0 %v1193, 18
        %v1325 = vpop.permute.xlu0 %1324
        %1326 = vrot.lane.b32.xlu0 %v1202, 18
        %v1327 = vpop.permute.xlu0 %1326
        %1328 = vrot.lane.b32.xlu0 %v1211, 18
        %v1329 = vpop.permute.xlu0 %1328
        %1330 = vrot.lane.b32.xlu0 %v1220, 18
        %v1331 = vpop.permute.xlu0 %1330
        %1332 = vrot.lane.b32.xlu0 %v1229, 18
        %v1333 = vpop.permute.xlu0 %1332
        %1334 = vrot.lane.b32.xlu0 %v1238, 18
        %v1335 = vpop.permute.xlu0 %1334
        %1336 = vrot.lane.b32.xlu0 %v1247, 18
        %v1337 = vpop.permute.xlu0 %1336
        %1338 = vrot.lane.b32.xlu0 %v1256, 18
        %v1339 = vpop.permute.xlu0 %1338
        %1340 = vrot.lane.b32.xlu0 %v1265, 18
        %v1341 = vpop.permute.xlu0 %1340
        %1342 = vrot.lane.b32.xlu0 %v1274, 18
        %v1343 = vpop.permute.xlu0 %1342
        %1344 = vrot.lane.b32.xlu0 %v1283, 18
        %v1345 = vpop.permute.xlu0 %1344
        %1346 = vrot.lane.b32.xlu0 %v1292, 18
        %v1347 = vpop.permute.xlu0 %1346
        %1348 = vrot.lane.b32.xlu0 %v1301, 18
        %v1349 = vpop.permute.xlu0 %1348
        %vm1350 = vcmask 1045504
        %v1351 = vrot.slane %v531, 2
        %v1352 = vrot.slane %v603, 2
        %v1353 = vsel %vm1350, %v1351, %v1352
        %v1354 = vrot.slane %v532, 2
        %v1355 = vrot.slane %v604, 2
        %v1356 = vsel %vm1350, %v1354, %v1355
        %v1357 = vrot.slane %v533, 2
        %v1358 = vrot.slane %v605, 2
        %v1359 = vsel %vm1350, %v1357, %v1358
        %v1360 = vrot.slane %v534, 2
        %v1361 = vrot.slane %v606, 2
        %v1362 = vsel %vm1350, %v1360, %v1361
        %v1363 = vrot.slane %v535, 2
        %v1364 = vrot.slane %v607, 2
        %v1365 = vsel %vm1350, %v1363, %v1364
        %v1366 = vrot.slane %v536, 2
        %v1367 = vrot.slane %v608, 2
        %v1368 = vsel %vm1350, %v1366, %v1367
        %v1369 = vrot.slane %v537, 2
        %v1370 = vrot.slane %v609, 2
        %v1371 = vsel %vm1350, %v1369, %v1370
        %v1372 = vrot.slane %v538, 2
        %v1373 = vrot.slane %v610, 2
        %v1374 = vsel %vm1350, %v1372, %v1373
        %v1375 = vrot.slane %v539, 2
        %v1376 = vrot.slane %v611, 2
        %v1377 = vsel %vm1350, %v1375, %v1376
        %v1378 = vrot.slane %v540, 2
        %v1379 = vrot.slane %v612, 2
        %v1380 = vsel %vm1350, %v1378, %v1379
        %v1381 = vrot.slane %v541, 2
        %v1382 = vrot.slane %v613, 2
        %v1383 = vsel %vm1350, %v1381, %v1382
        %v1384 = vrot.slane %v542, 2
        %v1385 = vrot.slane %v614, 2
        %v1386 = vsel %vm1350, %v1384, %v1385
        %v1387 = vrot.slane %v543, 2
        %v1388 = vrot.slane %v615, 2
        %v1389 = vsel %vm1350, %v1387, %v1388
        %v1390 = vrot.slane %v544, 2
        %v1391 = vrot.slane %v616, 2
        %v1392 = vsel %vm1350, %v1390, %v1391
        %v1393 = vrot.slane %v545, 2
        %v1394 = vrot.slane %v617, 2
        %v1395 = vsel %vm1350, %v1393, %v1394
        %v1396 = vrot.slane %v546, 2
        %v1397 = vrot.slane %v618, 2
        %v1398 = vsel %vm1350, %v1396, %v1397
        %v1399 = vrot.slane %v547, 2
        %v1400 = vrot.slane %v619, 2
        %v1401 = vsel %vm1350, %v1399, %v1400
        %v1402 = vrot.slane %v548, 2
        %v1403 = vrot.slane %v620, 2
        %v1404 = vsel %vm1350, %v1402, %v1403
        %v1405 = vrot.slane %v549, 2
        %v1406 = vrot.slane %v621, 2
        %v1407 = vsel %vm1350, %v1405, %v1406
        %v1408 = vrot.slane %v550, 2
        %v1409 = vrot.slane %v622, 2
        %v1410 = vsel %vm1350, %v1408, %v1409
        %v1411 = vrot.slane %v551, 2
        %v1412 = vrot.slane %v623, 2
        %v1413 = vsel %vm1350, %v1411, %v1412
        %v1414 = vrot.slane %v552, 2
        %v1415 = vrot.slane %v624, 2
        %v1416 = vsel %vm1350, %v1414, %v1415
        %v1417 = vrot.slane %v553, 2
        %v1418 = vrot.slane %v625, 2
        %v1419 = vsel %vm1350, %v1417, %v1418
        %v1420 = vrot.slane %v554, 2
        %v1421 = vrot.slane %v626, 2
        %v1422 = vsel %vm1350, %v1420, %v1421
        %1423 = vrot.lane.b32.xlu0 %v1353, 24
        %v1424 = vpop.permute.xlu0 %1423
        %1425 = vrot.lane.b32.xlu0 %v1356, 24
        %v1426 = vpop.permute.xlu0 %1425
        %1427 = vrot.lane.b32.xlu0 %v1359, 24
        %v1428 = vpop.permute.xlu0 %1427
        %1429 = vrot.lane.b32.xlu0 %v1362, 24
        %v1430 = vpop.permute.xlu0 %1429
        %1431 = vrot.lane.b32.xlu0 %v1365, 24
        %v1432 = vpop.permute.xlu0 %1431
        %1433 = vrot.lane.b32.xlu0 %v1368, 24
        %v1434 = vpop.permute.xlu0 %1433
        %1435 = vrot.lane.b32.xlu0 %v1371, 24
        %v1436 = vpop.permute.xlu0 %1435
        %1437 = vrot.lane.b32.xlu0 %v1374, 24
        %v1438 = vpop.permute.xlu0 %1437
        %1439 = vrot.lane.b32.xlu0 %v1377, 24
        %v1440 = vpop.permute.xlu0 %1439
        %1441 = vrot.lane.b32.xlu0 %v1380, 24
        %v1442 = vpop.permute.xlu0 %1441
        %1443 = vrot.lane.b32.xlu0 %v1383, 24
        %v1444 = vpop.permute.xlu0 %1443
        %1445 = vrot.lane.b32.xlu0 %v1386, 24
        %v1446 = vpop.permute.xlu0 %1445
        %1447 = vrot.lane.b32.xlu0 %v1389, 24
        %v1448 = vpop.permute.xlu0 %1447
        %1449 = vrot.lane.b32.xlu0 %v1392, 24
        %v1450 = vpop.permute.xlu0 %1449
        %1451 = vrot.lane.b32.xlu0 %v1395, 24
        %v1452 = vpop.permute.xlu0 %1451
        %1453 = vrot.lane.b32.xlu0 %v1398, 24
        %v1454 = vpop.permute.xlu0 %1453
        %1455 = vrot.lane.b32.xlu0 %v1401, 24
        %v1456 = vpop.permute.xlu0 %1455
        %1457 = vrot.lane.b32.xlu0 %v1404, 24
        %v1458 = vpop.permute.xlu0 %1457
        %1459 = vrot.lane.b32.xlu0 %v1407, 24
        %v1460 = vpop.permute.xlu0 %1459
        %1461 = vrot.lane.b32.xlu0 %v1410, 24
        %v1462 = vpop.permute.xlu0 %1461
        %1463 = vrot.lane.b32.xlu0 %v1413, 24
        %v1464 = vpop.permute.xlu0 %1463
        %1465 = vrot.lane.b32.xlu0 %v1416, 24
        %v1466 = vpop.permute.xlu0 %1465
        %1467 = vrot.lane.b32.xlu0 %v1419, 24
        %v1468 = vpop.permute.xlu0 %1467
        %1469 = vrot.lane.b32.xlu0 %v1422, 24
        %v1470 = vpop.permute.xlu0 %1469
        %vm1471 = vsmask.f32 5376
        %v1472 = vrot.slane %v629, 2
        %v1473 = vrot.slane %v631, 3
        %v1474 = vor.u32 %v1472, %v1473
        %v1475 = vrot.slane %v1089, 2
        %v1476 = vrot.slane %v636, 3
        %v1477 = vor.u32 %v1475, %v1476
        %v1478 = vsel %vm1471, %v1474, %v1477
        %v1479 = vrot.slane %v641, 2
        %v1480 = vrot.slane %v643, 3
        %v1481 = vor.u32 %v1479, %v1480
        %v1482 = vrot.slane %v1098, 2
        %v1483 = vrot.slane %v648, 3
        %v1484 = vor.u32 %v1482, %v1483
        %v1485 = vsel %vm1471, %v1481, %v1484
        %v1486 = vrot.slane %v653, 2
        %v1487 = vrot.slane %v655, 3
        %v1488 = vor.u32 %v1486, %v1487
        %v1489 = vrot.slane %v1107, 2
        %v1490 = vrot.slane %v660, 3
        %v1491 = vor.u32 %v1489, %v1490
        %v1492 = vsel %vm1471, %v1488, %v1491
        %v1493 = vrot.slane %v665, 2
        %v1494 = vrot.slane %v667, 3
        %v1495 = vor.u32 %v1493, %v1494
        %v1496 = vrot.slane %v1116, 2
        %v1497 = vrot.slane %v672, 3
        %v1498 = vor.u32 %v1496, %v1497
        %v1499 = vsel %vm1471, %v1495, %v1498
        %v1500 = vrot.slane %v677, 2
        %v1501 = vrot.slane %v679, 3
        %v1502 = vor.u32 %v1500, %v1501
        %v1503 = vrot.slane %v1125, 2
        %v1504 = vrot.slane %v684, 3
        %v1505 = vor.u32 %v1503, %v1504
        %v1506 = vsel %vm1471, %v1502, %v1505
        %v1507 = vrot.slane %v689, 2
        %v1508 = vrot.slane %v691, 3
        %v1509 = vor.u32 %v1507, %v1508
        %v1510 = vrot.slane %v1134, 2
        %v1511 = vrot.slane %v696, 3
        %v1512 = vor.u32 %v1510, %v1511
        %v1513 = vsel %vm1471, %v1509, %v1512
        %v1514 = vrot.slane %v701, 2
        %v1515 = vrot.slane %v703, 3
        %v1516 = vor.u32 %v1514, %v1515
        %v1517 = vrot.slane %v1143, 2
        %v1518 = vrot.slane %v708, 3
        %v1519 = vor.u32 %v1517, %v1518
        %v1520 = vsel %vm1471, %v1516, %v1519
        %v1521 = vrot.slane %v713, 2
        %v1522 = vrot.slane %v715, 3
        %v1523 = vor.u32 %v1521, %v1522
        %v1524 = vrot.slane %v1152, 2
        %v1525 = vrot.slane %v720, 3
        %v1526 = vor.u32 %v1524, %v1525
        %v1527 = vsel %vm1471, %v1523, %v1526
        %v1528 = vrot.slane %v725, 2
        %v1529 = vrot.slane %v727, 3
        %v1530 = vor.u32 %v1528, %v1529
        %v1531 = vrot.slane %v1161, 2
        %v1532 = vrot.slane %v732, 3
        %v1533 = vor.u32 %v1531, %v1532
        %v1534 = vsel %vm1471, %v1530, %v1533
        %v1535 = vrot.slane %v737, 2
        %v1536 = vrot.slane %v739, 3
        %v1537 = vor.u32 %v1535, %v1536
        %v1538 = vrot.slane %v1170, 2
        %v1539 = vrot.slane %v744, 3
        %v1540 = vor.u32 %v1538, %v1539
        %v1541 = vsel %vm1471, %v1537, %v1540
        %v1542 = vrot.slane %v749, 2
        %v1543 = vrot.slane %v751, 3
        %v1544 = vor.u32 %v1542, %v1543
        %v1545 = vrot.slane %v1179, 2
        %v1546 = vrot.slane %v756, 3
        %v1547 = vor.u32 %v1545, %v1546
        %v1548 = vsel %vm1471, %v1544, %v1547
        %v1549 = vrot.slane %v761, 2
        %v1550 = vrot.slane %v763, 3
        %v1551 = vor.u32 %v1549, %v1550
        %v1552 = vrot.slane %v1188, 2
        %v1553 = vrot.slane %v768, 3
        %v1554 = vor.u32 %v1552, %v1553
        %v1555 = vsel %vm1471, %v1551, %v1554
        %v1556 = vrot.slane %v773, 2
        %v1557 = vrot.slane %v775, 3
        %v1558 = vor.u32 %v1556, %v1557
        %v1559 = vrot.slane %v1197, 2
        %v1560 = vrot.slane %v780, 3
        %v1561 = vor.u32 %v1559, %v1560
        %v1562 = vsel %vm1471, %v1558, %v1561
        %v1563 = vrot.slane %v785, 2
        %v1564 = vrot.slane %v787, 3
        %v1565 = vor.u32 %v1563, %v1564
        %v1566 = vrot.slane %v1206, 2
        %v1567 = vrot.slane %v792, 3
        %v1568 = vor.u32 %v1566, %v1567
        %v1569 = vsel %vm1471, %v1565, %v1568
        %v1570 = vrot.slane %v797, 2
        %v1571 = vrot.slane %v799, 3
        %v1572 = vor.u32 %v1570, %v1571
        %v1573 = vrot.slane %v1215, 2
        %v1574 = vrot.slane %v804, 3
        %v1575 = vor.u32 %v1573, %v1574
        %v1576 = vsel %vm1471, %v1572, %v1575
        %v1577 = vrot.slane %v809, 2
        %v1578 = vrot.slane %v811, 3
        %v1579 = vor.u32 %v1577, %v1578
        %v1580 = vrot.slane %v1224, 2
        %v1581 = vrot.slane %v816, 3
        %v1582 = vor.u32 %v1580, %v1581
        %v1583 = vsel %vm1471, %v1579, %v1582
        %v1584 = vrot.slane %v821, 2
        %v1585 = vrot.slane %v823, 3
        %v1586 = vor.u32 %v1584, %v1585
        %v1587 = vrot.slane %v1233, 2
        %v1588 = vrot.slane %v828, 3
        %v1589 = vor.u32 %v1587, %v1588
        %v1590 = vsel %vm1471, %v1586, %v1589
        %v1591 = vrot.slane %v833, 2
        %v1592 = vrot.slane %v835, 3
        %v1593 = vor.u32 %v1591, %v1592
        %v1594 = vrot.slane %v1242, 2
        %v1595 = vrot.slane %v840, 3
        %v1596 = vor.u32 %v1594, %v1595
        %v1597 = vsel %vm1471, %v1593, %v1596
        %v1598 = vrot.slane %v845, 2
        %v1599 = vrot.slane %v847, 3
        %v1600 = vor.u32 %v1598, %v1599
        %v1601 = vrot.slane %v1251, 2
        %v1602 = vrot.slane %v852, 3
        %v1603 = vor.u32 %v1601, %v1602
        %v1604 = vsel %vm1471, %v1600, %v1603
        %v1605 = vrot.slane %v857, 2
        %v1606 = vrot.slane %v859, 3
        %v1607 = vor.u32 %v1605, %v1606
        %v1608 = vrot.slane %v1260, 2
        %v1609 = vrot.slane %v864, 3
        %v1610 = vor.u32 %v1608, %v1609
        %v1611 = vsel %vm1471, %v1607, %v1610
        %v1612 = vrot.slane %v869, 2
        %v1613 = vrot.slane %v871, 3
        %v1614 = vor.u32 %v1612, %v1613
        %v1615 = vrot.slane %v1269, 2
        %v1616 = vrot.slane %v876, 3
        %v1617 = vor.u32 %v1615, %v1616
        %v1618 = vsel %vm1471, %v1614, %v1617
        %v1619 = vrot.slane %v881, 2
        %v1620 = vrot.slane %v883, 3
        %v1621 = vor.u32 %v1619, %v1620
        %v1622 = vrot.slane %v1278, 2
        %v1623 = vrot.slane %v888, 3
        %v1624 = vor.u32 %v1622, %v1623
        %v1625 = vsel %vm1471, %v1621, %v1624
        %v1626 = vrot.slane %v893, 2
        %v1627 = vrot.slane %v895, 3
        %v1628 = vor.u32 %v1626, %v1627
        %v1629 = vrot.slane %v1287, 2
        %v1630 = vrot.slane %v900, 3
        %v1631 = vor.u32 %v1629, %v1630
        %v1632 = vsel %vm1471, %v1628, %v1631
        %v1633 = vrot.slane %v905, 2
        %v1634 = vrot.slane %v907, 3
        %v1635 = vor.u32 %v1633, %v1634
        %v1636 = vrot.slane %v1296, 2
        %v1637 = vrot.slane %v912, 3
        %v1638 = vor.u32 %v1636, %v1637
        %v1639 = vsel %vm1471, %v1635, %v1638
        %1640 = vrot.lane.b32.xlu0 %v1478, 30
        %v1641 = vpop.permute.xlu0 %1640
        %1642 = vrot.lane.b32.xlu0 %v1485, 30
        %v1643 = vpop.permute.xlu0 %1642
        %1644 = vrot.lane.b32.xlu0 %v1492, 30
        %v1645 = vpop.permute.xlu0 %1644
        %1646 = vrot.lane.b32.xlu0 %v1499, 30
        %v1647 = vpop.permute.xlu0 %1646
        %1648 = vrot.lane.b32.xlu0 %v1506, 30
        %v1649 = vpop.permute.xlu0 %1648
        %1650 = vrot.lane.b32.xlu0 %v1513, 30
        %v1651 = vpop.permute.xlu0 %1650
        %1652 = vrot.lane.b32.xlu0 %v1520, 30
        %v1653 = vpop.permute.xlu0 %1652
        %1654 = vrot.lane.b32.xlu0 %v1527, 30
        %v1655 = vpop.permute.xlu0 %1654
        %1656 = vrot.lane.b32.xlu0 %v1534, 30
        %v1657 = vpop.permute.xlu0 %1656
        %1658 = vrot.lane.b32.xlu0 %v1541, 30
        %v1659 = vpop.permute.xlu0 %1658
        %1660 = vrot.lane.b32.xlu0 %v1548, 30
        %v1661 = vpop.permute.xlu0 %1660
        %1662 = vrot.lane.b32.xlu0 %v1555, 30
        %v1663 = vpop.permute.xlu0 %1662
        %1664 = vrot.lane.b32.xlu0 %v1562, 30
        %v1665 = vpop.permute.xlu0 %1664
        %1666 = vrot.lane.b32.xlu0 %v1569, 30
        %v1667 = vpop.permute.xlu0 %1666
        %1668 = vrot.lane.b32.xlu0 %v1576, 30
        %v1669 = vpop.permute.xlu0 %1668
        %1670 = vrot.lane.b32.xlu0 %v1583, 30
        %v1671 = vpop.permute.xlu0 %1670
        %1672 = vrot.lane.b32.xlu0 %v1590, 30
        %v1673 = vpop.permute.xlu0 %1672
        %1674 = vrot.lane.b32.xlu0 %v1597, 30
        %v1675 = vpop.permute.xlu0 %1674
        %1676 = vrot.lane.b32.xlu0 %v1604, 30
        %v1677 = vpop.permute.xlu0 %1676
        %1678 = vrot.lane.b32.xlu0 %v1611, 30
        %v1679 = vpop.permute.xlu0 %1678
        %1680 = vrot.lane.b32.xlu0 %v1618, 30
        %v1681 = vpop.permute.xlu0 %1680
        %1682 = vrot.lane.b32.xlu0 %v1625, 30
        %v1683 = vpop.permute.xlu0 %1682
        %1684 = vrot.lane.b32.xlu0 %v1632, 30
        %v1685 = vpop.permute.xlu0 %1684
        %1686 = vrot.lane.b32.xlu0 %v1639, 30
        %v1687 = vpop.permute.xlu0 %1686
        %vm1688 = vcmask 1044480
        %v1689 = vrot.slane %v531, 3
        %v1690 = vrot.slane %v603, 3
        %v1691 = vsel %vm1688, %v1689, %v1690
        %v1692 = vrot.slane %v532, 3
        %v1693 = vrot.slane %v604, 3
        %v1694 = vsel %vm1688, %v1692, %v1693
        %v1695 = vrot.slane %v533, 3
        %v1696 = vrot.slane %v605, 3
        %v1697 = vsel %vm1688, %v1695, %v1696
        %v1698 = vrot.slane %v534, 3
        %v1699 = vrot.slane %v606, 3
        %v1700 = vsel %vm1688, %v1698, %v1699
        %v1701 = vrot.slane %v535, 3
        %v1702 = vrot.slane %v607, 3
        %v1703 = vsel %vm1688, %v1701, %v1702
        %v1704 = vrot.slane %v536, 3
        %v1705 = vrot.slane %v608, 3
        %v1706 = vsel %vm1688, %v1704, %v1705
        %v1707 = vrot.slane %v537, 3
        %v1708 = vrot.slane %v609, 3
        %v1709 = vsel %vm1688, %v1707, %v1708
        %v1710 = vrot.slane %v538, 3
        %v1711 = vrot.slane %v610, 3
        %v1712 = vsel %vm1688, %v1710, %v1711
        %v1713 = vrot.slane %v539, 3
        %v1714 = vrot.slane %v611, 3
        %v1715 = vsel %vm1688, %v1713, %v1714
        %v1716 = vrot.slane %v540, 3
        %v1717 = vrot.slane %v612, 3
        %v1718 = vsel %vm1688, %v1716, %v1717
        %v1719 = vrot.slane %v541, 3
        %v1720 = vrot.slane %v613, 3
        %v1721 = vsel %vm1688, %v1719, %v1720
        %v1722 = vrot.slane %v542, 3
        %v1723 = vrot.slane %v614, 3
        %v1724 = vsel %vm1688, %v1722, %v1723
        %v1725 = vrot.slane %v543, 3
        %v1726 = vrot.slane %v615, 3
        %v1727 = vsel %vm1688, %v1725, %v1726
        %v1728 = vrot.slane %v544, 3
        %v1729 = vrot.slane %v616, 3
        %v1730 = vsel %vm1688, %v1728, %v1729
        %v1731 = vrot.slane %v545, 3
        %v1732 = vrot.slane %v617, 3
        %v1733 = vsel %vm1688, %v1731, %v1732
        %v1734 = vrot.slane %v546, 3
        %v1735 = vrot.slane %v618, 3
        %v1736 = vsel %vm1688, %v1734, %v1735
        %v1737 = vrot.slane %v547, 3
        %v1738 = vrot.slane %v619, 3
        %v1739 = vsel %vm1688, %v1737, %v1738
        %v1740 = vrot.slane %v548, 3
        %v1741 = vrot.slane %v620, 3
        %v1742 = vsel %vm1688, %v1740, %v1741
        %v1743 = vrot.slane %v549, 3
        %v1744 = vrot.slane %v621, 3
        %v1745 = vsel %vm1688, %v1743, %v1744
        %v1746 = vrot.slane %v550, 3
        %v1747 = vrot.slane %v622, 3
        %v1748 = vsel %vm1688, %v1746, %v1747
        %v1749 = vrot.slane %v551, 3
        %v1750 = vrot.slane %v623, 3
        %v1751 = vsel %vm1688, %v1749, %v1750
        %v1752 = vrot.slane %v552, 3
        %v1753 = vrot.slane %v624, 3
        %v1754 = vsel %vm1688, %v1752, %v1753
        %v1755 = vrot.slane %v553, 3
        %v1756 = vrot.slane %v625, 3
        %v1757 = vsel %vm1688, %v1755, %v1756
        %v1758 = vrot.slane %v554, 3
        %v1759 = vrot.slane %v626, 3
        %v1760 = vsel %vm1688, %v1758, %v1759
        %1761 = vrot.lane.b32.xlu0 %v1691, 36
        %v1762 = vpop.permute.xlu0 %1761
        %1763 = vrot.lane.b32.xlu0 %v1694, 36
        %v1764 = vpop.permute.xlu0 %1763
        %1765 = vrot.lane.b32.xlu0 %v1697, 36
        %v1766 = vpop.permute.xlu0 %1765
        %1767 = vrot.lane.b32.xlu0 %v1700, 36
        %v1768 = vpop.permute.xlu0 %1767
        %1769 = vrot.lane.b32.xlu0 %v1703, 36
        %v1770 = vpop.permute.xlu0 %1769
        %1771 = vrot.lane.b32.xlu0 %v1706, 36
        %v1772 = vpop.permute.xlu0 %1771
        %1773 = vrot.lane.b32.xlu0 %v1709, 36
        %v1774 = vpop.permute.xlu0 %1773
        %1775 = vrot.lane.b32.xlu0 %v1712, 36
        %v1776 = vpop.permute.xlu0 %1775
        %1777 = vrot.lane.b32.xlu0 %v1715, 36
        %v1778 = vpop.permute.xlu0 %1777
        %1779 = vrot.lane.b32.xlu0 %v1718, 36
        %v1780 = vpop.permute.xlu0 %1779
        %1781 = vrot.lane.b32.xlu0 %v1721, 36
        %v1782 = vpop.permute.xlu0 %1781
        %1783 = vrot.lane.b32.xlu0 %v1724, 36
        %v1784 = vpop.permute.xlu0 %1783
        %1785 = vrot.lane.b32.xlu0 %v1727, 36
        %v1786 = vpop.permute.xlu0 %1785
        %1787 = vrot.lane.b32.xlu0 %v1730, 36
        %v1788 = vpop.permute.xlu0 %1787
        %1789 = vrot.lane.b32.xlu0 %v1733, 36
        %v1790 = vpop.permute.xlu0 %1789
        %1791 = vrot.lane.b32.xlu0 %v1736, 36
        %v1792 = vpop.permute.xlu0 %1791
        %1793 = vrot.lane.b32.xlu0 %v1739, 36
        %v1794 = vpop.permute.xlu0 %1793
        %1795 = vrot.lane.b32.xlu0 %v1742, 36
        %v1796 = vpop.permute.xlu0 %1795
        %1797 = vrot.lane.b32.xlu0 %v1745, 36
        %v1798 = vpop.permute.xlu0 %1797
        %1799 = vrot.lane.b32.xlu0 %v1748, 36
        %v1800 = vpop.permute.xlu0 %1799
        %1801 = vrot.lane.b32.xlu0 %v1751, 36
        %v1802 = vpop.permute.xlu0 %1801
        %1803 = vrot.lane.b32.xlu0 %v1754, 36
        %v1804 = vpop.permute.xlu0 %1803
        %1805 = vrot.lane.b32.xlu0 %v1757, 36
        %v1806 = vpop.permute.xlu0 %1805
        %1807 = vrot.lane.b32.xlu0 %v1760, 36
        %v1808 = vpop.permute.xlu0 %1807
        %vm1809 = vsmask.f32 4352
        %v1810 = vrot.slane %v629, 3
        %v1811 = vrot.slane %v631, 4
        %v1812 = vor.u32 %v1810, %v1811
        %v1813 = vrot.slane %v1089, 3
        %v1814 = vrot.slane %v636, 4
        %v1815 = vor.u32 %v1813, %v1814
        %v1816 = vsel %vm1809, %v1812, %v1815
        %v1817 = vrot.slane %v641, 3
        %v1818 = vrot.slane %v643, 4
        %v1819 = vor.u32 %v1817, %v1818
        %v1820 = vrot.slane %v1098, 3
        %v1821 = vrot.slane %v648, 4
        %v1822 = vor.u32 %v1820, %v1821
        %v1823 = vsel %vm1809, %v1819, %v1822
        %v1824 = vrot.slane %v653, 3
        %v1825 = vrot.slane %v655, 4
        %v1826 = vor.u32 %v1824, %v1825
        %v1827 = vrot.slane %v1107, 3
        %v1828 = vrot.slane %v660, 4
        %v1829 = vor.u32 %v1827, %v1828
        %v1830 = vsel %vm1809, %v1826, %v1829
        %v1831 = vrot.slane %v665, 3
        %v1832 = vrot.slane %v667, 4
        %v1833 = vor.u32 %v1831, %v1832
        %v1834 = vrot.slane %v1116, 3
        %v1835 = vrot.slane %v672, 4
        %v1836 = vor.u32 %v1834, %v1835
        %v1837 = vsel %vm1809, %v1833, %v1836
        %v1838 = vrot.slane %v677, 3
        %v1839 = vrot.slane %v679, 4
        %v1840 = vor.u32 %v1838, %v1839
        %v1841 = vrot.slane %v1125, 3
        %v1842 = vrot.slane %v684, 4
        %v1843 = vor.u32 %v1841, %v1842
        %v1844 = vsel %vm1809, %v1840, %v1843
        %v1845 = vrot.slane %v689, 3
        %v1846 = vrot.slane %v691, 4
        %v1847 = vor.u32 %v1845, %v1846
        %v1848 = vrot.slane %v1134, 3
        %v1849 = vrot.slane %v696, 4
        %v1850 = vor.u32 %v1848, %v1849
        %v1851 = vsel %vm1809, %v1847, %v1850
        %v1852 = vrot.slane %v701, 3
        %v1853 = vrot.slane %v703, 4
        %v1854 = vor.u32 %v1852, %v1853
        %v1855 = vrot.slane %v1143, 3
        %v1856 = vrot.slane %v708, 4
        %v1857 = vor.u32 %v1855, %v1856
        %v1858 = vsel %vm1809, %v1854, %v1857
        %v1859 = vrot.slane %v713, 3
        %v1860 = vrot.slane %v715, 4
        %v1861 = vor.u32 %v1859, %v1860
        %v1862 = vrot.slane %v1152, 3
        %v1863 = vrot.slane %v720, 4
        %v1864 = vor.u32 %v1862, %v1863
        %v1865 = vsel %vm1809, %v1861, %v1864
        %v1866 = vrot.slane %v725, 3
        %v1867 = vrot.slane %v727, 4
        %v1868 = vor.u32 %v1866, %v1867
        %v1869 = vrot.slane %v1161, 3
        %v1870 = vrot.slane %v732, 4
        %v1871 = vor.u32 %v1869, %v1870
        %v1872 = vsel %vm1809, %v1868, %v1871
        %v1873 = vrot.slane %v737, 3
        %v1874 = vrot.slane %v739, 4
        %v1875 = vor.u32 %v1873, %v1874
        %v1876 = vrot.slane %v1170, 3
        %v1877 = vrot.slane %v744, 4
        %v1878 = vor.u32 %v1876, %v1877
        %v1879 = vsel %vm1809, %v1875, %v1878
        %v1880 = vrot.slane %v749, 3
        %v1881 = vrot.slane %v751, 4
        %v1882 = vor.u32 %v1880, %v1881
        %v1883 = vrot.slane %v1179, 3
        %v1884 = vrot.slane %v756, 4
        %v1885 = vor.u32 %v1883, %v1884
        %v1886 = vsel %vm1809, %v1882, %v1885
        %v1887 = vrot.slane %v761, 3
        %v1888 = vrot.slane %v763, 4
        %v1889 = vor.u32 %v1887, %v1888
        %v1890 = vrot.slane %v1188, 3
        %v1891 = vrot.slane %v768, 4
        %v1892 = vor.u32 %v1890, %v1891
        %v1893 = vsel %vm1809, %v1889, %v1892
        %v1894 = vrot.slane %v773, 3
        %v1895 = vrot.slane %v775, 4
        %v1896 = vor.u32 %v1894, %v1895
        %v1897 = vrot.slane %v1197, 3
        %v1898 = vrot.slane %v780, 4
        %v1899 = vor.u32 %v1897, %v1898
        %v1900 = vsel %vm1809, %v1896, %v1899
        %v1901 = vrot.slane %v785, 3
        %v1902 = vrot.slane %v787, 4
        %v1903 = vor.u32 %v1901, %v1902
        %v1904 = vrot.slane %v1206, 3
        %v1905 = vrot.slane %v792, 4
        %v1906 = vor.u32 %v1904, %v1905
        %v1907 = vsel %vm1809, %v1903, %v1906
        %v1908 = vrot.slane %v797, 3
        %v1909 = vrot.slane %v799, 4
        %v1910 = vor.u32 %v1908, %v1909
        %v1911 = vrot.slane %v1215, 3
        %v1912 = vrot.slane %v804, 4
        %v1913 = vor.u32 %v1911, %v1912
        %v1914 = vsel %vm1809, %v1910, %v1913
        %v1915 = vrot.slane %v809, 3
        %v1916 = vrot.slane %v811, 4
        %v1917 = vor.u32 %v1915, %v1916
        %v1918 = vrot.slane %v1224, 3
        %v1919 = vrot.slane %v816, 4
        %v1920 = vor.u32 %v1918, %v1919
        %v1921 = vsel %vm1809, %v1917, %v1920
        %v1922 = vrot.slane %v821, 3
        %v1923 = vrot.slane %v823, 4
        %v1924 = vor.u32 %v1922, %v1923
        %v1925 = vrot.slane %v1233, 3
        %v1926 = vrot.slane %v828, 4
        %v1927 = vor.u32 %v1925, %v1926
        %v1928 = vsel %vm1809, %v1924, %v1927
        %v1929 = vrot.slane %v833, 3
        %v1930 = vrot.slane %v835, 4
        %v1931 = vor.u32 %v1929, %v1930
        %v1932 = vrot.slane %v1242, 3
        %v1933 = vrot.slane %v840, 4
        %v1934 = vor.u32 %v1932, %v1933
        %v1935 = vsel %vm1809, %v1931, %v1934
        %v1936 = vrot.slane %v845, 3
        %v1937 = vrot.slane %v847, 4
        %v1938 = vor.u32 %v1936, %v1937
        %v1939 = vrot.slane %v1251, 3
        %v1940 = vrot.slane %v852, 4
        %v1941 = vor.u32 %v1939, %v1940
        %v1942 = vsel %vm1809, %v1938, %v1941
        %v1943 = vrot.slane %v857, 3
        %v1944 = vrot.slane %v859, 4
        %v1945 = vor.u32 %v1943, %v1944
        %v1946 = vrot.slane %v1260, 3
        %v1947 = vrot.slane %v864, 4
        %v1948 = vor.u32 %v1946, %v1947
        %v1949 = vsel %vm1809, %v1945, %v1948
        %v1950 = vrot.slane %v869, 3
        %v1951 = vrot.slane %v871, 4
        %v1952 = vor.u32 %v1950, %v1951
        %v1953 = vrot.slane %v1269, 3
        %v1954 = vrot.slane %v876, 4
        %v1955 = vor.u32 %v1953, %v1954
        %v1956 = vsel %vm1809, %v1952, %v1955
        %v1957 = vrot.slane %v881, 3
        %v1958 = vrot.slane %v883, 4
        %v1959 = vor.u32 %v1957, %v1958
        %v1960 = vrot.slane %v1278, 3
        %v1961 = vrot.slane %v888, 4
        %v1962 = vor.u32 %v1960, %v1961
        %v1963 = vsel %vm1809, %v1959, %v1962
        %v1964 = vrot.slane %v893, 3
        %v1965 = vrot.slane %v895, 4
        %v1966 = vor.u32 %v1964, %v1965
        %v1967 = vrot.slane %v1287, 3
        %v1968 = vrot.slane %v900, 4
        %v1969 = vor.u32 %v1967, %v1968
        %v1970 = vsel %vm1809, %v1966, %v1969
        %v1971 = vrot.slane %v905, 3
        %v1972 = vrot.slane %v907, 4
        %v1973 = vor.u32 %v1971, %v1972
        %v1974 = vrot.slane %v1296, 3
        %v1975 = vrot.slane %v912, 4
        %v1976 = vor.u32 %v1974, %v1975
        %v1977 = vsel %vm1809, %v1973, %v1976
        %1978 = vrot.lane.b32.xlu0 %v1816, 42
        %v1979 = vpop.permute.xlu0 %1978
        %1980 = vrot.lane.b32.xlu0 %v1823, 42
        %v1981 = vpop.permute.xlu0 %1980
        %1982 = vrot.lane.b32.xlu0 %v1830, 42
        %v1983 = vpop.permute.xlu0 %1982
        %1984 = vrot.lane.b32.xlu0 %v1837, 42
        %v1985 = vpop.permute.xlu0 %1984
        %1986 = vrot.lane.b32.xlu0 %v1844, 42
        %v1987 = vpop.permute.xlu0 %1986
        %1988 = vrot.lane.b32.xlu0 %v1851, 42
        %v1989 = vpop.permute.xlu0 %1988
        %1990 = vrot.lane.b32.xlu0 %v1858, 42
        %v1991 = vpop.permute.xlu0 %1990
        %1992 = vrot.lane.b32.xlu0 %v1865, 42
        %v1993 = vpop.permute.xlu0 %1992
        %1994 = vrot.lane.b32.xlu0 %v1872, 42
        %v1995 = vpop.permute.xlu0 %1994
        %1996 = vrot.lane.b32.xlu0 %v1879, 42
        %v1997 = vpop.permute.xlu0 %1996
        %1998 = vrot.lane.b32.xlu0 %v1886, 42
        %v1999 = vpop.permute.xlu0 %1998
        %2000 = vrot.lane.b32.xlu0 %v1893, 42
        %v2001 = vpop.permute.xlu0 %2000
        %2002 = vrot.lane.b32.xlu0 %v1900, 42
        %v2003 = vpop.permute.xlu0 %2002
        %2004 = vrot.lane.b32.xlu0 %v1907, 42
        %v2005 = vpop.permute.xlu0 %2004
        %2006 = vrot.lane.b32.xlu0 %v1914, 42
        %v2007 = vpop.permute.xlu0 %2006
        %2008 = vrot.lane.b32.xlu0 %v1921, 42
        %v2009 = vpop.permute.xlu0 %2008
        %2010 = vrot.lane.b32.xlu0 %v1928, 42
        %v2011 = vpop.permute.xlu0 %2010
        %2012 = vrot.lane.b32.xlu0 %v1935, 42
        %v2013 = vpop.permute.xlu0 %2012
        %2014 = vrot.lane.b32.xlu0 %v1942, 42
        %v2015 = vpop.permute.xlu0 %2014
        %2016 = vrot.lane.b32.xlu0 %v1949, 42
        %v2017 = vpop.permute.xlu0 %2016
        %2018 = vrot.lane.b32.xlu0 %v1956, 42
        %v2019 = vpop.permute.xlu0 %2018
        %2020 = vrot.lane.b32.xlu0 %v1963, 42
        %v2021 = vpop.permute.xlu0 %2020
        %2022 = vrot.lane.b32.xlu0 %v1970, 42
        %v2023 = vpop.permute.xlu0 %2022
        %2024 = vrot.lane.b32.xlu0 %v1977, 42
        %v2025 = vpop.permute.xlu0 %2024
        %v2026 = vpack.c.b16 %v579, %v484
        %v2027 = vpack.c.b16 %v580, %v486
        %v2028 = vpack.c.b16 %v581, %v488
        %v2029 = vpack.c.b16 %v582, %v490
        %v2030 = vpack.c.b16 %v583, %v492
        %v2031 = vpack.c.b16 %v584, %v494
        %v2032 = vpack.c.b16 %v585, %v496
        %v2033 = vpack.c.b16 %v586, %v498
        %v2034 = vpack.c.b16 %v587, %v500
        %v2035 = vpack.c.b16 %v588, %v502
        %v2036 = vpack.c.b16 %v589, %v504
        %v2037 = vpack.c.b16 %v590, %v506
        %v2038 = vpack.c.b16 %v591, %v508
        %v2039 = vpack.c.b16 %v592, %v510
        %v2040 = vpack.c.b16 %v593, %v512
        %v2041 = vpack.c.b16 %v594, %v514
        %v2042 = vpack.c.b16 %v595, %v516
        %v2043 = vpack.c.b16 %v596, %v518
        %v2044 = vpack.c.b16 %v597, %v520
        %v2045 = vpack.c.b16 %v598, %v522
        %v2046 = vpack.c.b16 %v599, %v524
        %v2047 = vpack.c.b16 %v600, %v526
        %v2048 = vpack.c.b16 %v601, %v528
        %v2049 = vpack.c.b16 %v602, %v530
        %2050 = vrot.lane.b32.xlu0 %v2026, 48
        %v2051 = vpop.permute.xlu0 %2050
        %2052 = vrot.lane.b32.xlu0 %v2027, 48
        %v2053 = vpop.permute.xlu0 %2052
        %2054 = vrot.lane.b32.xlu0 %v2028, 48
        %v2055 = vpop.permute.xlu0 %2054
        %2056 = vrot.lane.b32.xlu0 %v2029, 48
        %v2057 = vpop.permute.xlu0 %2056
        %2058 = vrot.lane.b32.xlu0 %v2030, 48
        %v2059 = vpop.permute.xlu0 %2058
        %2060 = vrot.lane.b32.xlu0 %v2031, 48
        %v2061 = vpop.permute.xlu0 %2060
        %2062 = vrot.lane.b32.xlu0 %v2032, 48
        %v2063 = vpop.permute.xlu0 %2062
        %2064 = vrot.lane.b32.xlu0 %v2033, 48
        %v2065 = vpop.permute.xlu0 %2064
        %2066 = vrot.lane.b32.xlu0 %v2034, 48
        %v2067 = vpop.permute.xlu0 %2066
        %2068 = vrot.lane.b32.xlu0 %v2035, 48
        %v2069 = vpop.permute.xlu0 %2068
        %2070 = vrot.lane.b32.xlu0 %v2036, 48
        %v2071 = vpop.permute.xlu0 %2070
        %2072 = vrot.lane.b32.xlu0 %v2037, 48
        %v2073 = vpop.permute.xlu0 %2072
        %2074 = vrot.lane.b32.xlu0 %v2038, 48
        %v2075 = vpop.permute.xlu0 %2074
        %2076 = vrot.lane.b32.xlu0 %v2039, 48
        %v2077 = vpop.permute.xlu0 %2076
        %2078 = vrot.lane.b32.xlu0 %v2040, 48
        %v2079 = vpop.permute.xlu0 %2078
        %2080 = vrot.lane.b32.xlu0 %v2041, 48
        %v2081 = vpop.permute.xlu0 %2080
        %2082 = vrot.lane.b32.xlu0 %v2042, 48
        %v2083 = vpop.permute.xlu0 %2082
        %2084 = vrot.lane.b32.xlu0 %v2043, 48
        %v2085 = vpop.permute.xlu0 %2084
        %2086 = vrot.lane.b32.xlu0 %v2044, 48
        %v2087 = vpop.permute.xlu0 %2086
        %2088 = vrot.lane.b32.xlu0 %v2045, 48
        %v2089 = vpop.permute.xlu0 %2088
        %2090 = vrot.lane.b32.xlu0 %v2046, 48
        %v2091 = vpop.permute.xlu0 %2090
        %2092 = vrot.lane.b32.xlu0 %v2047, 48
        %v2093 = vpop.permute.xlu0 %2092
        %2094 = vrot.lane.b32.xlu0 %v2048, 48
        %v2095 = vpop.permute.xlu0 %2094
        %2096 = vrot.lane.b32.xlu0 %v2049, 48
        %v2097 = vpop.permute.xlu0 %2096
        %vm2098 = vcmask 48128
        %v2100 = vsel %vm2098, %v531, %v917
        %v2102 = vsel %vm2098, %v532, %v919
        %v2104 = vsel %vm2098, %v533, %v921
        %v2106 = vsel %vm2098, %v534, %v923
        %v2108 = vsel %vm2098, %v535, %v925
        %v2110 = vsel %vm2098, %v536, %v927
        %v2112 = vsel %vm2098, %v537, %v929
        %v2114 = vsel %vm2098, %v538, %v931
        %v2116 = vsel %vm2098, %v539, %v933
        %v2118 = vsel %vm2098, %v540, %v935
        %v2120 = vsel %vm2098, %v541, %v937
        %v2122 = vsel %vm2098, %v542, %v939
        %v2124 = vsel %vm2098, %v543, %v941
        %v2126 = vsel %vm2098, %v544, %v943
        %v2128 = vsel %vm2098, %v545, %v945
        %v2130 = vsel %vm2098, %v546, %v947
        %v2132 = vsel %vm2098, %v547, %v949
        %v2134 = vsel %vm2098, %v548, %v951
        %v2136 = vsel %vm2098, %v549, %v953
        %v2138 = vsel %vm2098, %v550, %v955
        %v2140 = vsel %vm2098, %v551, %v957
        %v2142 = vsel %vm2098, %v552, %v959
        %v2144 = vsel %vm2098, %v553, %v961
        %v2146 = vsel %vm2098, %v554, %v963
        %vm2147 = vcmask 97280
        %v2149 = vsel %vm2147, %v2100, %v1038
        %v2151 = vsel %vm2147, %v2102, %v1040
        %v2153 = vsel %vm2147, %v2104, %v1042
        %v2155 = vsel %vm2147, %v2106, %v1044
        %v2157 = vsel %vm2147, %v2108, %v1046
        %v2159 = vsel %vm2147, %v2110, %v1048
        %v2161 = vsel %vm2147, %v2112, %v1050
        %v2163 = vsel %vm2147, %v2114, %v1052
        %v2165 = vsel %vm2147, %v2116, %v1054
        %v2167 = vsel %vm2147, %v2118, %v1056
        %v2169 = vsel %vm2147, %v2120, %v1058
        %v2171 = vsel %vm2147, %v2122, %v1060
        %v2173 = vsel %vm2147, %v2124, %v1062
        %v2175 = vsel %vm2147, %v2126, %v1064
        %v2177 = vsel %vm2147, %v2128, %v1066
        %v2179 = vsel %vm2147, %v2130, %v1068
        %v2181 = vsel %vm2147, %v2132, %v1070
        %v2183 = vsel %vm2147, %v2134, %v1072
        %v2185 = vsel %vm2147, %v2136, %v1074
        %v2187 = vsel %vm2147, %v2138, %v1076
        %v2189 = vsel %vm2147, %v2140, %v1078
        %v2191 = vsel %vm2147, %v2142, %v1080
        %v2193 = vsel %vm2147, %v2144, %v1082
        %v2195 = vsel %vm2147, %v2146, %v1084
        %vm2196 = vcmask 146432
        %v2198 = vsel %vm2196, %v2149, %v1303
        %v2200 = vsel %vm2196, %v2151, %v1305
        %v2202 = vsel %vm2196, %v2153, %v1307
        %v2204 = vsel %vm2196, %v2155, %v1309
        %v2206 = vsel %vm2196, %v2157, %v1311
        %v2208 = vsel %vm2196, %v2159, %v1313
        %v2210 = vsel %vm2196, %v2161, %v1315
        %v2212 = vsel %vm2196, %v2163, %v1317
        %v2214 = vsel %vm2196, %v2165, %v1319
        %v2216 = vsel %vm2196, %v2167, %v1321
        %v2218 = vsel %vm2196, %v2169, %v1323
        %v2220 = vsel %vm2196, %v2171, %v1325
        %v2222 = vsel %vm2196, %v2173, %v1327
        %v2224 = vsel %vm2196, %v2175, %v1329
        %v2226 = vsel %vm2196, %v2177, %v1331
        %v2228 = vsel %vm2196, %v2179, %v1333
        %v2230 = vsel %vm2196, %v2181, %v1335
        %v2232 = vsel %vm2196, %v2183, %v1337
        %v2234 = vsel %vm2196, %v2185, %v1339
        %v2236 = vsel %vm2196, %v2187, %v1341
        %v2238 = vsel %vm2196, %v2189, %v1343
        %v2240 = vsel %vm2196, %v2191, %v1345
        %v2242 = vsel %vm2196, %v2193, %v1347
        %v2244 = vsel %vm2196, %v2195, %v1349
        %vm2245 = vcmask 195584
        %v2247 = vsel %vm2245, %v2198, %v1424
        %v2249 = vsel %vm2245, %v2200, %v1426
        %v2251 = vsel %vm2245, %v2202, %v1428
        %v2253 = vsel %vm2245, %v2204, %v1430
        %v2255 = vsel %vm2245, %v2206, %v1432
        %v2257 = vsel %vm2245, %v2208, %v1434
        %v2259 = vsel %vm2245, %v2210, %v1436
        %v2261 = vsel %vm2245, %v2212, %v1438
        %v2263 = vsel %vm2245, %v2214, %v1440
        %v2265 = vsel %vm2245, %v2216, %v1442
        %v2267 = vsel %vm2245, %v2218, %v1444
        %v2269 = vsel %vm2245, %v2220, %v1446
        %v2271 = vsel %vm2245, %v2222, %v1448
        %v2273 = vsel %vm2245, %v2224, %v1450
        %v2275 = vsel %vm2245, %v2226, %v1452
        %v2277 = vsel %vm2245, %v2228, %v1454
        %v2279 = vsel %vm2245, %v2230, %v1456
        %v2281 = vsel %vm2245, %v2232, %v1458
        %v2283 = vsel %vm2245, %v2234, %v1460
        %v2285 = vsel %vm2245, %v2236, %v1462
        %v2287 = vsel %vm2245, %v2238, %v1464
        %v2289 = vsel %vm2245, %v2240, %v1466
        %v2291 = vsel %vm2245, %v2242, %v1468
        %v2293 = vsel %vm2245, %v2244, %v1470
        %vm2294 = vcmask 244736
        %v2296 = vsel %vm2294, %v2247, %v1641
        %v2298 = vsel %vm2294, %v2249, %v1643
        %v2300 = vsel %vm2294, %v2251, %v1645
        %v2302 = vsel %vm2294, %v2253, %v1647
        %v2304 = vsel %vm2294, %v2255, %v1649
        %v2306 = vsel %vm2294, %v2257, %v1651
        %v2308 = vsel %vm2294, %v2259, %v1653
        %v2310 = vsel %vm2294, %v2261, %v1655
        %v2312 = vsel %vm2294, %v2263, %v1657
        %v2314 = vsel %vm2294, %v2265, %v1659
        %v2316 = vsel %vm2294, %v2267, %v1661
        %v2318 = vsel %vm2294, %v2269, %v1663
        %v2320 = vsel %vm2294, %v2271, %v1665
        %v2322 = vsel %vm2294, %v2273, %v1667
        %v2324 = vsel %vm2294, %v2275, %v1669
        %v2326 = vsel %vm2294, %v2277, %v1671
        %v2328 = vsel %vm2294, %v2279, %v1673
        %v2330 = vsel %vm2294, %v2281, %v1675
        %v2332 = vsel %vm2294, %v2283, %v1677
        %v2334 = vsel %vm2294, %v2285, %v1679
        %v2336 = vsel %vm2294, %v2287, %v1681
        %v2338 = vsel %vm2294, %v2289, %v1683
        %v2340 = vsel %vm2294, %v2291, %v1685
        %v2342 = vsel %vm2294, %v2293, %v1687
        %vm2343 = vcmask 293888
        %v2345 = vsel %vm2343, %v2296, %v1762
        %v2347 = vsel %vm2343, %v2298, %v1764
        %v2349 = vsel %vm2343, %v2300, %v1766
        %v2351 = vsel %vm2343, %v2302, %v1768
        %v2353 = vsel %vm2343, %v2304, %v1770
        %v2355 = vsel %vm2343, %v2306, %v1772
        %v2357 = vsel %vm2343, %v2308, %v1774
        %v2359 = vsel %vm2343, %v2310, %v1776
        %v2361 = vsel %vm2343, %v2312, %v1778
        %v2363 = vsel %vm2343, %v2314, %v1780
        %v2365 = vsel %vm2343, %v2316, %v1782
        %v2367 = vsel %vm2343, %v2318, %v1784
        %v2369 = vsel %vm2343, %v2320, %v1786
        %v2371 = vsel %vm2343, %v2322, %v1788
        %v2373 = vsel %vm2343, %v2324, %v1790
        %v2375 = vsel %vm2343, %v2326, %v1792
        %v2377 = vsel %vm2343, %v2328, %v1794
        %v2379 = vsel %vm2343, %v2330, %v1796
        %v2381 = vsel %vm2343, %v2332, %v1798
        %v2383 = vsel %vm2343, %v2334, %v1800
        %v2385 = vsel %vm2343, %v2336, %v1802
        %v2387 = vsel %vm2343, %v2338, %v1804
        %v2389 = vsel %vm2343, %v2340, %v1806
        %v2391 = vsel %vm2343, %v2342, %v1808
        %vm2392 = vcmask 343040
        %v2394 = vsel %vm2392, %v2345, %v1979
        %v2396 = vsel %vm2392, %v2347, %v1981
        %v2398 = vsel %vm2392, %v2349, %v1983
        %v2400 = vsel %vm2392, %v2351, %v1985
        %v2402 = vsel %vm2392, %v2353, %v1987
        %v2404 = vsel %vm2392, %v2355, %v1989
        %v2406 = vsel %vm2392, %v2357, %v1991
        %v2408 = vsel %vm2392, %v2359, %v1993
        %v2410 = vsel %vm2392, %v2361, %v1995
        %v2412 = vsel %vm2392, %v2363, %v1997
        %v2414 = vsel %vm2392, %v2365, %v1999
        %v2416 = vsel %vm2392, %v2367, %v2001
        %v2418 = vsel %vm2392, %v2369, %v2003
        %v2420 = vsel %vm2392, %v2371, %v2005
        %v2422 = vsel %vm2392, %v2373, %v2007
        %v2424 = vsel %vm2392, %v2375, %v2009
        %v2426 = vsel %vm2392, %v2377, %v2011
        %v2428 = vsel %vm2392, %v2379, %v2013
        %v2430 = vsel %vm2392, %v2381, %v2015
        %v2432 = vsel %vm2392, %v2383, %v2017
        %v2434 = vsel %vm2392, %v2385, %v2019
        %v2436 = vsel %vm2392, %v2387, %v2021
        %v2438 = vsel %vm2392, %v2389, %v2023
        %v2440 = vsel %vm2392, %v2391, %v2025
        %vm2441 = vcmask 392192
        %v2443 = vsel %vm2441, %v2394, %v2051
        %v2445 = vsel %vm2441, %v2396, %v2053
        %v2447 = vsel %vm2441, %v2398, %v2055
        %v2449 = vsel %vm2441, %v2400, %v2057
        %v2451 = vsel %vm2441, %v2402, %v2059
        %v2453 = vsel %vm2441, %v2404, %v2061
        %v2455 = vsel %vm2441, %v2406, %v2063
        %v2457 = vsel %vm2441, %v2408, %v2065
        %v2459 = vsel %vm2441, %v2410, %v2067
        %v2461 = vsel %vm2441, %v2412, %v2069
        %v2463 = vsel %vm2441, %v2414, %v2071
        %v2465 = vsel %vm2441, %v2416, %v2073
        %v2467 = vsel %vm2441, %v2418, %v2075
        %v2469 = vsel %vm2441, %v2420, %v2077
        %v2471 = vsel %vm2441, %v2422, %v2079
        %v2473 = vsel %vm2441, %v2424, %v2081
        %v2475 = vsel %vm2441, %v2426, %v2083
        %v2477 = vsel %vm2441, %v2428, %v2085
        %v2479 = vsel %vm2441, %v2430, %v2087
        %v2481 = vsel %vm2441, %v2432, %v2089
        %v2483 = vsel %vm2441, %v2434, %v2091
        %v2485 = vsel %vm2441, %v2436, %v2093
        %v2487 = vsel %vm2441, %v2438, %v2095
        %v2489 = vsel %vm2441, %v2440, %v2097
        %v2490 = vld [vmem:[%s2] sm:$0xf]
        %v2491 = vld [vmem:[%s2 + $0x4] sm:$0xf]
        %v2492 = vld [vmem:[%s2 + $0x8] sm:$0xf]
        %v2493 = vld [vmem:[%s2 + $0xc] sm:$0xf]
        %v2494 = vld [vmem:[%s2 + $0x10] sm:$0xf]
        %v2495 = vld [vmem:[%s2 + $0x14] sm:$0xf]
        %v2496 = vld [vmem:[%s2 + $0x18] sm:$0x7]
        %s2497 = scalar_lea.vmem %s2, 28
        %v2498 = vld [vmem:[%s2497] sm:$0xf]
        %v2499 = vld [vmem:[%s2497 + $0x4] sm:$0xf]
        %v2500 = vld [vmem:[%s2497 + $0x8] sm:$0xf]
        %v2501 = vld [vmem:[%s2497 + $0xc] sm:$0xf]
        %v2502 = vld [vmem:[%s2497 + $0x10] sm:$0xf]
        %v2503 = vld [vmem:[%s2497 + $0x14] sm:$0xf]
        %v2504 = vld [vmem:[%s2497 + $0x18] sm:$0x7]
        %v2512 = vunpack.c.l.b16 %v2498
        %v2513 = vunpack.c.l.b16 %v2499
        %v2514 = vunpack.c.l.b16 %v2500
        %v2515 = vunpack.c.l.b16 %v2501
        %v2516 = vunpack.c.l.b16 %v2502
        %v2517 = vunpack.c.l.b16 %v2503
        %v2518 = vunpack.c.l.b16 %v2504
        %v2519 = vpack.c.b16 %v2513, %v2512
        %v2520 = vpack.c.b16 %v2515, %v2514
        %v2521 = vpack.c.b16 %v2517, %v2516
        %v2522 = vpack.c.b16 %v2518, %v2518
        %vm2526 = vcmask 441344
        %v2527 = vsel %vm2526, %v2445, 0
        %v2529 = vsel %vm2526, %v2447, 0
        %v2531 = vsel %vm2526, %v2449, 0
        %v2533 = vsel %vm2526, %v2451, 0
        %v2535 = vsel %vm2526, %v2453, 0
        %v2537 = vsel %vm2526, %v2455, 0
        %v2539 = vsel %vm2526, %v2457, 0
        %v2541 = vsel %vm2526, %v2459, 0
        %v2543 = vsel %vm2526, %v2461, 0
        %v2545 = vsel %vm2526, %v2463, 0
        %v2547 = vsel %vm2526, %v2465, 0
        %v2549 = vsel %vm2526, %v2467, 0
        %v2551 = vsel %vm2526, %v2469, 0
        %v2553 = vsel %vm2526, %v2471, 0
        %v2555 = vsel %vm2526, %v2473, 0
        %v2557 = vsel %vm2526, %v2475, 0
        %vm2559 = vcmask 1042432
        %v2561 = vsel %vm2559, %v2522, 0
        %2563 = vmatprep.subr.bf16.mxu0 0
        %2564 = vmatpush1.bf16.msra.mxu0 0
        %2565 = vmatprep.subr.bf16.mxu0 0
        %2566 = vmatpush1.bf16.msra.mxu0 0
        %2567 = vmatprep.subr.bf16.mxu0 0
        %2568 = vmatpush1.bf16.msra.mxu0 0
        %2569 = vmatprep.subr.bf16.mxu0 0
        %2570 = vmatpush1.bf16.msra.mxu0 0
        %2571 = vmatprep.subr.bf16.mxu0 0
        %2572 = vmatpush1.bf16.msra.mxu0 %v2561
        %2573 = vmatprep.subr.bf16.mxu0 0
        %2574 = vmatpush1.bf16.msra.mxu0 %v2521
        %2575 = vmatprep.subr.bf16.mxu0 0
        %2576 = vmatpush1.bf16.msra.mxu0 %v2520
        %2577 = vmatprep.subr.bf16.mxu0 0
        %2578 = vmatpush1.bf16.msra.mxu0 %v2519
        %2579 = vmatprep.subr.bf16.mxu0 0
        %2580 = vmatpush2.bf16.msra.mxu0 0
        %2581 = vmatprep.subr.bf16.mxu0 0
        %2582 = vmatpush2.bf16.msra.mxu0 0
        %2583 = vmatprep.subr.bf16.mxu0 0
        %2584 = vmatpush2.bf16.msra.mxu0 0
        %2585 = vmatprep.subr.bf16.mxu0 0
        %2586 = vmatpush2.bf16.msra.mxu0 0
        %2587 = vmatprep.subr.bf16.mxu0 0
        %2588 = vmatpush2.bf16.msra.mxu0 0
        %2589 = vmatprep.subr.bf16.mxu0 0
        %2590 = vmatpush2.bf16.msra.mxu0 0
        %2591 = vmatprep.subr.bf16.mxu0 0
        %2592 = vmatpush2.bf16.msra.mxu0 0
        %2593 = vmatprep.subr.bf16.mxu0 0
        %2594 = vmatpush2.bf16.msra.mxu0 0
        %2595 = vmatprep.mubr.bf16.mxu0 0
        %2596 = vmatmul.mubr.bf16.gmra.mxu0 %v2527
        %v2597 = vpop.f32.mrf.mxu0
        %v2598 = vadd.f32 0.0, %v2597
        %v2599 = vpop.f32.mrf.mxu0
        %v2600 = vpop.f32.mrf.mxu0
        %v2601 = vadd.f32 0.0, %v2600
        %v2602 = vpop.f32.mrf.mxu0
        %2603 = vmatprep.mubr.bf16.mxu0 0
        %2604 = vmatmul.mubr.bf16.gmra.mxu0 %v2529
        %v2605 = vpop.f32.mrf.mxu0
        %v2606 = vadd.f32 0.0, %v2605
        %v2607 = vpop.f32.mrf.mxu0
        %v2608 = vpop.f32.mrf.mxu0
        %v2609 = vadd.f32 0.0, %v2608
        %v2610 = vpop.f32.mrf.mxu0
        %2611 = vmatprep.mubr.bf16.mxu0 0
        %2612 = vmatmul.mubr.bf16.gmra.mxu0 %v2531
        %v2613 = vpop.f32.mrf.mxu0
        %v2614 = vadd.f32 0.0, %v2613
        %v2615 = vpop.f32.mrf.mxu0
        %v2616 = vpop.f32.mrf.mxu0
        %v2617 = vadd.f32 0.0, %v2616
        %v2618 = vpop.f32.mrf.mxu0
        %2619 = vmatprep.mubr.bf16.mxu0 0
        %2620 = vmatmul.mubr.bf16.gmra.mxu0 %v2533
        %v2621 = vpop.f32.mrf.mxu0
        %v2622 = vadd.f32 0.0, %v2621
        %v2623 = vpop.f32.mrf.mxu0
        %v2624 = vpop.f32.mrf.mxu0
        %v2625 = vadd.f32 0.0, %v2624
        %v2626 = vpop.f32.mrf.mxu0
        %2627 = vmatprep.mubr.bf16.mxu0 0
        %2628 = vmatmul.mubr.bf16.gmra.mxu0 %v2535
        %v2629 = vpop.f32.mrf.mxu0
        %v2630 = vadd.f32 0.0, %v2629
        %v2631 = vpop.f32.mrf.mxu0
        %v2632 = vpop.f32.mrf.mxu0
        %v2633 = vadd.f32 0.0, %v2632
        %v2634 = vpop.f32.mrf.mxu0
        %2635 = vmatprep.mubr.bf16.mxu0 0
        %2636 = vmatmul.mubr.bf16.gmra.mxu0 %v2537
        %v2637 = vpop.f32.mrf.mxu0
        %v2638 = vadd.f32 0.0, %v2637
        %v2639 = vpop.f32.mrf.mxu0
        %v2640 = vpop.f32.mrf.mxu0
        %v2641 = vadd.f32 0.0, %v2640
        %v2642 = vpop.f32.mrf.mxu0
        %2643 = vmatprep.mubr.bf16.mxu0 0
        %2644 = vmatmul.mubr.bf16.gmra.mxu0 %v2539
        %v2645 = vpop.f32.mrf.mxu0
        %v2646 = vadd.f32 0.0, %v2645
        %v2647 = vpop.f32.mrf.mxu0
        %v2648 = vpop.f32.mrf.mxu0
        %v2649 = vadd.f32 0.0, %v2648
        %v2650 = vpop.f32.mrf.mxu0
        %2651 = vmatprep.mubr.bf16.mxu0 0
        %2652 = vmatmul.mubr.bf16.gmra.mxu0 %v2541
        %v2653 = vpop.f32.mrf.mxu0
        %v2654 = vadd.f32 0.0, %v2653
        %v2655 = vpop.f32.mrf.mxu0
        %v2656 = vpop.f32.mrf.mxu0
        %v2657 = vadd.f32 0.0, %v2656
        %v2658 = vpop.f32.mrf.mxu0
        %2659 = vmatprep.mubr.bf16.mxu0 0
        %2660 = vmatmul.mubr.bf16.gmra.mxu0 %v2543
        %v2661 = vpop.f32.mrf.mxu0
        %v2662 = vadd.f32 0.0, %v2661
        %v2663 = vpop.f32.mrf.mxu0
        %v2664 = vpop.f32.mrf.mxu0
        %v2665 = vadd.f32 0.0, %v2664
        %v2666 = vpop.f32.mrf.mxu0
        %2667 = vmatprep.mubr.bf16.mxu0 0
        %2668 = vmatmul.mubr.bf16.gmra.mxu0 %v2545
        %v2669 = vpop.f32.mrf.mxu0
        %v2670 = vadd.f32 0.0, %v2669
        %v2671 = vpop.f32.mrf.mxu0
        %v2672 = vpop.f32.mrf.mxu0
        %v2673 = vadd.f32 0.0, %v2672
        %v2674 = vpop.f32.mrf.mxu0
        %2675 = vmatprep.mubr.bf16.mxu0 0
        %2676 = vmatmul.mubr.bf16.gmra.mxu0 %v2547
        %v2677 = vpop.f32.mrf.mxu0
        %v2678 = vadd.f32 0.0, %v2677
        %v2679 = vpop.f32.mrf.mxu0
        %v2680 = vpop.f32.mrf.mxu0
        %v2681 = vadd.f32 0.0, %v2680
        %v2682 = vpop.f32.mrf.mxu0
        %2683 = vmatprep.mubr.bf16.mxu0 0
        %2684 = vmatmul.mubr.bf16.gmra.mxu0 %v2549
        %v2685 = vpop.f32.mrf.mxu0
        %v2686 = vadd.f32 0.0, %v2685
        %v2687 = vpop.f32.mrf.mxu0
        %v2688 = vpop.f32.mrf.mxu0
        %v2689 = vadd.f32 0.0, %v2688
        %v2690 = vpop.f32.mrf.mxu0
        %2691 = vmatprep.mubr.bf16.mxu0 0
        %2692 = vmatmul.mubr.bf16.gmra.mxu0 %v2551
        %v2693 = vpop.f32.mrf.mxu0
        %v2694 = vadd.f32 0.0, %v2693
        %v2695 = vpop.f32.mrf.mxu0
        %v2696 = vpop.f32.mrf.mxu0
        %v2697 = vadd.f32 0.0, %v2696
        %v2698 = vpop.f32.mrf.mxu0
        %2699 = vmatprep.mubr.bf16.mxu0 0
        %2700 = vmatmul.mubr.bf16.gmra.mxu0 %v2553
        %v2701 = vpop.f32.mrf.mxu0
        %v2702 = vadd.f32 0.0, %v2701
        %v2703 = vpop.f32.mrf.mxu0
        %v2704 = vpop.f32.mrf.mxu0
        %v2705 = vadd.f32 0.0, %v2704
        %v2706 = vpop.f32.mrf.mxu0
        %2707 = vmatprep.mubr.bf16.mxu0 0
        %2708 = vmatmul.mubr.bf16.gmra.mxu0 %v2555
        %v2709 = vpop.f32.mrf.mxu0
        %v2710 = vadd.f32 0.0, %v2709
        %v2711 = vpop.f32.mrf.mxu0
        %v2712 = vpop.f32.mrf.mxu0
        %v2713 = vadd.f32 0.0, %v2712
        %v2714 = vpop.f32.mrf.mxu0
        %2715 = vmatprep.mubr.bf16.mxu0 0
        %2716 = vmatmul.mubr.bf16.gmra.mxu0 %v2557
        %v2717 = vpop.f32.mrf.mxu0
        %v2718 = vadd.f32 0.0, %v2717
        %v2719 = vpop.f32.mrf.mxu0
        %v2720 = vpop.f32.mrf.mxu0
        %v2721 = vadd.f32 0.0, %v2720
        %v2722 = vpop.f32.mrf.mxu0
        %2723 = vdwg.mxu0
        %v2731 = vunpack.c.l.b16 %v2490
        %v2732 = vunpack.c.l.b16 %v2491
        %v2733 = vunpack.c.l.b16 %v2492
        %v2734 = vunpack.c.l.b16 %v2493
        %v2735 = vunpack.c.l.b16 %v2494
        %v2736 = vunpack.c.l.b16 %v2495
        %v2737 = vunpack.c.l.b16 %v2496
        %v2738 = vpack.c.b16 %v2732, %v2731
        %v2739 = vpack.c.b16 %v2734, %v2733
        %v2740 = vpack.c.b16 %v2736, %v2735
        %v2741 = vpack.c.b16 %v2737, %v2737
        %v2745 = vsel %vm2526, %v2443, 0
        %v2748 = vsel %vm2559, %v2741, 0
        %2750 = vmatprep.subr.bf16.mxu0 0
        %2751 = vmatpush1.bf16.msra.mxu0 0
        %2752 = vmatprep.subr.bf16.mxu0 0
        %2753 = vmatpush1.bf16.msra.mxu0 0
        %2754 = vmatprep.subr.bf16.mxu0 0
        %2755 = vmatpush1.bf16.msra.mxu0 0
        %2756 = vmatprep.subr.bf16.mxu0 0
        %2757 = vmatpush1.bf16.msra.mxu0 0
        %2758 = vmatprep.subr.bf16.mxu0 0
        %2759 = vmatpush1.bf16.msra.mxu0 %v2748
        %2760 = vmatprep.subr.bf16.mxu0 0
        %2761 = vmatpush1.bf16.msra.mxu0 %v2740
        %2762 = vmatprep.subr.bf16.mxu0 0
        %2763 = vmatpush1.bf16.msra.mxu0 %v2739
        %2764 = vmatprep.subr.bf16.mxu0 0
        %2765 = vmatpush1.bf16.msra.mxu0 %v2738
        %2766 = vmatprep.subr.bf16.mxu0 0
        %2767 = vmatpush2.bf16.msra.mxu0 0
        %2768 = vmatprep.subr.bf16.mxu0 0
        %2769 = vmatpush2.bf16.msra.mxu0 0
        %2770 = vmatprep.subr.bf16.mxu0 0
        %2771 = vmatpush2.bf16.msra.mxu0 0
        %2772 = vmatprep.subr.bf16.mxu0 0
        %2773 = vmatpush2.bf16.msra.mxu0 0
        %2774 = vmatprep.subr.bf16.mxu0 0
        %2775 = vmatpush2.bf16.msra.mxu0 0
        %2776 = vmatprep.subr.bf16.mxu0 0
        %2777 = vmatpush2.bf16.msra.mxu0 0
        %2778 = vmatprep.subr.bf16.mxu0 0
        %2779 = vmatpush2.bf16.msra.mxu0 0
        %2780 = vmatprep.subr.bf16.mxu0 0
        %2781 = vmatpush2.bf16.msra.mxu0 0
        %2782 = vmatprep.mubr.bf16.mxu0 0
        %2783 = vmatmul.mubr.bf16.gmra.mxu0 %v2745
        %v2784 = vpop.f32.mrf.mxu0
        %v2785 = vadd.f32 %v2598, %v2784
        %v2786 = vpop.f32.mrf.mxu0
        %v2787 = vpop.f32.mrf.mxu0
        %v2788 = vadd.f32 %v2601, %v2787
        %v2789 = vpop.f32.mrf.mxu0
        %2790 = vmatprep.mubr.bf16.mxu0 0
        %2791 = vmatmul.mubr.bf16.gmra.mxu0 %v2527
        %v2792 = vpop.f32.mrf.mxu0
        %v2793 = vadd.f32 %v2606, %v2792
        %v2794 = vpop.f32.mrf.mxu0
        %v2795 = vpop.f32.mrf.mxu0
        %v2796 = vadd.f32 %v2609, %v2795
        %v2797 = vpop.f32.mrf.mxu0
        %2798 = vmatprep.mubr.bf16.mxu0 0
        %2799 = vmatmul.mubr.bf16.gmra.mxu0 %v2529
        %v2800 = vpop.f32.mrf.mxu0
        %v2801 = vadd.f32 %v2614, %v2800
        %v2802 = vpop.f32.mrf.mxu0
        %v2803 = vpop.f32.mrf.mxu0
        %v2804 = vadd.f32 %v2617, %v2803
        %v2805 = vpop.f32.mrf.mxu0
        %2806 = vmatprep.mubr.bf16.mxu0 0
        %2807 = vmatmul.mubr.bf16.gmra.mxu0 %v2531
        %v2808 = vpop.f32.mrf.mxu0
        %v2809 = vadd.f32 %v2622, %v2808
        %v2810 = vpop.f32.mrf.mxu0
        %v2811 = vpop.f32.mrf.mxu0
        %v2812 = vadd.f32 %v2625, %v2811
        %v2813 = vpop.f32.mrf.mxu0
        %2814 = vmatprep.mubr.bf16.mxu0 0
        %2815 = vmatmul.mubr.bf16.gmra.mxu0 %v2533
        %v2816 = vpop.f32.mrf.mxu0
        %v2817 = vadd.f32 %v2630, %v2816
        %v2818 = vpop.f32.mrf.mxu0
        %v2819 = vpop.f32.mrf.mxu0
        %v2820 = vadd.f32 %v2633, %v2819
        %v2821 = vpop.f32.mrf.mxu0
        %2822 = vmatprep.mubr.bf16.mxu0 0
        %2823 = vmatmul.mubr.bf16.gmra.mxu0 %v2535
        %v2824 = vpop.f32.mrf.mxu0
        %v2825 = vadd.f32 %v2638, %v2824
        %v2826 = vpop.f32.mrf.mxu0
        %v2827 = vpop.f32.mrf.mxu0
        %v2828 = vadd.f32 %v2641, %v2827
        %v2829 = vpop.f32.mrf.mxu0
        %2830 = vmatprep.mubr.bf16.mxu0 0
        %2831 = vmatmul.mubr.bf16.gmra.mxu0 %v2537
        %v2832 = vpop.f32.mrf.mxu0
        %v2833 = vadd.f32 %v2646, %v2832
        %v2834 = vpop.f32.mrf.mxu0
        %v2835 = vpop.f32.mrf.mxu0
        %v2836 = vadd.f32 %v2649, %v2835
        %v2837 = vpop.f32.mrf.mxu0
        %2838 = vmatprep.mubr.bf16.mxu0 0
        %2839 = vmatmul.mubr.bf16.gmra.mxu0 %v2539
        %v2840 = vpop.f32.mrf.mxu0
        %v2841 = vadd.f32 %v2654, %v2840
        %v2842 = vpop.f32.mrf.mxu0
        %v2843 = vpop.f32.mrf.mxu0
        %v2844 = vadd.f32 %v2657, %v2843
        %v2845 = vpop.f32.mrf.mxu0
        %2846 = vmatprep.mubr.bf16.mxu0 0
        %2847 = vmatmul.mubr.bf16.gmra.mxu0 %v2541
        %v2848 = vpop.f32.mrf.mxu0
        %v2849 = vadd.f32 %v2662, %v2848
        %v2850 = vpop.f32.mrf.mxu0
        %v2851 = vpop.f32.mrf.mxu0
        %v2852 = vadd.f32 %v2665, %v2851
        %v2853 = vpop.f32.mrf.mxu0
        %2854 = vmatprep.mubr.bf16.mxu0 0
        %2855 = vmatmul.mubr.bf16.gmra.mxu0 %v2543
        %v2856 = vpop.f32.mrf.mxu0
        %v2857 = vadd.f32 %v2670, %v2856
        %v2858 = vpop.f32.mrf.mxu0
        %v2859 = vpop.f32.mrf.mxu0
        %v2860 = vadd.f32 %v2673, %v2859
        %v2861 = vpop.f32.mrf.mxu0
        %2862 = vmatprep.mubr.bf16.mxu0 0
        %2863 = vmatmul.mubr.bf16.gmra.mxu0 %v2545
        %v2864 = vpop.f32.mrf.mxu0
        %v2865 = vadd.f32 %v2678, %v2864
        %v2866 = vpop.f32.mrf.mxu0
        %v2867 = vpop.f32.mrf.mxu0
        %v2868 = vadd.f32 %v2681, %v2867
        %v2869 = vpop.f32.mrf.mxu0
        %2870 = vmatprep.mubr.bf16.mxu0 0
        %2871 = vmatmul.mubr.bf16.gmra.mxu0 %v2547
        %v2872 = vpop.f32.mrf.mxu0
        %v2873 = vadd.f32 %v2686, %v2872
        %v2874 = vpop.f32.mrf.mxu0
        %v2875 = vpop.f32.mrf.mxu0
        %v2876 = vadd.f32 %v2689, %v2875
        %v2877 = vpop.f32.mrf.mxu0
        %2878 = vmatprep.mubr.bf16.mxu0 0
        %2879 = vmatmul.mubr.bf16.gmra.mxu0 %v2549
        %v2880 = vpop.f32.mrf.mxu0
        %v2881 = vadd.f32 %v2694, %v2880
        %v2882 = vpop.f32.mrf.mxu0
        %v2883 = vpop.f32.mrf.mxu0
        %v2884 = vadd.f32 %v2697, %v2883
        %v2885 = vpop.f32.mrf.mxu0
        %2886 = vmatprep.mubr.bf16.mxu0 0
        %2887 = vmatmul.mubr.bf16.gmra.mxu0 %v2551
        %v2888 = vpop.f32.mrf.mxu0
        %v2889 = vadd.f32 %v2702, %v2888
        %v2890 = vpop.f32.mrf.mxu0
        %v2891 = vpop.f32.mrf.mxu0
        %v2892 = vadd.f32 %v2705, %v2891
        %v2893 = vpop.f32.mrf.mxu0
        %2894 = vmatprep.mubr.bf16.mxu0 0
        %2895 = vmatmul.mubr.bf16.gmra.mxu0 %v2553
        %v2896 = vpop.f32.mrf.mxu0
        %v2897 = vadd.f32 %v2710, %v2896
        %v2898 = vpop.f32.mrf.mxu0
        %v2899 = vpop.f32.mrf.mxu0
        %v2900 = vadd.f32 %v2713, %v2899
        %v2901 = vpop.f32.mrf.mxu0
        %2902 = vmatprep.mubr.bf16.mxu0 0
        %2903 = vmatmul.mubr.bf16.gmra.mxu0 %v2555
        %v2904 = vpop.f32.mrf.mxu0
        %v2905 = vadd.f32 %v2718, %v2904
        %v2906 = vpop.f32.mrf.mxu0
        %v2907 = vpop.f32.mrf.mxu0
        %v2908 = vadd.f32 %v2721, %v2907
        %v2909 = vpop.f32.mrf.mxu0
        %2910 = vdwg.mxu0
        %s2911 = scalar_lea.vmem %s2, 56
        %v2912 = vld [vmem:[%s2911] sm:$0xf]
        %v2913 = vld [vmem:[%s2911 + $0x4] sm:$0xf]
        %v2914 = vld [vmem:[%s2911 + $0x8] sm:$0xf]
        %v2915 = vld [vmem:[%s2911 + $0xc] sm:$0xf]
        %v2916 = vld [vmem:[%s2911 + $0x10] sm:$0xf]
        %v2917 = vld [vmem:[%s2911 + $0x14] sm:$0xf]
        %v2918 = vld [vmem:[%s2911 + $0x18] sm:$0x7]
        %v2926 = vunpack.c.l.b16 %v2912
        %v2927 = vunpack.c.l.b16 %v2913
        %v2928 = vunpack.c.l.b16 %v2914
        %v2929 = vunpack.c.l.b16 %v2915
        %v2930 = vunpack.c.l.b16 %v2916
        %v2931 = vunpack.c.l.b16 %v2917
        %v2932 = vunpack.c.l.b16 %v2918
        %v2933 = vpack.c.b16 %v2927, %v2926
        %v2934 = vpack.c.b16 %v2929, %v2928
        %v2935 = vpack.c.b16 %v2931, %v2930
        %v2936 = vpack.c.b16 %v2932, %v2932
        %v2940 = vsel %vm2526, %v2477, 0
        %v2943 = vsel %vm2559, %v2936, 0
        %2945 = vmatprep.subr.bf16.mxu0 0
        %2946 = vmatpush1.bf16.msra.mxu0 0
        %2947 = vmatprep.subr.bf16.mxu0 0
        %2948 = vmatpush1.bf16.msra.mxu0 0
        %2949 = vmatprep.subr.bf16.mxu0 0
        %2950 = vmatpush1.bf16.msra.mxu0 0
        %2951 = vmatprep.subr.bf16.mxu0 0
        %2952 = vmatpush1.bf16.msra.mxu0 0
        %2953 = vmatprep.subr.bf16.mxu0 0
        %2954 = vmatpush1.bf16.msra.mxu0 %v2943
        %2955 = vmatprep.subr.bf16.mxu0 0
        %2956 = vmatpush1.bf16.msra.mxu0 %v2935
        %2957 = vmatprep.subr.bf16.mxu0 0
        %2958 = vmatpush1.bf16.msra.mxu0 %v2934
        %2959 = vmatprep.subr.bf16.mxu0 0
        %2960 = vmatpush1.bf16.msra.mxu0 %v2933
        %2961 = vmatprep.subr.bf16.mxu0 0
        %2962 = vmatpush2.bf16.msra.mxu0 0
        %2963 = vmatprep.subr.bf16.mxu0 0
        %2964 = vmatpush2.bf16.msra.mxu0 0
        %2965 = vmatprep.subr.bf16.mxu0 0
        %2966 = vmatpush2.bf16.msra.mxu0 0
        %2967 = vmatprep.subr.bf16.mxu0 0
        %2968 = vmatpush2.bf16.msra.mxu0 0
        %2969 = vmatprep.subr.bf16.mxu0 0
        %2970 = vmatpush2.bf16.msra.mxu0 0
        %2971 = vmatprep.subr.bf16.mxu0 0
        %2972 = vmatpush2.bf16.msra.mxu0 0
        %2973 = vmatprep.subr.bf16.mxu0 0
        %2974 = vmatpush2.bf16.msra.mxu0 0
        %2975 = vmatprep.subr.bf16.mxu0 0
        %2976 = vmatpush2.bf16.msra.mxu0 0
        %2977 = vmatprep.mubr.bf16.mxu0 0
        %2978 = vmatmul.mubr.bf16.gmra.mxu0 %v2529
        %v2979 = vpop.f32.mrf.mxu0
        %v2980 = vadd.f32 0.0, %v2979
        %v2981 = vpop.f32.mrf.mxu0
        %v2982 = vpop.f32.mrf.mxu0
        %v2983 = vadd.f32 0.0, %v2982
        %v2984 = vpop.f32.mrf.mxu0
        %2985 = vmatprep.mubr.bf16.mxu0 0
        %2986 = vmatmul.mubr.bf16.gmra.mxu0 %v2531
        %v2987 = vpop.f32.mrf.mxu0
        %v2988 = vadd.f32 0.0, %v2987
        %v2989 = vpop.f32.mrf.mxu0
        %v2990 = vpop.f32.mrf.mxu0
        %v2991 = vadd.f32 0.0, %v2990
        %v2992 = vpop.f32.mrf.mxu0
        %2993 = vmatprep.mubr.bf16.mxu0 0
        %2994 = vmatmul.mubr.bf16.gmra.mxu0 %v2533
        %v2995 = vpop.f32.mrf.mxu0
        %v2996 = vadd.f32 0.0, %v2995
        %v2997 = vpop.f32.mrf.mxu0
        %v2998 = vpop.f32.mrf.mxu0
        %v2999 = vadd.f32 0.0, %v2998
        %v3000 = vpop.f32.mrf.mxu0
        %3001 = vmatprep.mubr.bf16.mxu0 0
        %3002 = vmatmul.mubr.bf16.gmra.mxu0 %v2535
        %v3003 = vpop.f32.mrf.mxu0
        %v3004 = vadd.f32 0.0, %v3003
        %v3005 = vpop.f32.mrf.mxu0
        %v3006 = vpop.f32.mrf.mxu0
        %v3007 = vadd.f32 0.0, %v3006
        %v3008 = vpop.f32.mrf.mxu0
        %3009 = vmatprep.mubr.bf16.mxu0 0
        %3010 = vmatmul.mubr.bf16.gmra.mxu0 %v2537
        %v3011 = vpop.f32.mrf.mxu0
        %v3012 = vadd.f32 0.0, %v3011
        %v3013 = vpop.f32.mrf.mxu0
        %v3014 = vpop.f32.mrf.mxu0
        %v3015 = vadd.f32 0.0, %v3014
        %v3016 = vpop.f32.mrf.mxu0
        %3017 = vmatprep.mubr.bf16.mxu0 0
        %3018 = vmatmul.mubr.bf16.gmra.mxu0 %v2539
        %v3019 = vpop.f32.mrf.mxu0
        %v3020 = vadd.f32 0.0, %v3019
        %v3021 = vpop.f32.mrf.mxu0
        %v3022 = vpop.f32.mrf.mxu0
        %v3023 = vadd.f32 0.0, %v3022
        %v3024 = vpop.f32.mrf.mxu0
        %3025 = vmatprep.mubr.bf16.mxu0 0
        %3026 = vmatmul.mubr.bf16.gmra.mxu0 %v2541
        %v3027 = vpop.f32.mrf.mxu0
        %v3028 = vadd.f32 0.0, %v3027
        %v3029 = vpop.f32.mrf.mxu0
        %v3030 = vpop.f32.mrf.mxu0
        %v3031 = vadd.f32 0.0, %v3030
        %v3032 = vpop.f32.mrf.mxu0
        %3033 = vmatprep.mubr.bf16.mxu0 0
        %3034 = vmatmul.mubr.bf16.gmra.mxu0 %v2543
        %v3035 = vpop.f32.mrf.mxu0
        %v3036 = vadd.f32 0.0, %v3035
        %v3037 = vpop.f32.mrf.mxu0
        %v3038 = vpop.f32.mrf.mxu0
        %v3039 = vadd.f32 0.0, %v3038
        %v3040 = vpop.f32.mrf.mxu0
        %3041 = vmatprep.mubr.bf16.mxu0 0
        %3042 = vmatmul.mubr.bf16.gmra.mxu0 %v2545
        %v3043 = vpop.f32.mrf.mxu0
        %v3044 = vadd.f32 0.0, %v3043
        %v3045 = vpop.f32.mrf.mxu0
        %v3046 = vpop.f32.mrf.mxu0
        %v3047 = vadd.f32 0.0, %v3046
        %v3048 = vpop.f32.mrf.mxu0
        %3049 = vmatprep.mubr.bf16.mxu0 0
        %3050 = vmatmul.mubr.bf16.gmra.mxu0 %v2547
        %v3051 = vpop.f32.mrf.mxu0
        %v3052 = vadd.f32 0.0, %v3051
        %v3053 = vpop.f32.mrf.mxu0
        %v3054 = vpop.f32.mrf.mxu0
        %v3055 = vadd.f32 0.0, %v3054
        %v3056 = vpop.f32.mrf.mxu0
        %3057 = vmatprep.mubr.bf16.mxu0 0
        %3058 = vmatmul.mubr.bf16.gmra.mxu0 %v2549
        %v3059 = vpop.f32.mrf.mxu0
        %v3060 = vadd.f32 0.0, %v3059
        %v3061 = vpop.f32.mrf.mxu0
        %v3062 = vpop.f32.mrf.mxu0
        %v3063 = vadd.f32 0.0, %v3062
        %v3064 = vpop.f32.mrf.mxu0
        %3065 = vmatprep.mubr.bf16.mxu0 0
        %3066 = vmatmul.mubr.bf16.gmra.mxu0 %v2551
        %v3067 = vpop.f32.mrf.mxu0
        %v3068 = vadd.f32 0.0, %v3067
        %v3069 = vpop.f32.mrf.mxu0
        %v3070 = vpop.f32.mrf.mxu0
        %v3071 = vadd.f32 0.0, %v3070
        %v3072 = vpop.f32.mrf.mxu0
        %3073 = vmatprep.mubr.bf16.mxu0 0
        %3074 = vmatmul.mubr.bf16.gmra.mxu0 %v2553
        %v3075 = vpop.f32.mrf.mxu0
        %v3076 = vadd.f32 0.0, %v3075
        %v3077 = vpop.f32.mrf.mxu0
        %v3078 = vpop.f32.mrf.mxu0
        %v3079 = vadd.f32 0.0, %v3078
        %v3080 = vpop.f32.mrf.mxu0
        %3081 = vmatprep.mubr.bf16.mxu0 0
        %3082 = vmatmul.mubr.bf16.gmra.mxu0 %v2555
        %v3083 = vpop.f32.mrf.mxu0
        %v3084 = vadd.f32 0.0, %v3083
        %v3085 = vpop.f32.mrf.mxu0
        %v3086 = vpop.f32.mrf.mxu0
        %v3087 = vadd.f32 0.0, %v3086
        %v3088 = vpop.f32.mrf.mxu0
        %3089 = vmatprep.mubr.bf16.mxu0 0
        %3090 = vmatmul.mubr.bf16.gmra.mxu0 %v2557
        %v3091 = vpop.f32.mrf.mxu0
        %v3092 = vadd.f32 0.0, %v3091
        %v3093 = vpop.f32.mrf.mxu0
        %v3094 = vpop.f32.mrf.mxu0
        %v3095 = vadd.f32 0.0, %v3094
        %v3096 = vpop.f32.mrf.mxu0
        %3097 = vmatprep.mubr.bf16.mxu0 0
        %3098 = vmatmul.mubr.bf16.gmra.mxu0 %v2940
        %v3099 = vpop.f32.mrf.mxu0
        %v3100 = vadd.f32 0.0, %v3099
        %v3101 = vpop.f32.mrf.mxu0
        %v3102 = vpop.f32.mrf.mxu0
        %v3103 = vadd.f32 0.0, %v3102
        %v3104 = vpop.f32.mrf.mxu0
        %3105 = vdwg.mxu0
        %v3106 = vadd.f32 %v2785, %v2980
        %v3107 = vadd.f32 %v2788, %v2983
        %v3108 = vadd.f32 %v2793, %v2988
        %v3109 = vadd.f32 %v2796, %v2991
        %v3110 = vadd.f32 %v2801, %v2996
        %v3111 = vadd.f32 %v2804, %v2999
        %v3112 = vadd.f32 %v2809, %v3004
        %v3113 = vadd.f32 %v2812, %v3007
        %v3114 = vadd.f32 %v2817, %v3012
        %v3115 = vadd.f32 %v2820, %v3015
        %v3116 = vadd.f32 %v2825, %v3020
        %v3117 = vadd.f32 %v2828, %v3023
        %v3118 = vadd.f32 %v2833, %v3028
        %v3119 = vadd.f32 %v2836, %v3031
        %v3120 = vadd.f32 %v2841, %v3036
        %v3121 = vadd.f32 %v2844, %v3039
        %v3122 = vadd.f32 %v2849, %v3044
        %v3123 = vadd.f32 %v2852, %v3047
        %v3124 = vadd.f32 %v2857, %v3052
        %v3125 = vadd.f32 %v2860, %v3055
        %v3126 = vadd.f32 %v2865, %v3060
        %v3127 = vadd.f32 %v2868, %v3063
        %v3128 = vadd.f32 %v2873, %v3068
        %v3129 = vadd.f32 %v2876, %v3071
        %v3130 = vadd.f32 %v2881, %v3076
        %v3131 = vadd.f32 %v2884, %v3079
        %v3132 = vadd.f32 %v2889, %v3084
        %v3133 = vadd.f32 %v2892, %v3087
        %v3134 = vadd.f32 %v2897, %v3092
        %v3135 = vadd.f32 %v2900, %v3095
        %v3136 = vadd.f32 %v2905, %v3100
        %v3137 = vadd.f32 %v2908, %v3103
        %s3138 = scalar_lea.vmem %s2, 84
        %v3139 = vld [vmem:[%s3138] sm:$0xf]
        %v3140 = vld [vmem:[%s3138 + $0x4] sm:$0xf]
        %v3141 = vld [vmem:[%s3138 + $0x8] sm:$0xf]
        %v3142 = vld [vmem:[%s3138 + $0xc] sm:$0xf]
        %v3143 = vld [vmem:[%s3138 + $0x10] sm:$0xf]
        %v3144 = vld [vmem:[%s3138 + $0x14] sm:$0xf]
        %v3145 = vld [vmem:[%s3138 + $0x18] sm:$0x7]
        %v3153 = vunpack.c.l.b16 %v3139
        %v3154 = vunpack.c.l.b16 %v3140
        %v3155 = vunpack.c.l.b16 %v3141
        %v3156 = vunpack.c.l.b16 %v3142
        %v3157 = vunpack.c.l.b16 %v3143
        %v3158 = vunpack.c.l.b16 %v3144
        %v3159 = vunpack.c.l.b16 %v3145
        %v3160 = vpack.c.b16 %v3154, %v3153
        %v3161 = vpack.c.b16 %v3156, %v3155
        %v3162 = vpack.c.b16 %v3158, %v3157
        %v3163 = vpack.c.b16 %v3159, %v3159
        %v3167 = vsel %vm2526, %v2479, 0
        %v3170 = vsel %vm2559, %v3163, 0
        %3172 = vmatprep.subr.bf16.mxu0 0
        %3173 = vmatpush1.bf16.msra.mxu0 0
        %3174 = vmatprep.subr.bf16.mxu0 0
        %3175 = vmatpush1.bf16.msra.mxu0 0
        %3176 = vmatprep.subr.bf16.mxu0 0
        %3177 = vmatpush1.bf16.msra.mxu0 0
        %3178 = vmatprep.subr.bf16.mxu0 0
        %3179 = vmatpush1.bf16.msra.mxu0 0
        %3180 = vmatprep.subr.bf16.mxu0 0
        %3181 = vmatpush1.bf16.msra.mxu0 %v3170
        %3182 = vmatprep.subr.bf16.mxu0 0
        %3183 = vmatpush1.bf16.msra.mxu0 %v3162
        %3184 = vmatprep.subr.bf16.mxu0 0
        %3185 = vmatpush1.bf16.msra.mxu0 %v3161
        %3186 = vmatprep.subr.bf16.mxu0 0
        %3187 = vmatpush1.bf16.msra.mxu0 %v3160
        %3188 = vmatprep.subr.bf16.mxu0 0
        %3189 = vmatpush2.bf16.msra.mxu0 0
        %3190 = vmatprep.subr.bf16.mxu0 0
        %3191 = vmatpush2.bf16.msra.mxu0 0
        %3192 = vmatprep.subr.bf16.mxu0 0
        %3193 = vmatpush2.bf16.msra.mxu0 0
        %3194 = vmatprep.subr.bf16.mxu0 0
        %3195 = vmatpush2.bf16.msra.mxu0 0
        %3196 = vmatprep.subr.bf16.mxu0 0
        %3197 = vmatpush2.bf16.msra.mxu0 0
        %3198 = vmatprep.subr.bf16.mxu0 0
        %3199 = vmatpush2.bf16.msra.mxu0 0
        %3200 = vmatprep.subr.bf16.mxu0 0
        %3201 = vmatpush2.bf16.msra.mxu0 0
        %3202 = vmatprep.subr.bf16.mxu0 0
        %3203 = vmatpush2.bf16.msra.mxu0 0
        %3204 = vmatprep.mubr.bf16.mxu0 0
        %3205 = vmatmul.mubr.bf16.gmra.mxu0 %v2531
        %v3206 = vpop.f32.mrf.mxu0
        %v3207 = vadd.f32 0.0, %v3206
        %v3208 = vpop.f32.mrf.mxu0
        %v3209 = vpop.f32.mrf.mxu0
        %v3210 = vadd.f32 0.0, %v3209
        %v3211 = vpop.f32.mrf.mxu0
        %3212 = vmatprep.mubr.bf16.mxu0 0
        %3213 = vmatmul.mubr.bf16.gmra.mxu0 %v2533
        %v3214 = vpop.f32.mrf.mxu0
        %v3215 = vadd.f32 0.0, %v3214
        %v3216 = vpop.f32.mrf.mxu0
        %v3217 = vpop.f32.mrf.mxu0
        %v3218 = vadd.f32 0.0, %v3217
        %v3219 = vpop.f32.mrf.mxu0
        %3220 = vmatprep.mubr.bf16.mxu0 0
        %3221 = vmatmul.mubr.bf16.gmra.mxu0 %v2535
        %v3222 = vpop.f32.mrf.mxu0
        %v3223 = vadd.f32 0.0, %v3222
        %v3224 = vpop.f32.mrf.mxu0
        %v3225 = vpop.f32.mrf.mxu0
        %v3226 = vadd.f32 0.0, %v3225
        %v3227 = vpop.f32.mrf.mxu0
        %3228 = vmatprep.mubr.bf16.mxu0 0
        %3229 = vmatmul.mubr.bf16.gmra.mxu0 %v2537
        %v3230 = vpop.f32.mrf.mxu0
        %v3231 = vadd.f32 0.0, %v3230
        %v3232 = vpop.f32.mrf.mxu0
        %v3233 = vpop.f32.mrf.mxu0
        %v3234 = vadd.f32 0.0, %v3233
        %v3235 = vpop.f32.mrf.mxu0
        %3236 = vmatprep.mubr.bf16.mxu0 0
        %3237 = vmatmul.mubr.bf16.gmra.mxu0 %v2539
        %v3238 = vpop.f32.mrf.mxu0
        %v3239 = vadd.f32 0.0, %v3238
        %v3240 = vpop.f32.mrf.mxu0
        %v3241 = vpop.f32.mrf.mxu0
        %v3242 = vadd.f32 0.0, %v3241
        %v3243 = vpop.f32.mrf.mxu0
        %3244 = vmatprep.mubr.bf16.mxu0 0
        %3245 = vmatmul.mubr.bf16.gmra.mxu0 %v2541
        %v3246 = vpop.f32.mrf.mxu0
        %v3247 = vadd.f32 0.0, %v3246
        %v3248 = vpop.f32.mrf.mxu0
        %v3249 = vpop.f32.mrf.mxu0
        %v3250 = vadd.f32 0.0, %v3249
        %v3251 = vpop.f32.mrf.mxu0
        %3252 = vmatprep.mubr.bf16.mxu0 0
        %3253 = vmatmul.mubr.bf16.gmra.mxu0 %v2543
        %v3254 = vpop.f32.mrf.mxu0
        %v3255 = vadd.f32 0.0, %v3254
        %v3256 = vpop.f32.mrf.mxu0
        %v3257 = vpop.f32.mrf.mxu0
        %v3258 = vadd.f32 0.0, %v3257
        %v3259 = vpop.f32.mrf.mxu0
        %3260 = vmatprep.mubr.bf16.mxu0 0
        %3261 = vmatmul.mubr.bf16.gmra.mxu0 %v2545
        %v3262 = vpop.f32.mrf.mxu0
        %v3263 = vadd.f32 0.0, %v3262
        %v3264 = vpop.f32.mrf.mxu0
        %v3265 = vpop.f32.mrf.mxu0
        %v3266 = vadd.f32 0.0, %v3265
        %v3267 = vpop.f32.mrf.mxu0
        %3268 = vmatprep.mubr.bf16.mxu0 0
        %3269 = vmatmul.mubr.bf16.gmra.mxu0 %v2547
        %v3270 = vpop.f32.mrf.mxu0
        %v3271 = vadd.f32 0.0, %v3270
        %v3272 = vpop.f32.mrf.mxu0
        %v3273 = vpop.f32.mrf.mxu0
        %v3274 = vadd.f32 0.0, %v3273
        %v3275 = vpop.f32.mrf.mxu0
        %3276 = vmatprep.mubr.bf16.mxu0 0
        %3277 = vmatmul.mubr.bf16.gmra.mxu0 %v2549
        %v3278 = vpop.f32.mrf.mxu0
        %v3279 = vadd.f32 0.0, %v3278
        %v3280 = vpop.f32.mrf.mxu0
        %v3281 = vpop.f32.mrf.mxu0
        %v3282 = vadd.f32 0.0, %v3281
        %v3283 = vpop.f32.mrf.mxu0
        %3284 = vmatprep.mubr.bf16.mxu0 0
        %3285 = vmatmul.mubr.bf16.gmra.mxu0 %v2551
        %v3286 = vpop.f32.mrf.mxu0
        %v3287 = vadd.f32 0.0, %v3286
        %v3288 = vpop.f32.mrf.mxu0
        %v3289 = vpop.f32.mrf.mxu0
        %v3290 = vadd.f32 0.0, %v3289
        %v3291 = vpop.f32.mrf.mxu0
        %3292 = vmatprep.mubr.bf16.mxu0 0
        %3293 = vmatmul.mubr.bf16.gmra.mxu0 %v2553
        %v3294 = vpop.f32.mrf.mxu0
        %v3295 = vadd.f32 0.0, %v3294
        %v3296 = vpop.f32.mrf.mxu0
        %v3297 = vpop.f32.mrf.mxu0
        %v3298 = vadd.f32 0.0, %v3297
        %v3299 = vpop.f32.mrf.mxu0
        %3300 = vmatprep.mubr.bf16.mxu0 0
        %3301 = vmatmul.mubr.bf16.gmra.mxu0 %v2555
        %v3302 = vpop.f32.mrf.mxu0
        %v3303 = vadd.f32 0.0, %v3302
        %v3304 = vpop.f32.mrf.mxu0
        %v3305 = vpop.f32.mrf.mxu0
        %v3306 = vadd.f32 0.0, %v3305
        %v3307 = vpop.f32.mrf.mxu0
        %3308 = vmatprep.mubr.bf16.mxu0 0
        %3309 = vmatmul.mubr.bf16.gmra.mxu0 %v2557
        %v3310 = vpop.f32.mrf.mxu0
        %v3311 = vadd.f32 0.0, %v3310
        %v3312 = vpop.f32.mrf.mxu0
        %v3313 = vpop.f32.mrf.mxu0
        %v3314 = vadd.f32 0.0, %v3313
        %v3315 = vpop.f32.mrf.mxu0
        %3316 = vmatprep.mubr.bf16.mxu0 0
        %3317 = vmatmul.mubr.bf16.gmra.mxu0 %v2940
        %v3318 = vpop.f32.mrf.mxu0
        %v3319 = vadd.f32 0.0, %v3318
        %v3320 = vpop.f32.mrf.mxu0
        %v3321 = vpop.f32.mrf.mxu0
        %v3322 = vadd.f32 0.0, %v3321
        %v3323 = vpop.f32.mrf.mxu0
        %3324 = vmatprep.mubr.bf16.mxu0 0
        %3325 = vmatmul.mubr.bf16.gmra.mxu0 %v3167
        %v3326 = vpop.f32.mrf.mxu0
        %v3327 = vadd.f32 0.0, %v3326
        %v3328 = vpop.f32.mrf.mxu0
        %v3329 = vpop.f32.mrf.mxu0
        %v3330 = vadd.f32 0.0, %v3329
        %v3331 = vpop.f32.mrf.mxu0
        %3332 = vdwg.mxu0
        %v3333 = vadd.f32 %v3106, %v3207
        %v3334 = vadd.f32 %v3107, %v3210
        %v3335 = vadd.f32 %v3108, %v3215
        %v3336 = vadd.f32 %v3109, %v3218
        %v3337 = vadd.f32 %v3110, %v3223
        %v3338 = vadd.f32 %v3111, %v3226
        %v3339 = vadd.f32 %v3112, %v3231
        %v3340 = vadd.f32 %v3113, %v3234
        %v3341 = vadd.f32 %v3114, %v3239
        %v3342 = vadd.f32 %v3115, %v3242
        %v3343 = vadd.f32 %v3116, %v3247
        %v3344 = vadd.f32 %v3117, %v3250
        %v3345 = vadd.f32 %v3118, %v3255
        %v3346 = vadd.f32 %v3119, %v3258
        %v3347 = vadd.f32 %v3120, %v3263
        %v3348 = vadd.f32 %v3121, %v3266
        %v3349 = vadd.f32 %v3122, %v3271
        %v3350 = vadd.f32 %v3123, %v3274
        %v3351 = vadd.f32 %v3124, %v3279
        %v3352 = vadd.f32 %v3125, %v3282
        %v3353 = vadd.f32 %v3126, %v3287
        %v3354 = vadd.f32 %v3127, %v3290
        %v3355 = vadd.f32 %v3128, %v3295
        %v3356 = vadd.f32 %v3129, %v3298
        %v3357 = vadd.f32 %v3130, %v3303
        %v3358 = vadd.f32 %v3131, %v3306
        %v3359 = vadd.f32 %v3132, %v3311
        %v3360 = vadd.f32 %v3133, %v3314
        %v3361 = vadd.f32 %v3134, %v3319
        %v3362 = vadd.f32 %v3135, %v3322
        %v3363 = vadd.f32 %v3136, %v3327
        %v3364 = vadd.f32 %v3137, %v3330
        %s3365 = scalar_lea.vmem %s2, 112
        %v3366 = vld [vmem:[%s3365] sm:$0xf]
        %v3367 = vld [vmem:[%s3365 + $0x4] sm:$0xf]
        %v3368 = vld [vmem:[%s3365 + $0x8] sm:$0xf]
        %v3369 = vld [vmem:[%s3365 + $0xc] sm:$0xf]
        %v3370 = vld [vmem:[%s3365 + $0x10] sm:$0xf]
        %v3371 = vld [vmem:[%s3365 + $0x14] sm:$0xf]
        %v3372 = vld [vmem:[%s3365 + $0x18] sm:$0x7]
        %v3380 = vunpack.c.l.b16 %v3366
        %v3381 = vunpack.c.l.b16 %v3367
        %v3382 = vunpack.c.l.b16 %v3368
        %v3383 = vunpack.c.l.b16 %v3369
        %v3384 = vunpack.c.l.b16 %v3370
        %v3385 = vunpack.c.l.b16 %v3371
        %v3386 = vunpack.c.l.b16 %v3372
        %v3387 = vpack.c.b16 %v3381, %v3380
        %v3388 = vpack.c.b16 %v3383, %v3382
        %v3389 = vpack.c.b16 %v3385, %v3384
        %v3390 = vpack.c.b16 %v3386, %v3386
        %v3394 = vsel %vm2526, %v2481, 0
        %v3397 = vsel %vm2559, %v3390, 0
        %3399 = vmatprep.subr.bf16.mxu0 0
        %3400 = vmatpush1.bf16.msra.mxu0 0
        %3401 = vmatprep.subr.bf16.mxu0 0
        %3402 = vmatpush1.bf16.msra.mxu0 0
        %3403 = vmatprep.subr.bf16.mxu0 0
        %3404 = vmatpush1.bf16.msra.mxu0 0
        %3405 = vmatprep.subr.bf16.mxu0 0
        %3406 = vmatpush1.bf16.msra.mxu0 0
        %3407 = vmatprep.subr.bf16.mxu0 0
        %3408 = vmatpush1.bf16.msra.mxu0 %v3397
        %3409 = vmatprep.subr.bf16.mxu0 0
        %3410 = vmatpush1.bf16.msra.mxu0 %v3389
        %3411 = vmatprep.subr.bf16.mxu0 0
        %3412 = vmatpush1.bf16.msra.mxu0 %v3388
        %3413 = vmatprep.subr.bf16.mxu0 0
        %3414 = vmatpush1.bf16.msra.mxu0 %v3387
        %3415 = vmatprep.subr.bf16.mxu0 0
        %3416 = vmatpush2.bf16.msra.mxu0 0
        %3417 = vmatprep.subr.bf16.mxu0 0
        %3418 = vmatpush2.bf16.msra.mxu0 0
        %3419 = vmatprep.subr.bf16.mxu0 0
        %3420 = vmatpush2.bf16.msra.mxu0 0
        %3421 = vmatprep.subr.bf16.mxu0 0
        %3422 = vmatpush2.bf16.msra.mxu0 0
        %3423 = vmatprep.subr.bf16.mxu0 0
        %3424 = vmatpush2.bf16.msra.mxu0 0
        %3425 = vmatprep.subr.bf16.mxu0 0
        %3426 = vmatpush2.bf16.msra.mxu0 0
        %3427 = vmatprep.subr.bf16.mxu0 0
        %3428 = vmatpush2.bf16.msra.mxu0 0
        %3429 = vmatprep.subr.bf16.mxu0 0
        %3430 = vmatpush2.bf16.msra.mxu0 0
        %3431 = vmatprep.mubr.bf16.mxu0 0
        %3432 = vmatmul.mubr.bf16.gmra.mxu0 %v2533
        %v3433 = vpop.f32.mrf.mxu0
        %v3434 = vadd.f32 0.0, %v3433
        %v3435 = vpop.f32.mrf.mxu0
        %v3436 = vpop.f32.mrf.mxu0
        %v3437 = vadd.f32 0.0, %v3436
        %v3438 = vpop.f32.mrf.mxu0
        %3439 = vmatprep.mubr.bf16.mxu0 0
        %3440 = vmatmul.mubr.bf16.gmra.mxu0 %v2535
        %v3441 = vpop.f32.mrf.mxu0
        %v3442 = vadd.f32 0.0, %v3441
        %v3443 = vpop.f32.mrf.mxu0
        %v3444 = vpop.f32.mrf.mxu0
        %v3445 = vadd.f32 0.0, %v3444
        %v3446 = vpop.f32.mrf.mxu0
        %3447 = vmatprep.mubr.bf16.mxu0 0
        %3448 = vmatmul.mubr.bf16.gmra.mxu0 %v2537
        %v3449 = vpop.f32.mrf.mxu0
        %v3450 = vadd.f32 0.0, %v3449
        %v3451 = vpop.f32.mrf.mxu0
        %v3452 = vpop.f32.mrf.mxu0
        %v3453 = vadd.f32 0.0, %v3452
        %v3454 = vpop.f32.mrf.mxu0
        %3455 = vmatprep.mubr.bf16.mxu0 0
        %3456 = vmatmul.mubr.bf16.gmra.mxu0 %v2539
        %v3457 = vpop.f32.mrf.mxu0
        %v3458 = vadd.f32 0.0, %v3457
        %v3459 = vpop.f32.mrf.mxu0
        %v3460 = vpop.f32.mrf.mxu0
        %v3461 = vadd.f32 0.0, %v3460
        %v3462 = vpop.f32.mrf.mxu0
        %3463 = vmatprep.mubr.bf16.mxu0 0
        %3464 = vmatmul.mubr.bf16.gmra.mxu0 %v2541
        %v3465 = vpop.f32.mrf.mxu0
        %v3466 = vadd.f32 0.0, %v3465
        %v3467 = vpop.f32.mrf.mxu0
        %v3468 = vpop.f32.mrf.mxu0
        %v3469 = vadd.f32 0.0, %v3468
        %v3470 = vpop.f32.mrf.mxu0
        %3471 = vmatprep.mubr.bf16.mxu0 0
        %3472 = vmatmul.mubr.bf16.gmra.mxu0 %v2543
        %v3473 = vpop.f32.mrf.mxu0
        %v3474 = vadd.f32 0.0, %v3473
        %v3475 = vpop.f32.mrf.mxu0
        %v3476 = vpop.f32.mrf.mxu0
        %v3477 = vadd.f32 0.0, %v3476
        %v3478 = vpop.f32.mrf.mxu0
        %3479 = vmatprep.mubr.bf16.mxu0 0
        %3480 = vmatmul.mubr.bf16.gmra.mxu0 %v2545
        %v3481 = vpop.f32.mrf.mxu0
        %v3482 = vadd.f32 0.0, %v3481
        %v3483 = vpop.f32.mrf.mxu0
        %v3484 = vpop.f32.mrf.mxu0
        %v3485 = vadd.f32 0.0, %v3484
        %v3486 = vpop.f32.mrf.mxu0
        %3487 = vmatprep.mubr.bf16.mxu0 0
        %3488 = vmatmul.mubr.bf16.gmra.mxu0 %v2547
        %v3489 = vpop.f32.mrf.mxu0
        %v3490 = vadd.f32 0.0, %v3489
        %v3491 = vpop.f32.mrf.mxu0
        %v3492 = vpop.f32.mrf.mxu0
        %v3493 = vadd.f32 0.0, %v3492
        %v3494 = vpop.f32.mrf.mxu0
        %3495 = vmatprep.mubr.bf16.mxu0 0
        %3496 = vmatmul.mubr.bf16.gmra.mxu0 %v2549
        %v3497 = vpop.f32.mrf.mxu0
        %v3498 = vadd.f32 0.0, %v3497
        %v3499 = vpop.f32.mrf.mxu0
        %v3500 = vpop.f32.mrf.mxu0
        %v3501 = vadd.f32 0.0, %v3500
        %v3502 = vpop.f32.mrf.mxu0
        %3503 = vmatprep.mubr.bf16.mxu0 0
        %3504 = vmatmul.mubr.bf16.gmra.mxu0 %v2551
        %v3505 = vpop.f32.mrf.mxu0
        %v3506 = vadd.f32 0.0, %v3505
        %v3507 = vpop.f32.mrf.mxu0
        %v3508 = vpop.f32.mrf.mxu0
        %v3509 = vadd.f32 0.0, %v3508
        %v3510 = vpop.f32.mrf.mxu0
        %3511 = vmatprep.mubr.bf16.mxu0 0
        %3512 = vmatmul.mubr.bf16.gmra.mxu0 %v2553
        %v3513 = vpop.f32.mrf.mxu0
        %v3514 = vadd.f32 0.0, %v3513
        %v3515 = vpop.f32.mrf.mxu0
        %v3516 = vpop.f32.mrf.mxu0
        %v3517 = vadd.f32 0.0, %v3516
        %v3518 = vpop.f32.mrf.mxu0
        %3519 = vmatprep.mubr.bf16.mxu0 0
        %3520 = vmatmul.mubr.bf16.gmra.mxu0 %v2555
        %v3521 = vpop.f32.mrf.mxu0
        %v3522 = vadd.f32 0.0, %v3521
        %v3523 = vpop.f32.mrf.mxu0
        %v3524 = vpop.f32.mrf.mxu0
        %v3525 = vadd.f32 0.0, %v3524
        %v3526 = vpop.f32.mrf.mxu0
        %3527 = vmatprep.mubr.bf16.mxu0 0
        %3528 = vmatmul.mubr.bf16.gmra.mxu0 %v2557
        %v3529 = vpop.f32.mrf.mxu0
        %v3530 = vadd.f32 0.0, %v3529
        %v3531 = vpop.f32.mrf.mxu0
        %v3532 = vpop.f32.mrf.mxu0
        %v3533 = vadd.f32 0.0, %v3532
        %v3534 = vpop.f32.mrf.mxu0
        %3535 = vmatprep.mubr.bf16.mxu0 0
        %3536 = vmatmul.mubr.bf16.gmra.mxu0 %v2940
        %v3537 = vpop.f32.mrf.mxu0
        %v3538 = vadd.f32 0.0, %v3537
        %v3539 = vpop.f32.mrf.mxu0
        %v3540 = vpop.f32.mrf.mxu0
        %v3541 = vadd.f32 0.0, %v3540
        %v3542 = vpop.f32.mrf.mxu0
        %3543 = vmatprep.mubr.bf16.mxu0 0
        %3544 = vmatmul.mubr.bf16.gmra.mxu0 %v3167
        %v3545 = vpop.f32.mrf.mxu0
        %v3546 = vadd.f32 0.0, %v3545
        %v3547 = vpop.f32.mrf.mxu0
        %v3548 = vpop.f32.mrf.mxu0
        %v3549 = vadd.f32 0.0, %v3548
        %v3550 = vpop.f32.mrf.mxu0
        %3551 = vmatprep.mubr.bf16.mxu0 0
        %3552 = vmatmul.mubr.bf16.gmra.mxu0 %v3394
        %v3553 = vpop.f32.mrf.mxu0
        %v3554 = vadd.f32 0.0, %v3553
        %v3555 = vpop.f32.mrf.mxu0
        %v3556 = vpop.f32.mrf.mxu0
        %v3557 = vadd.f32 0.0, %v3556
        %v3558 = vpop.f32.mrf.mxu0
        %3559 = vdwg.mxu0
        %v3560 = vadd.f32 %v3333, %v3434
        %v3561 = vadd.f32 %v3334, %v3437
        %v3562 = vadd.f32 %v3335, %v3442
        %v3563 = vadd.f32 %v3336, %v3445
        %v3564 = vadd.f32 %v3337, %v3450
        %v3565 = vadd.f32 %v3338, %v3453
        %v3566 = vadd.f32 %v3339, %v3458
        %v3567 = vadd.f32 %v3340, %v3461
        %v3568 = vadd.f32 %v3341, %v3466
        %v3569 = vadd.f32 %v3342, %v3469
        %v3570 = vadd.f32 %v3343, %v3474
        %v3571 = vadd.f32 %v3344, %v3477
        %v3572 = vadd.f32 %v3345, %v3482
        %v3573 = vadd.f32 %v3346, %v3485
        %v3574 = vadd.f32 %v3347, %v3490
        %v3575 = vadd.f32 %v3348, %v3493
        %v3576 = vadd.f32 %v3349, %v3498
        %v3577 = vadd.f32 %v3350, %v3501
        %v3578 = vadd.f32 %v3351, %v3506
        %v3579 = vadd.f32 %v3352, %v3509
        %v3580 = vadd.f32 %v3353, %v3514
        %v3581 = vadd.f32 %v3354, %v3517
        %v3582 = vadd.f32 %v3355, %v3522
        %v3583 = vadd.f32 %v3356, %v3525
        %v3584 = vadd.f32 %v3357, %v3530
        %v3585 = vadd.f32 %v3358, %v3533
        %v3586 = vadd.f32 %v3359, %v3538
        %v3587 = vadd.f32 %v3360, %v3541
        %v3588 = vadd.f32 %v3361, %v3546
        %v3589 = vadd.f32 %v3362, %v3549
        %v3590 = vadd.f32 %v3363, %v3554
        %v3591 = vadd.f32 %v3364, %v3557
        %s3592 = scalar_lea.vmem %s2, 140
        %v3593 = vld [vmem:[%s3592] sm:$0xf]
        %v3594 = vld [vmem:[%s3592 + $0x4] sm:$0xf]
        %v3595 = vld [vmem:[%s3592 + $0x8] sm:$0xf]
        %v3596 = vld [vmem:[%s3592 + $0xc] sm:$0xf]
        %v3597 = vld [vmem:[%s3592 + $0x10] sm:$0xf]
        %v3598 = vld [vmem:[%s3592 + $0x14] sm:$0xf]
        %v3599 = vld [vmem:[%s3592 + $0x18] sm:$0x7]
        %v3607 = vunpack.c.l.b16 %v3593
        %v3608 = vunpack.c.l.b16 %v3594
        %v3609 = vunpack.c.l.b16 %v3595
        %v3610 = vunpack.c.l.b16 %v3596
        %v3611 = vunpack.c.l.b16 %v3597
        %v3612 = vunpack.c.l.b16 %v3598
        %v3613 = vunpack.c.l.b16 %v3599
        %v3614 = vpack.c.b16 %v3608, %v3607
        %v3615 = vpack.c.b16 %v3610, %v3609
        %v3616 = vpack.c.b16 %v3612, %v3611
        %v3617 = vpack.c.b16 %v3613, %v3613
        %v3621 = vsel %vm2526, %v2483, 0
        %v3624 = vsel %vm2559, %v3617, 0
        %3626 = vmatprep.subr.bf16.mxu0 0
        %3627 = vmatpush1.bf16.msra.mxu0 0
        %3628 = vmatprep.subr.bf16.mxu0 0
        %3629 = vmatpush1.bf16.msra.mxu0 0
        %3630 = vmatprep.subr.bf16.mxu0 0
        %3631 = vmatpush1.bf16.msra.mxu0 0
        %3632 = vmatprep.subr.bf16.mxu0 0
        %3633 = vmatpush1.bf16.msra.mxu0 0
        %3634 = vmatprep.subr.bf16.mxu0 0
        %3635 = vmatpush1.bf16.msra.mxu0 %v3624
        %3636 = vmatprep.subr.bf16.mxu0 0
        %3637 = vmatpush1.bf16.msra.mxu0 %v3616
        %3638 = vmatprep.subr.bf16.mxu0 0
        %3639 = vmatpush1.bf16.msra.mxu0 %v3615
        %3640 = vmatprep.subr.bf16.mxu0 0
        %3641 = vmatpush1.bf16.msra.mxu0 %v3614
        %3642 = vmatprep.subr.bf16.mxu0 0
        %3643 = vmatpush2.bf16.msra.mxu0 0
        %3644 = vmatprep.subr.bf16.mxu0 0
        %3645 = vmatpush2.bf16.msra.mxu0 0
        %3646 = vmatprep.subr.bf16.mxu0 0
        %3647 = vmatpush2.bf16.msra.mxu0 0
        %3648 = vmatprep.subr.bf16.mxu0 0
        %3649 = vmatpush2.bf16.msra.mxu0 0
        %3650 = vmatprep.subr.bf16.mxu0 0
        %3651 = vmatpush2.bf16.msra.mxu0 0
        %3652 = vmatprep.subr.bf16.mxu0 0
        %3653 = vmatpush2.bf16.msra.mxu0 0
        %3654 = vmatprep.subr.bf16.mxu0 0
        %3655 = vmatpush2.bf16.msra.mxu0 0
        %3656 = vmatprep.subr.bf16.mxu0 0
        %3657 = vmatpush2.bf16.msra.mxu0 0
        %3658 = vmatprep.mubr.bf16.mxu0 0
        %3659 = vmatmul.mubr.bf16.gmra.mxu0 %v2535
        %v3660 = vpop.f32.mrf.mxu0
        %v3661 = vadd.f32 0.0, %v3660
        %v3662 = vpop.f32.mrf.mxu0
        %v3663 = vpop.f32.mrf.mxu0
        %v3664 = vadd.f32 0.0, %v3663
        %v3665 = vpop.f32.mrf.mxu0
        %3666 = vmatprep.mubr.bf16.mxu0 0
        %3667 = vmatmul.mubr.bf16.gmra.mxu0 %v2537
        %v3668 = vpop.f32.mrf.mxu0
        %v3669 = vadd.f32 0.0, %v3668
        %v3670 = vpop.f32.mrf.mxu0
        %v3671 = vpop.f32.mrf.mxu0
        %v3672 = vadd.f32 0.0, %v3671
        %v3673 = vpop.f32.mrf.mxu0
        %3674 = vmatprep.mubr.bf16.mxu0 0
        %3675 = vmatmul.mubr.bf16.gmra.mxu0 %v2539
        %v3676 = vpop.f32.mrf.mxu0
        %v3677 = vadd.f32 0.0, %v3676
        %v3678 = vpop.f32.mrf.mxu0
        %v3679 = vpop.f32.mrf.mxu0
        %v3680 = vadd.f32 0.0, %v3679
        %v3681 = vpop.f32.mrf.mxu0
        %3682 = vmatprep.mubr.bf16.mxu0 0
        %3683 = vmatmul.mubr.bf16.gmra.mxu0 %v2541
        %v3684 = vpop.f32.mrf.mxu0
        %v3685 = vadd.f32 0.0, %v3684
        %v3686 = vpop.f32.mrf.mxu0
        %v3687 = vpop.f32.mrf.mxu0
        %v3688 = vadd.f32 0.0, %v3687
        %v3689 = vpop.f32.mrf.mxu0
        %3690 = vmatprep.mubr.bf16.mxu0 0
        %3691 = vmatmul.mubr.bf16.gmra.mxu0 %v2543
        %v3692 = vpop.f32.mrf.mxu0
        %v3693 = vadd.f32 0.0, %v3692
        %v3694 = vpop.f32.mrf.mxu0
        %v3695 = vpop.f32.mrf.mxu0
        %v3696 = vadd.f32 0.0, %v3695
        %v3697 = vpop.f32.mrf.mxu0
        %3698 = vmatprep.mubr.bf16.mxu0 0
        %3699 = vmatmul.mubr.bf16.gmra.mxu0 %v2545
        %v3700 = vpop.f32.mrf.mxu0
        %v3701 = vadd.f32 0.0, %v3700
        %v3702 = vpop.f32.mrf.mxu0
        %v3703 = vpop.f32.mrf.mxu0
        %v3704 = vadd.f32 0.0, %v3703
        %v3705 = vpop.f32.mrf.mxu0
        %3706 = vmatprep.mubr.bf16.mxu0 0
        %3707 = vmatmul.mubr.bf16.gmra.mxu0 %v2547
        %v3708 = vpop.f32.mrf.mxu0
        %v3709 = vadd.f32 0.0, %v3708
        %v3710 = vpop.f32.mrf.mxu0
        %v3711 = vpop.f32.mrf.mxu0
        %v3712 = vadd.f32 0.0, %v3711
        %v3713 = vpop.f32.mrf.mxu0
        %3714 = vmatprep.mubr.bf16.mxu0 0
        %3715 = vmatmul.mubr.bf16.gmra.mxu0 %v2549
        %v3716 = vpop.f32.mrf.mxu0
        %v3717 = vadd.f32 0.0, %v3716
        %v3718 = vpop.f32.mrf.mxu0
        %v3719 = vpop.f32.mrf.mxu0
        %v3720 = vadd.f32 0.0, %v3719
        %v3721 = vpop.f32.mrf.mxu0
        %3722 = vmatprep.mubr.bf16.mxu0 0
        %3723 = vmatmul.mubr.bf16.gmra.mxu0 %v2551
        %v3724 = vpop.f32.mrf.mxu0
        %v3725 = vadd.f32 0.0, %v3724
        %v3726 = vpop.f32.mrf.mxu0
        %v3727 = vpop.f32.mrf.mxu0
        %v3728 = vadd.f32 0.0, %v3727
        %v3729 = vpop.f32.mrf.mxu0
        %3730 = vmatprep.mubr.bf16.mxu0 0
        %3731 = vmatmul.mubr.bf16.gmra.mxu0 %v2553
        %v3732 = vpop.f32.mrf.mxu0
        %v3733 = vadd.f32 0.0, %v3732
        %v3734 = vpop.f32.mrf.mxu0
        %v3735 = vpop.f32.mrf.mxu0
        %v3736 = vadd.f32 0.0, %v3735
        %v3737 = vpop.f32.mrf.mxu0
        %3738 = vmatprep.mubr.bf16.mxu0 0
        %3739 = vmatmul.mubr.bf16.gmra.mxu0 %v2555
        %v3740 = vpop.f32.mrf.mxu0
        %v3741 = vadd.f32 0.0, %v3740
        %v3742 = vpop.f32.mrf.mxu0
        %v3743 = vpop.f32.mrf.mxu0
        %v3744 = vadd.f32 0.0, %v3743
        %v3745 = vpop.f32.mrf.mxu0
        %3746 = vmatprep.mubr.bf16.mxu0 0
        %3747 = vmatmul.mubr.bf16.gmra.mxu0 %v2557
        %v3748 = vpop.f32.mrf.mxu0
        %v3749 = vadd.f32 0.0, %v3748
        %v3750 = vpop.f32.mrf.mxu0
        %v3751 = vpop.f32.mrf.mxu0
        %v3752 = vadd.f32 0.0, %v3751
        %v3753 = vpop.f32.mrf.mxu0
        %3754 = vmatprep.mubr.bf16.mxu0 0
        %3755 = vmatmul.mubr.bf16.gmra.mxu0 %v2940
        %v3756 = vpop.f32.mrf.mxu0
        %v3757 = vadd.f32 0.0, %v3756
        %v3758 = vpop.f32.mrf.mxu0
        %v3759 = vpop.f32.mrf.mxu0
        %v3760 = vadd.f32 0.0, %v3759
        %v3761 = vpop.f32.mrf.mxu0
        %3762 = vmatprep.mubr.bf16.mxu0 0
        %3763 = vmatmul.mubr.bf16.gmra.mxu0 %v3167
        %v3764 = vpop.f32.mrf.mxu0
        %v3765 = vadd.f32 0.0, %v3764
        %v3766 = vpop.f32.mrf.mxu0
        %v3767 = vpop.f32.mrf.mxu0
        %v3768 = vadd.f32 0.0, %v3767
        %v3769 = vpop.f32.mrf.mxu0
        %3770 = vmatprep.mubr.bf16.mxu0 0
        %3771 = vmatmul.mubr.bf16.gmra.mxu0 %v3394
        %v3772 = vpop.f32.mrf.mxu0
        %v3773 = vadd.f32 0.0, %v3772
        %v3774 = vpop.f32.mrf.mxu0
        %v3775 = vpop.f32.mrf.mxu0
        %v3776 = vadd.f32 0.0, %v3775
        %v3777 = vpop.f32.mrf.mxu0
        %3778 = vmatprep.mubr.bf16.mxu0 0
        %3779 = vmatmul.mubr.bf16.gmra.mxu0 %v3621
        %v3780 = vpop.f32.mrf.mxu0
        %v3781 = vadd.f32 0.0, %v3780
        %v3782 = vpop.f32.mrf.mxu0
        %v3783 = vpop.f32.mrf.mxu0
        %v3784 = vadd.f32 0.0, %v3783
        %v3785 = vpop.f32.mrf.mxu0
        %3786 = vdwg.mxu0
        %v3787 = vadd.f32 %v3560, %v3661
        %v3788 = vadd.f32 %v3561, %v3664
        %v3789 = vadd.f32 %v3562, %v3669
        %v3790 = vadd.f32 %v3563, %v3672
        %v3791 = vadd.f32 %v3564, %v3677
        %v3792 = vadd.f32 %v3565, %v3680
        %v3793 = vadd.f32 %v3566, %v3685
        %v3794 = vadd.f32 %v3567, %v3688
        %v3795 = vadd.f32 %v3568, %v3693
        %v3796 = vadd.f32 %v3569, %v3696
        %v3797 = vadd.f32 %v3570, %v3701
        %v3798 = vadd.f32 %v3571, %v3704
        %v3799 = vadd.f32 %v3572, %v3709
        %v3800 = vadd.f32 %v3573, %v3712
        %v3801 = vadd.f32 %v3574, %v3717
        %v3802 = vadd.f32 %v3575, %v3720
        %v3803 = vadd.f32 %v3576, %v3725
        %v3804 = vadd.f32 %v3577, %v3728
        %v3805 = vadd.f32 %v3578, %v3733
        %v3806 = vadd.f32 %v3579, %v3736
        %v3807 = vadd.f32 %v3580, %v3741
        %v3808 = vadd.f32 %v3581, %v3744
        %v3809 = vadd.f32 %v3582, %v3749
        %v3810 = vadd.f32 %v3583, %v3752
        %v3811 = vadd.f32 %v3584, %v3757
        %v3812 = vadd.f32 %v3585, %v3760
        %v3813 = vadd.f32 %v3586, %v3765
        %v3814 = vadd.f32 %v3587, %v3768
        %v3815 = vadd.f32 %v3588, %v3773
        %v3816 = vadd.f32 %v3589, %v3776
        %v3817 = vadd.f32 %v3590, %v3781
        %v3818 = vadd.f32 %v3591, %v3784
        %s3819 = scalar_lea.vmem %s2, 168
        %v3820 = vld [vmem:[%s3819] sm:$0xf]
        %v3821 = vld [vmem:[%s3819 + $0x4] sm:$0xf]
        %v3822 = vld [vmem:[%s3819 + $0x8] sm:$0xf]
        %v3823 = vld [vmem:[%s3819 + $0xc] sm:$0xf]
        %v3824 = vld [vmem:[%s3819 + $0x10] sm:$0xf]
        %v3825 = vld [vmem:[%s3819 + $0x14] sm:$0xf]
        %v3826 = vld [vmem:[%s3819 + $0x18] sm:$0x7]
        %v3834 = vunpack.c.l.b16 %v3820
        %v3835 = vunpack.c.l.b16 %v3821
        %v3836 = vunpack.c.l.b16 %v3822
        %v3837 = vunpack.c.l.b16 %v3823
        %v3838 = vunpack.c.l.b16 %v3824
        %v3839 = vunpack.c.l.b16 %v3825
        %v3840 = vunpack.c.l.b16 %v3826
        %v3841 = vpack.c.b16 %v3835, %v3834
        %v3842 = vpack.c.b16 %v3837, %v3836
        %v3843 = vpack.c.b16 %v3839, %v3838
        %v3844 = vpack.c.b16 %v3840, %v3840
        %v3848 = vsel %vm2526, %v2485, 0
        %v3851 = vsel %vm2559, %v3844, 0
        %3853 = vmatprep.subr.bf16.mxu0 0
        %3854 = vmatpush1.bf16.msra.mxu0 0
        %3855 = vmatprep.subr.bf16.mxu0 0
        %3856 = vmatpush1.bf16.msra.mxu0 0
        %3857 = vmatprep.subr.bf16.mxu0 0
        %3858 = vmatpush1.bf16.msra.mxu0 0
        %3859 = vmatprep.subr.bf16.mxu0 0
        %3860 = vmatpush1.bf16.msra.mxu0 0
        %3861 = vmatprep.subr.bf16.mxu0 0
        %3862 = vmatpush1.bf16.msra.mxu0 %v3851
        %3863 = vmatprep.subr.bf16.mxu0 0
        %3864 = vmatpush1.bf16.msra.mxu0 %v3843
        %3865 = vmatprep.subr.bf16.mxu0 0
        %3866 = vmatpush1.bf16.msra.mxu0 %v3842
        %3867 = vmatprep.subr.bf16.mxu0 0
        %3868 = vmatpush1.bf16.msra.mxu0 %v3841
        %3869 = vmatprep.subr.bf16.mxu0 0
        %3870 = vmatpush2.bf16.msra.mxu0 0
        %3871 = vmatprep.subr.bf16.mxu0 0
        %3872 = vmatpush2.bf16.msra.mxu0 0
        %3873 = vmatprep.subr.bf16.mxu0 0
        %3874 = vmatpush2.bf16.msra.mxu0 0
        %3875 = vmatprep.subr.bf16.mxu0 0
        %3876 = vmatpush2.bf16.msra.mxu0 0
        %3877 = vmatprep.subr.bf16.mxu0 0
        %3878 = vmatpush2.bf16.msra.mxu0 0
        %3879 = vmatprep.subr.bf16.mxu0 0
        %3880 = vmatpush2.bf16.msra.mxu0 0
        %3881 = vmatprep.subr.bf16.mxu0 0
        %3882 = vmatpush2.bf16.msra.mxu0 0
        %3883 = vmatprep.subr.bf16.mxu0 0
        %3884 = vmatpush2.bf16.msra.mxu0 0
        %3885 = vmatprep.mubr.bf16.mxu0 0
        %3886 = vmatmul.mubr.bf16.gmra.mxu0 %v2537
        %v3887 = vpop.f32.mrf.mxu0
        %v3888 = vadd.f32 0.0, %v3887
        %v3889 = vpop.f32.mrf.mxu0
        %v3890 = vpop.f32.mrf.mxu0
        %v3891 = vadd.f32 0.0, %v3890
        %v3892 = vpop.f32.mrf.mxu0
        %3893 = vmatprep.mubr.bf16.mxu0 0
        %3894 = vmatmul.mubr.bf16.gmra.mxu0 %v2539
        %v3895 = vpop.f32.mrf.mxu0
        %v3896 = vadd.f32 0.0, %v3895
        %v3897 = vpop.f32.mrf.mxu0
        %v3898 = vpop.f32.mrf.mxu0
        %v3899 = vadd.f32 0.0, %v3898
        %v3900 = vpop.f32.mrf.mxu0
        %3901 = vmatprep.mubr.bf16.mxu0 0
        %3902 = vmatmul.mubr.bf16.gmra.mxu0 %v2541
        %v3903 = vpop.f32.mrf.mxu0
        %v3904 = vadd.f32 0.0, %v3903
        %v3905 = vpop.f32.mrf.mxu0
        %v3906 = vpop.f32.mrf.mxu0
        %v3907 = vadd.f32 0.0, %v3906
        %v3908 = vpop.f32.mrf.mxu0
        %3909 = vmatprep.mubr.bf16.mxu0 0
        %3910 = vmatmul.mubr.bf16.gmra.mxu0 %v2543
        %v3911 = vpop.f32.mrf.mxu0
        %v3912 = vadd.f32 0.0, %v3911
        %v3913 = vpop.f32.mrf.mxu0
        %v3914 = vpop.f32.mrf.mxu0
        %v3915 = vadd.f32 0.0, %v3914
        %v3916 = vpop.f32.mrf.mxu0
        %3917 = vmatprep.mubr.bf16.mxu0 0
        %3918 = vmatmul.mubr.bf16.gmra.mxu0 %v2545
        %v3919 = vpop.f32.mrf.mxu0
        %v3920 = vadd.f32 0.0, %v3919
        %v3921 = vpop.f32.mrf.mxu0
        %v3922 = vpop.f32.mrf.mxu0
        %v3923 = vadd.f32 0.0, %v3922
        %v3924 = vpop.f32.mrf.mxu0
        %3925 = vmatprep.mubr.bf16.mxu0 0
        %3926 = vmatmul.mubr.bf16.gmra.mxu0 %v2547
        %v3927 = vpop.f32.mrf.mxu0
        %v3928 = vadd.f32 0.0, %v3927
        %v3929 = vpop.f32.mrf.mxu0
        %v3930 = vpop.f32.mrf.mxu0
        %v3931 = vadd.f32 0.0, %v3930
        %v3932 = vpop.f32.mrf.mxu0
        %3933 = vmatprep.mubr.bf16.mxu0 0
        %3934 = vmatmul.mubr.bf16.gmra.mxu0 %v2549
        %v3935 = vpop.f32.mrf.mxu0
        %v3936 = vadd.f32 0.0, %v3935
        %v3937 = vpop.f32.mrf.mxu0
        %v3938 = vpop.f32.mrf.mxu0
        %v3939 = vadd.f32 0.0, %v3938
        %v3940 = vpop.f32.mrf.mxu0
        %3941 = vmatprep.mubr.bf16.mxu0 0
        %3942 = vmatmul.mubr.bf16.gmra.mxu0 %v2551
        %v3943 = vpop.f32.mrf.mxu0
        %v3944 = vadd.f32 0.0, %v3943
        %v3945 = vpop.f32.mrf.mxu0
        %v3946 = vpop.f32.mrf.mxu0
        %v3947 = vadd.f32 0.0, %v3946
        %v3948 = vpop.f32.mrf.mxu0
        %3949 = vmatprep.mubr.bf16.mxu0 0
        %3950 = vmatmul.mubr.bf16.gmra.mxu0 %v2553
        %v3951 = vpop.f32.mrf.mxu0
        %v3952 = vadd.f32 0.0, %v3951
        %v3953 = vpop.f32.mrf.mxu0
        %v3954 = vpop.f32.mrf.mxu0
        %v3955 = vadd.f32 0.0, %v3954
        %v3956 = vpop.f32.mrf.mxu0
        %3957 = vmatprep.mubr.bf16.mxu0 0
        %3958 = vmatmul.mubr.bf16.gmra.mxu0 %v2555
        %v3959 = vpop.f32.mrf.mxu0
        %v3960 = vadd.f32 0.0, %v3959
        %v3961 = vpop.f32.mrf.mxu0
        %v3962 = vpop.f32.mrf.mxu0
        %v3963 = vadd.f32 0.0, %v3962
        %v3964 = vpop.f32.mrf.mxu0
        %3965 = vmatprep.mubr.bf16.mxu0 0
        %3966 = vmatmul.mubr.bf16.gmra.mxu0 %v2557
        %v3967 = vpop.f32.mrf.mxu0
        %v3968 = vadd.f32 0.0, %v3967
        %v3969 = vpop.f32.mrf.mxu0
        %v3970 = vpop.f32.mrf.mxu0
        %v3971 = vadd.f32 0.0, %v3970
        %v3972 = vpop.f32.mrf.mxu0
        %3973 = vmatprep.mubr.bf16.mxu0 0
        %3974 = vmatmul.mubr.bf16.gmra.mxu0 %v2940
        %v3975 = vpop.f32.mrf.mxu0
        %v3976 = vadd.f32 0.0, %v3975
        %v3977 = vpop.f32.mrf.mxu0
        %v3978 = vpop.f32.mrf.mxu0
        %v3979 = vadd.f32 0.0, %v3978
        %v3980 = vpop.f32.mrf.mxu0
        %3981 = vmatprep.mubr.bf16.mxu0 0
        %3982 = vmatmul.mubr.bf16.gmra.mxu0 %v3167
        %v3983 = vpop.f32.mrf.mxu0
        %v3984 = vadd.f32 0.0, %v3983
        %v3985 = vpop.f32.mrf.mxu0
        %v3986 = vpop.f32.mrf.mxu0
        %v3987 = vadd.f32 0.0, %v3986
        %v3988 = vpop.f32.mrf.mxu0
        %3989 = vmatprep.mubr.bf16.mxu0 0
        %3990 = vmatmul.mubr.bf16.gmra.mxu0 %v3394
        %v3991 = vpop.f32.mrf.mxu0
        %v3992 = vadd.f32 0.0, %v3991
        %v3993 = vpop.f32.mrf.mxu0
        %v3994 = vpop.f32.mrf.mxu0
        %v3995 = vadd.f32 0.0, %v3994
        %v3996 = vpop.f32.mrf.mxu0
        %3997 = vmatprep.mubr.bf16.mxu0 0
        %3998 = vmatmul.mubr.bf16.gmra.mxu0 %v3621
        %v3999 = vpop.f32.mrf.mxu0
        %v4000 = vadd.f32 0.0, %v3999
        %v4001 = vpop.f32.mrf.mxu0
        %v4002 = vpop.f32.mrf.mxu0
        %v4003 = vadd.f32 0.0, %v4002
        %v4004 = vpop.f32.mrf.mxu0
        %4005 = vmatprep.mubr.bf16.mxu0 0
        %4006 = vmatmul.mubr.bf16.gmra.mxu0 %v3848
        %v4007 = vpop.f32.mrf.mxu0
        %v4008 = vadd.f32 0.0, %v4007
        %v4009 = vpop.f32.mrf.mxu0
        %v4010 = vpop.f32.mrf.mxu0
        %v4011 = vadd.f32 0.0, %v4010
        %v4012 = vpop.f32.mrf.mxu0
        %4013 = vdwg.mxu0
        %v4014 = vadd.f32 %v3787, %v3888
        %v4015 = vadd.f32 %v3788, %v3891
        %v4016 = vadd.f32 %v3789, %v3896
        %v4017 = vadd.f32 %v3790, %v3899
        %v4018 = vadd.f32 %v3791, %v3904
        %v4019 = vadd.f32 %v3792, %v3907
        %v4020 = vadd.f32 %v3793, %v3912
        %v4021 = vadd.f32 %v3794, %v3915
        %v4022 = vadd.f32 %v3795, %v3920
        %v4023 = vadd.f32 %v3796, %v3923
        %v4024 = vadd.f32 %v3797, %v3928
        %v4025 = vadd.f32 %v3798, %v3931
        %v4026 = vadd.f32 %v3799, %v3936
        %v4027 = vadd.f32 %v3800, %v3939
        %v4028 = vadd.f32 %v3801, %v3944
        %v4029 = vadd.f32 %v3802, %v3947
        %v4030 = vadd.f32 %v3803, %v3952
        %v4031 = vadd.f32 %v3804, %v3955
        %v4032 = vadd.f32 %v3805, %v3960
        %v4033 = vadd.f32 %v3806, %v3963
        %v4034 = vadd.f32 %v3807, %v3968
        %v4035 = vadd.f32 %v3808, %v3971
        %v4036 = vadd.f32 %v3809, %v3976
        %v4037 = vadd.f32 %v3810, %v3979
        %v4038 = vadd.f32 %v3811, %v3984
        %v4039 = vadd.f32 %v3812, %v3987
        %v4040 = vadd.f32 %v3813, %v3992
        %v4041 = vadd.f32 %v3814, %v3995
        %v4042 = vadd.f32 %v3815, %v4000
        %v4043 = vadd.f32 %v3816, %v4003
        %v4044 = vadd.f32 %v3817, %v4008
        %v4045 = vadd.f32 %v3818, %v4011
        %s4046 = scalar_lea.vmem %s2, 196
        %v4047 = vld [vmem:[%s4046] sm:$0xf]
        %v4048 = vld [vmem:[%s4046 + $0x4] sm:$0xf]
        %v4049 = vld [vmem:[%s4046 + $0x8] sm:$0xf]
        %v4050 = vld [vmem:[%s4046 + $0xc] sm:$0xf]
        %v4051 = vld [vmem:[%s4046 + $0x10] sm:$0xf]
        %v4052 = vld [vmem:[%s4046 + $0x14] sm:$0xf]
        %v4053 = vld [vmem:[%s4046 + $0x18] sm:$0x7]
        %v4061 = vunpack.c.l.b16 %v4047
        %v4062 = vunpack.c.l.b16 %v4048
        %v4063 = vunpack.c.l.b16 %v4049
        %v4064 = vunpack.c.l.b16 %v4050
        %v4065 = vunpack.c.l.b16 %v4051
        %v4066 = vunpack.c.l.b16 %v4052
        %v4067 = vunpack.c.l.b16 %v4053
        %v4068 = vpack.c.b16 %v4062, %v4061
        %v4069 = vpack.c.b16 %v4064, %v4063
        %v4070 = vpack.c.b16 %v4066, %v4065
        %v4071 = vpack.c.b16 %v4067, %v4067
        %v4075 = vsel %vm2526, %v2487, 0
        %v4078 = vsel %vm2559, %v4071, 0
        %4080 = vmatprep.subr.bf16.mxu0 0
        %4081 = vmatpush1.bf16.msra.mxu0 0
        %4082 = vmatprep.subr.bf16.mxu0 0
        %4083 = vmatpush1.bf16.msra.mxu0 0
        %4084 = vmatprep.subr.bf16.mxu0 0
        %4085 = vmatpush1.bf16.msra.mxu0 0
        %4086 = vmatprep.subr.bf16.mxu0 0
        %4087 = vmatpush1.bf16.msra.mxu0 0
        %4088 = vmatprep.subr.bf16.mxu0 0
        %4089 = vmatpush1.bf16.msra.mxu0 %v4078
        %4090 = vmatprep.subr.bf16.mxu0 0
        %4091 = vmatpush1.bf16.msra.mxu0 %v4070
        %4092 = vmatprep.subr.bf16.mxu0 0
        %4093 = vmatpush1.bf16.msra.mxu0 %v4069
        %4094 = vmatprep.subr.bf16.mxu0 0
        %4095 = vmatpush1.bf16.msra.mxu0 %v4068
        %4096 = vmatprep.subr.bf16.mxu0 0
        %4097 = vmatpush2.bf16.msra.mxu0 0
        %4098 = vmatprep.subr.bf16.mxu0 0
        %4099 = vmatpush2.bf16.msra.mxu0 0
        %4100 = vmatprep.subr.bf16.mxu0 0
        %4101 = vmatpush2.bf16.msra.mxu0 0
        %4102 = vmatprep.subr.bf16.mxu0 0
        %4103 = vmatpush2.bf16.msra.mxu0 0
        %4104 = vmatprep.subr.bf16.mxu0 0
        %4105 = vmatpush2.bf16.msra.mxu0 0
        %4106 = vmatprep.subr.bf16.mxu0 0
        %4107 = vmatpush2.bf16.msra.mxu0 0
        %4108 = vmatprep.subr.bf16.mxu0 0
        %4109 = vmatpush2.bf16.msra.mxu0 0
        %4110 = vmatprep.subr.bf16.mxu0 0
        %4111 = vmatpush2.bf16.msra.mxu0 0
        %4112 = vmatprep.mubr.bf16.mxu0 0
        %4113 = vmatmul.mubr.bf16.gmra.mxu0 %v2539
        %v4114 = vpop.f32.mrf.mxu0
        %v4115 = vadd.f32 0.0, %v4114
        %v4116 = vpop.f32.mrf.mxu0
        %v4117 = vpop.f32.mrf.mxu0
        %v4118 = vadd.f32 0.0, %v4117
        %v4119 = vpop.f32.mrf.mxu0
        %4120 = vmatprep.mubr.bf16.mxu0 0
        %4121 = vmatmul.mubr.bf16.gmra.mxu0 %v2541
        %v4122 = vpop.f32.mrf.mxu0
        %v4123 = vadd.f32 0.0, %v4122
        %v4124 = vpop.f32.mrf.mxu0
        %v4125 = vpop.f32.mrf.mxu0
        %v4126 = vadd.f32 0.0, %v4125
        %v4127 = vpop.f32.mrf.mxu0
        %4128 = vmatprep.mubr.bf16.mxu0 0
        %4129 = vmatmul.mubr.bf16.gmra.mxu0 %v2543
        %v4130 = vpop.f32.mrf.mxu0
        %v4131 = vadd.f32 0.0, %v4130
        %v4132 = vpop.f32.mrf.mxu0
        %v4133 = vpop.f32.mrf.mxu0
        %v4134 = vadd.f32 0.0, %v4133
        %v4135 = vpop.f32.mrf.mxu0
        %4136 = vmatprep.mubr.bf16.mxu0 0
        %4137 = vmatmul.mubr.bf16.gmra.mxu0 %v2545
        %v4138 = vpop.f32.mrf.mxu0
        %v4139 = vadd.f32 0.0, %v4138
        %v4140 = vpop.f32.mrf.mxu0
        %v4141 = vpop.f32.mrf.mxu0
        %v4142 = vadd.f32 0.0, %v4141
        %v4143 = vpop.f32.mrf.mxu0
        %4144 = vmatprep.mubr.bf16.mxu0 0
        %4145 = vmatmul.mubr.bf16.gmra.mxu0 %v2547
        %v4146 = vpop.f32.mrf.mxu0
        %v4147 = vadd.f32 0.0, %v4146
        %v4148 = vpop.f32.mrf.mxu0
        %v4149 = vpop.f32.mrf.mxu0
        %v4150 = vadd.f32 0.0, %v4149
        %v4151 = vpop.f32.mrf.mxu0
        %4152 = vmatprep.mubr.bf16.mxu0 0
        %4153 = vmatmul.mubr.bf16.gmra.mxu0 %v2549
        %v4154 = vpop.f32.mrf.mxu0
        %v4155 = vadd.f32 0.0, %v4154
        %v4156 = vpop.f32.mrf.mxu0
        %v4157 = vpop.f32.mrf.mxu0
        %v4158 = vadd.f32 0.0, %v4157
        %v4159 = vpop.f32.mrf.mxu0
        %4160 = vmatprep.mubr.bf16.mxu0 0
        %4161 = vmatmul.mubr.bf16.gmra.mxu0 %v2551
        %v4162 = vpop.f32.mrf.mxu0
        %v4163 = vadd.f32 0.0, %v4162
        %v4164 = vpop.f32.mrf.mxu0
        %v4165 = vpop.f32.mrf.mxu0
        %v4166 = vadd.f32 0.0, %v4165
        %v4167 = vpop.f32.mrf.mxu0
        %4168 = vmatprep.mubr.bf16.mxu0 0
        %4169 = vmatmul.mubr.bf16.gmra.mxu0 %v2553
        %v4170 = vpop.f32.mrf.mxu0
        %v4171 = vadd.f32 0.0, %v4170
        %v4172 = vpop.f32.mrf.mxu0
        %v4173 = vpop.f32.mrf.mxu0
        %v4174 = vadd.f32 0.0, %v4173
        %v4175 = vpop.f32.mrf.mxu0
        %4176 = vmatprep.mubr.bf16.mxu0 0
        %4177 = vmatmul.mubr.bf16.gmra.mxu0 %v2555
        %v4178 = vpop.f32.mrf.mxu0
        %v4179 = vadd.f32 0.0, %v4178
        %v4180 = vpop.f32.mrf.mxu0
        %v4181 = vpop.f32.mrf.mxu0
        %v4182 = vadd.f32 0.0, %v4181
        %v4183 = vpop.f32.mrf.mxu0
        %4184 = vmatprep.mubr.bf16.mxu0 0
        %4185 = vmatmul.mubr.bf16.gmra.mxu0 %v2557
        %v4186 = vpop.f32.mrf.mxu0
        %v4187 = vadd.f32 0.0, %v4186
        %v4188 = vpop.f32.mrf.mxu0
        %v4189 = vpop.f32.mrf.mxu0
        %v4190 = vadd.f32 0.0, %v4189
        %v4191 = vpop.f32.mrf.mxu0
        %4192 = vmatprep.mubr.bf16.mxu0 0
        %4193 = vmatmul.mubr.bf16.gmra.mxu0 %v2940
        %v4194 = vpop.f32.mrf.mxu0
        %v4195 = vadd.f32 0.0, %v4194
        %v4196 = vpop.f32.mrf.mxu0
        %v4197 = vpop.f32.mrf.mxu0
        %v4198 = vadd.f32 0.0, %v4197
        %v4199 = vpop.f32.mrf.mxu0
        %4200 = vmatprep.mubr.bf16.mxu0 0
        %4201 = vmatmul.mubr.bf16.gmra.mxu0 %v3167
        %v4202 = vpop.f32.mrf.mxu0
        %v4203 = vadd.f32 0.0, %v4202
        %v4204 = vpop.f32.mrf.mxu0
        %v4205 = vpop.f32.mrf.mxu0
        %v4206 = vadd.f32 0.0, %v4205
        %v4207 = vpop.f32.mrf.mxu0
        %4208 = vmatprep.mubr.bf16.mxu0 0
        %4209 = vmatmul.mubr.bf16.gmra.mxu0 %v3394
        %v4210 = vpop.f32.mrf.mxu0
        %v4211 = vadd.f32 0.0, %v4210
        %v4212 = vpop.f32.mrf.mxu0
        %v4213 = vpop.f32.mrf.mxu0
        %v4214 = vadd.f32 0.0, %v4213
        %v4215 = vpop.f32.mrf.mxu0
        %4216 = vmatprep.mubr.bf16.mxu0 0
        %4217 = vmatmul.mubr.bf16.gmra.mxu0 %v3621
        %v4218 = vpop.f32.mrf.mxu0
        %v4219 = vadd.f32 0.0, %v4218
        %v4220 = vpop.f32.mrf.mxu0
        %v4221 = vpop.f32.mrf.mxu0
        %v4222 = vadd.f32 0.0, %v4221
        %v4223 = vpop.f32.mrf.mxu0
        %4224 = vmatprep.mubr.bf16.mxu0 0
        %4225 = vmatmul.mubr.bf16.gmra.mxu0 %v3848
        %v4226 = vpop.f32.mrf.mxu0
        %v4227 = vadd.f32 0.0, %v4226
        %v4228 = vpop.f32.mrf.mxu0
        %v4229 = vpop.f32.mrf.mxu0
        %v4230 = vadd.f32 0.0, %v4229
        %v4231 = vpop.f32.mrf.mxu0
        %4232 = vmatprep.mubr.bf16.mxu0 0
        %4233 = vmatmul.mubr.bf16.gmra.mxu0 %v4075
        %v4234 = vpop.f32.mrf.mxu0
        %v4235 = vadd.f32 0.0, %v4234
        %v4236 = vpop.f32.mrf.mxu0
        %v4237 = vpop.f32.mrf.mxu0
        %v4238 = vadd.f32 0.0, %v4237
        %v4239 = vpop.f32.mrf.mxu0
        %4240 = vdwg.mxu0
        %v4241 = vadd.f32 %v4014, %v4115
        %v4242 = vadd.f32 %v4015, %v4118
        %v4243 = vadd.f32 %v4016, %v4123
        %v4244 = vadd.f32 %v4017, %v4126
        %v4245 = vadd.f32 %v4018, %v4131
        %v4246 = vadd.f32 %v4019, %v4134
        %v4247 = vadd.f32 %v4020, %v4139
        %v4248 = vadd.f32 %v4021, %v4142
        %v4249 = vadd.f32 %v4022, %v4147
        %v4250 = vadd.f32 %v4023, %v4150
        %v4251 = vadd.f32 %v4024, %v4155
        %v4252 = vadd.f32 %v4025, %v4158
        %v4253 = vadd.f32 %v4026, %v4163
        %v4254 = vadd.f32 %v4027, %v4166
        %v4255 = vadd.f32 %v4028, %v4171
        %v4256 = vadd.f32 %v4029, %v4174
        %v4257 = vadd.f32 %v4030, %v4179
        %v4258 = vadd.f32 %v4031, %v4182
        %v4259 = vadd.f32 %v4032, %v4187
        %v4260 = vadd.f32 %v4033, %v4190
        %v4261 = vadd.f32 %v4034, %v4195
        %v4262 = vadd.f32 %v4035, %v4198
        %v4263 = vadd.f32 %v4036, %v4203
        %v4264 = vadd.f32 %v4037, %v4206
        %v4265 = vadd.f32 %v4038, %v4211
        %v4266 = vadd.f32 %v4039, %v4214
        %v4267 = vadd.f32 %v4040, %v4219
        %v4268 = vadd.f32 %v4041, %v4222
        %v4269 = vadd.f32 %v4042, %v4227
        %v4270 = vadd.f32 %v4043, %v4230
        %v4271 = vadd.f32 %v4044, %v4235
        %v4272 = vadd.f32 %v4045, %v4238
        %s4273 = scalar_lea.vmem %s2, 224
        %v4274 = vld [vmem:[%s4273] sm:$0xf]
        %v4275 = vld [vmem:[%s4273 + $0x4] sm:$0xf]
        %v4276 = vld [vmem:[%s4273 + $0x8] sm:$0xf]
        %v4277 = vld [vmem:[%s4273 + $0xc] sm:$0xf]
        %v4278 = vld [vmem:[%s4273 + $0x10] sm:$0xf]
        %v4279 = vld [vmem:[%s4273 + $0x14] sm:$0xf]
        %v4280 = vld [vmem:[%s4273 + $0x18] sm:$0x7]
        %v4288 = vunpack.c.l.b16 %v4274
        %v4289 = vunpack.c.l.b16 %v4275
        %v4290 = vunpack.c.l.b16 %v4276
        %v4291 = vunpack.c.l.b16 %v4277
        %v4292 = vunpack.c.l.b16 %v4278
        %v4293 = vunpack.c.l.b16 %v4279
        %v4294 = vunpack.c.l.b16 %v4280
        %v4295 = vpack.c.b16 %v4289, %v4288
        %v4296 = vpack.c.b16 %v4291, %v4290
        %v4297 = vpack.c.b16 %v4293, %v4292
        %v4298 = vpack.c.b16 %v4294, %v4294
        %v4302 = vsel %vm2526, %v2489, 0
        %v4305 = vsel %vm2559, %v4298, 0
        %4307 = vmatprep.subr.bf16.mxu0 0
        %4308 = vmatpush1.bf16.msra.mxu0 0
        %4309 = vmatprep.subr.bf16.mxu0 0
        %4310 = vmatpush1.bf16.msra.mxu0 0
        %4311 = vmatprep.subr.bf16.mxu0 0
        %4312 = vmatpush1.bf16.msra.mxu0 0
        %4313 = vmatprep.subr.bf16.mxu0 0
        %4314 = vmatpush1.bf16.msra.mxu0 0
        %4315 = vmatprep.subr.bf16.mxu0 0
        %4316 = vmatpush1.bf16.msra.mxu0 %v4305
        %4317 = vmatprep.subr.bf16.mxu0 0
        %4318 = vmatpush1.bf16.msra.mxu0 %v4297
        %4319 = vmatprep.subr.bf16.mxu0 0
        %4320 = vmatpush1.bf16.msra.mxu0 %v4296
        %4321 = vmatprep.subr.bf16.mxu0 0
        %4322 = vmatpush1.bf16.msra.mxu0 %v4295
        %4323 = vmatprep.subr.bf16.mxu0 0
        %4324 = vmatpush2.bf16.msra.mxu0 0
        %4325 = vmatprep.subr.bf16.mxu0 0
        %4326 = vmatpush2.bf16.msra.mxu0 0
        %4327 = vmatprep.subr.bf16.mxu0 0
        %4328 = vmatpush2.bf16.msra.mxu0 0
        %4329 = vmatprep.subr.bf16.mxu0 0
        %4330 = vmatpush2.bf16.msra.mxu0 0
        %4331 = vmatprep.subr.bf16.mxu0 0
        %4332 = vmatpush2.bf16.msra.mxu0 0
        %4333 = vmatprep.subr.bf16.mxu0 0
        %4334 = vmatpush2.bf16.msra.mxu0 0
        %4335 = vmatprep.subr.bf16.mxu0 0
        %4336 = vmatpush2.bf16.msra.mxu0 0
        %4337 = vmatprep.subr.bf16.mxu0 0
        %4338 = vmatpush2.bf16.msra.mxu0 0
        %4339 = vmatprep.mubr.bf16.mxu0 0
        %4340 = vmatmul.mubr.bf16.gmra.mxu0 %v2541
        %v4341 = vpop.f32.mrf.mxu0
        %v4342 = vadd.f32 0.0, %v4341
        %v4343 = vpop.f32.mrf.mxu0
        %v4344 = vpop.f32.mrf.mxu0
        %v4345 = vadd.f32 0.0, %v4344
        %v4346 = vpop.f32.mrf.mxu0
        %4347 = vmatprep.mubr.bf16.mxu0 0
        %4348 = vmatmul.mubr.bf16.gmra.mxu0 %v2543
        %v4349 = vpop.f32.mrf.mxu0
        %v4350 = vadd.f32 0.0, %v4349
        %v4351 = vpop.f32.mrf.mxu0
        %v4352 = vpop.f32.mrf.mxu0
        %v4353 = vadd.f32 0.0, %v4352
        %v4354 = vpop.f32.mrf.mxu0
        %4355 = vmatprep.mubr.bf16.mxu0 0
        %4356 = vmatmul.mubr.bf16.gmra.mxu0 %v2545
        %v4357 = vpop.f32.mrf.mxu0
        %v4358 = vadd.f32 0.0, %v4357
        %v4359 = vpop.f32.mrf.mxu0
        %v4360 = vpop.f32.mrf.mxu0
        %v4361 = vadd.f32 0.0, %v4360
        %v4362 = vpop.f32.mrf.mxu0
        %4363 = vmatprep.mubr.bf16.mxu0 0
        %4364 = vmatmul.mubr.bf16.gmra.mxu0 %v2547
        %v4365 = vpop.f32.mrf.mxu0
        %v4366 = vadd.f32 0.0, %v4365
        %v4367 = vpop.f32.mrf.mxu0
        %v4368 = vpop.f32.mrf.mxu0
        %v4369 = vadd.f32 0.0, %v4368
        %v4370 = vpop.f32.mrf.mxu0
        %4371 = vmatprep.mubr.bf16.mxu0 0
        %4372 = vmatmul.mubr.bf16.gmra.mxu0 %v2549
        %v4373 = vpop.f32.mrf.mxu0
        %v4374 = vadd.f32 0.0, %v4373
        %v4375 = vpop.f32.mrf.mxu0
        %v4376 = vpop.f32.mrf.mxu0
        %v4377 = vadd.f32 0.0, %v4376
        %v4378 = vpop.f32.mrf.mxu0
        %4379 = vmatprep.mubr.bf16.mxu0 0
        %4380 = vmatmul.mubr.bf16.gmra.mxu0 %v2551
        %v4381 = vpop.f32.mrf.mxu0
        %v4382 = vadd.f32 0.0, %v4381
        %v4383 = vpop.f32.mrf.mxu0
        %v4384 = vpop.f32.mrf.mxu0
        %v4385 = vadd.f32 0.0, %v4384
        %v4386 = vpop.f32.mrf.mxu0
        %4387 = vmatprep.mubr.bf16.mxu0 0
        %4388 = vmatmul.mubr.bf16.gmra.mxu0 %v2553
        %v4389 = vpop.f32.mrf.mxu0
        %v4390 = vadd.f32 0.0, %v4389
        %v4391 = vpop.f32.mrf.mxu0
        %v4392 = vpop.f32.mrf.mxu0
        %v4393 = vadd.f32 0.0, %v4392
        %v4394 = vpop.f32.mrf.mxu0
        %4395 = vmatprep.mubr.bf16.mxu0 0
        %4396 = vmatmul.mubr.bf16.gmra.mxu0 %v2555
        %v4397 = vpop.f32.mrf.mxu0
        %v4398 = vadd.f32 0.0, %v4397
        %v4399 = vpop.f32.mrf.mxu0
        %v4400 = vpop.f32.mrf.mxu0
        %v4401 = vadd.f32 0.0, %v4400
        %v4402 = vpop.f32.mrf.mxu0
        %4403 = vmatprep.mubr.bf16.mxu0 0
        %4404 = vmatmul.mubr.bf16.gmra.mxu0 %v2557
        %v4405 = vpop.f32.mrf.mxu0
        %v4406 = vadd.f32 0.0, %v4405
        %v4407 = vpop.f32.mrf.mxu0
        %v4408 = vpop.f32.mrf.mxu0
        %v4409 = vadd.f32 0.0, %v4408
        %v4410 = vpop.f32.mrf.mxu0
        %4411 = vmatprep.mubr.bf16.mxu0 0
        %4412 = vmatmul.mubr.bf16.gmra.mxu0 %v2940
        %v4413 = vpop.f32.mrf.mxu0
        %v4414 = vadd.f32 0.0, %v4413
        %v4415 = vpop.f32.mrf.mxu0
        %v4416 = vpop.f32.mrf.mxu0
        %v4417 = vadd.f32 0.0, %v4416
        %v4418 = vpop.f32.mrf.mxu0
        %4419 = vmatprep.mubr.bf16.mxu0 0
        %4420 = vmatmul.mubr.bf16.gmra.mxu0 %v3167
        %v4421 = vpop.f32.mrf.mxu0
        %v4422 = vadd.f32 0.0, %v4421
        %v4423 = vpop.f32.mrf.mxu0
        %v4424 = vpop.f32.mrf.mxu0
        %v4425 = vadd.f32 0.0, %v4424
        %v4426 = vpop.f32.mrf.mxu0
        %4427 = vmatprep.mubr.bf16.mxu0 0
        %4428 = vmatmul.mubr.bf16.gmra.mxu0 %v3394
        %v4429 = vpop.f32.mrf.mxu0
        %v4430 = vadd.f32 0.0, %v4429
        %v4431 = vpop.f32.mrf.mxu0
        %v4432 = vpop.f32.mrf.mxu0
        %v4433 = vadd.f32 0.0, %v4432
        %v4434 = vpop.f32.mrf.mxu0
        %4435 = vmatprep.mubr.bf16.mxu0 0
        %4436 = vmatmul.mubr.bf16.gmra.mxu0 %v3621
        %v4437 = vpop.f32.mrf.mxu0
        %v4438 = vadd.f32 0.0, %v4437
        %v4439 = vpop.f32.mrf.mxu0
        %v4440 = vpop.f32.mrf.mxu0
        %v4441 = vadd.f32 0.0, %v4440
        %v4442 = vpop.f32.mrf.mxu0
        %4443 = vmatprep.mubr.bf16.mxu0 0
        %4444 = vmatmul.mubr.bf16.gmra.mxu0 %v3848
        %v4445 = vpop.f32.mrf.mxu0
        %v4446 = vadd.f32 0.0, %v4445
        %v4447 = vpop.f32.mrf.mxu0
        %v4448 = vpop.f32.mrf.mxu0
        %v4449 = vadd.f32 0.0, %v4448
        %v4450 = vpop.f32.mrf.mxu0
        %4451 = vmatprep.mubr.bf16.mxu0 0
        %4452 = vmatmul.mubr.bf16.gmra.mxu0 %v4075
        %v4453 = vpop.f32.mrf.mxu0
        %v4454 = vadd.f32 0.0, %v4453
        %v4455 = vpop.f32.mrf.mxu0
        %v4456 = vpop.f32.mrf.mxu0
        %v4457 = vadd.f32 0.0, %v4456
        %v4458 = vpop.f32.mrf.mxu0
        %4459 = vmatprep.mubr.bf16.mxu0 0
        %4460 = vmatmul.mubr.bf16.gmra.mxu0 %v4302
        %v4461 = vpop.f32.mrf.mxu0
        %v4462 = vadd.f32 0.0, %v4461
        %v4463 = vpop.f32.mrf.mxu0
        %v4464 = vpop.f32.mrf.mxu0
        %v4465 = vadd.f32 0.0, %v4464
        %v4466 = vpop.f32.mrf.mxu0
        %4467 = vdwg.mxu0
        %v4468 = vadd.f32 %v4241, %v4342
        %v4469 = vadd.f32 %v4242, %v4345
        %v4470 = vadd.f32 %v4243, %v4350
        %v4471 = vadd.f32 %v4244, %v4353
        %v4472 = vadd.f32 %v4245, %v4358
        %v4473 = vadd.f32 %v4246, %v4361
        %v4474 = vadd.f32 %v4247, %v4366
        %v4475 = vadd.f32 %v4248, %v4369
        %v4476 = vadd.f32 %v4249, %v4374
        %v4477 = vadd.f32 %v4250, %v4377
        %v4478 = vadd.f32 %v4251, %v4382
        %v4479 = vadd.f32 %v4252, %v4385
        %v4480 = vadd.f32 %v4253, %v4390
        %v4481 = vadd.f32 %v4254, %v4393
        %v4482 = vadd.f32 %v4255, %v4398
        %v4483 = vadd.f32 %v4256, %v4401
        %v4484 = vadd.f32 %v4257, %v4406
        %v4485 = vadd.f32 %v4258, %v4409
        %v4486 = vadd.f32 %v4259, %v4414
        %v4487 = vadd.f32 %v4260, %v4417
        %v4488 = vadd.f32 %v4261, %v4422
        %v4489 = vadd.f32 %v4262, %v4425
        %v4490 = vadd.f32 %v4263, %v4430
        %v4491 = vadd.f32 %v4264, %v4433
        %v4492 = vadd.f32 %v4265, %v4438
        %v4493 = vadd.f32 %v4266, %v4441
        %v4494 = vadd.f32 %v4267, %v4446
        %v4495 = vadd.f32 %v4268, %v4449
        %v4496 = vadd.f32 %v4269, %v4454
        %v4497 = vadd.f32 %v4270, %v4457
        %v4498 = vadd.f32 %v4271, %v4462
        %v4499 = vadd.f32 %v4272, %v4465
        %v4500 = vld [vmem:[%s3] sm:$0x1]
        %v4502 = vlaneseq
        %v4503 = vshrl.u32 %v4502, 7
        %v4504 = vsub.s32 0, %v4503
        %v4505 = vrot.slane %v4500, %v4504
        %v4507 = vadd.f32 %v4468, %v4505
        %v4508 = vadd.f32 %v4469, %v4505
        %v4509 = vadd.f32 %v4470, %v4505
        %v4510 = vadd.f32 %v4471, %v4505
        %v4511 = vadd.f32 %v4472, %v4505
        %v4512 = vadd.f32 %v4473, %v4505
        %v4513 = vadd.f32 %v4474, %v4505
        %v4514 = vadd.f32 %v4475, %v4505
        %v4515 = vadd.f32 %v4476, %v4505
        %v4516 = vadd.f32 %v4477, %v4505
        %v4517 = vadd.f32 %v4478, %v4505
        %v4518 = vadd.f32 %v4479, %v4505
        %v4519 = vadd.f32 %v4480, %v4505
        %v4520 = vadd.f32 %v4481, %v4505
        %v4521 = vadd.f32 %v4482, %v4505
        %v4522 = vadd.f32 %v4483, %v4505
        %v4523 = vadd.f32 %v4484, %v4505
        %v4524 = vadd.f32 %v4485, %v4505
        %v4525 = vadd.f32 %v4486, %v4505
        %v4526 = vadd.f32 %v4487, %v4505
        %v4527 = vadd.f32 %v4488, %v4505
        %v4528 = vadd.f32 %v4489, %v4505
        %v4529 = vadd.f32 %v4490, %v4505
        %v4530 = vadd.f32 %v4491, %v4505
        %v4531 = vadd.f32 %v4492, %v4505
        %v4532 = vadd.f32 %v4493, %v4505
        %v4533 = vadd.f32 %v4494, %v4505
        %v4534 = vadd.f32 %v4495, %v4505
        %v4535 = vadd.f32 %v4496, %v4505
        %v4536 = vadd.f32 %v4497, %v4505
        %v4537 = vadd.f32 %v4498, %v4505
        %v4538 = vadd.f32 %v4499, %v4505
        %v4539 = vmax.f32 %v4507, 0.0
        %v4540 = vmax.f32 %v4508, 0.0
        %v4541 = vmax.f32 %v4509, 0.0
        %v4542 = vmax.f32 %v4510, 0.0
        %v4543 = vmax.f32 %v4511, 0.0
        %v4544 = vmax.f32 %v4512, 0.0
        %v4545 = vmax.f32 %v4513, 0.0
        %v4546 = vmax.f32 %v4514, 0.0
        %v4547 = vmax.f32 %v4515, 0.0
        %v4548 = vmax.f32 %v4516, 0.0
        %v4549 = vmax.f32 %v4517, 0.0
        %v4550 = vmax.f32 %v4518, 0.0
        %v4551 = vmax.f32 %v4519, 0.0
        %v4552 = vmax.f32 %v4520, 0.0
        %v4553 = vmax.f32 %v4521, 0.0
        %v4554 = vmax.f32 %v4522, 0.0
        %v4555 = vmax.f32 %v4523, 0.0
        %v4556 = vmax.f32 %v4524, 0.0
        %v4557 = vmax.f32 %v4525, 0.0
        %v4558 = vmax.f32 %v4526, 0.0
        %v4559 = vmax.f32 %v4527, 0.0
        %v4560 = vmax.f32 %v4528, 0.0
        %v4561 = vmax.f32 %v4529, 0.0
        %v4562 = vmax.f32 %v4530, 0.0
        %v4563 = vmax.f32 %v4531, 0.0
        %v4564 = vmax.f32 %v4532, 0.0
        %v4565 = vmax.f32 %v4533, 0.0
        %v4566 = vmax.f32 %v4534, 0.0
        %v4567 = vmax.f32 %v4535, 0.0
        %v4568 = vmax.f32 %v4536, 0.0
        %v4569 = vmax.f32 %v4537, 0.0
        %v4570 = vmax.f32 %v4538, 0.0
        %v4571 = vpack.c.bf16 %v4540, %v4539
        %v4572 = vpack.c.bf16 %v4542, %v4541
        %v4573 = vpack.c.bf16 %v4544, %v4543
        %v4574 = vpack.c.bf16 %v4546, %v4545
        %v4575 = vpack.c.bf16 %v4548, %v4547
        %v4576 = vpack.c.bf16 %v4550, %v4549
        %v4577 = vpack.c.bf16 %v4552, %v4551
        %v4578 = vpack.c.bf16 %v4554, %v4553
        %v4579 = vpack.c.bf16 %v4556, %v4555
        %v4580 = vpack.c.bf16 %v4558, %v4557
        %v4581 = vpack.c.bf16 %v4560, %v4559
        %v4582 = vpack.c.bf16 %v4562, %v4561
        %v4583 = vpack.c.bf16 %v4564, %v4563
        %v4584 = vpack.c.bf16 %v4566, %v4565
        %v4585 = vpack.c.bf16 %v4568, %v4567
        %v4586 = vpack.c.bf16 %v4570, %v4569
        %v4587 = vld [vmem:[%s4] sm:$0xf]
        %v4588 = vld [vmem:[%s4 + $0x4] sm:$0xf]
        %v4589 = vld [vmem:[%s4 + $0x8] sm:$0xf]
        %v4590 = vld [vmem:[%s4 + $0xc] sm:$0xf]
        %v4591 = vld [vmem:[%s4 + $0x10] sm:$0xf]
        %v4592 = vld [vmem:[%s4 + $0x14] sm:$0xf]
        %v4593 = vld [vmem:[%s4 + $0x18] sm:$0xf]
        %v4594 = vld [vmem:[%s4 + $0x1c] sm:$0xf]
        %v4595 = vld [vmem:[%s5] sm:$0x1]
        %v4597 = vlaneseq
        %v4598 = vshrl.u32 %v4597, 7
        %v4599 = vsub.s32 0, %v4598
        %v4600 = vrot.slane %v4595, %v4599
        %v4610 = vunpack.c.l.b16 %v4587
        %v4611 = vunpack.c.l.b16 %v4588
        %v4612 = vunpack.c.l.b16 %v4589
        %v4613 = vunpack.c.l.b16 %v4590
        %v4614 = vunpack.c.l.b16 %v4591
        %v4615 = vunpack.c.l.b16 %v4592
        %v4616 = vunpack.c.l.b16 %v4593
        %v4617 = vunpack.c.l.b16 %v4594
        %v4618 = vpack.c.b16 %v4611, %v4610
        %v4619 = vpack.c.b16 %v4613, %v4612
        %v4620 = vpack.c.b16 %v4615, %v4614
        %v4621 = vpack.c.b16 %v4617, %v4616
        %vm4626 = vcmask 523264
        %v4628 = vsel %vm4626, %v4571, 0
        %v4631 = vsel %vm4626, %v4572, 0
        %v4634 = vsel %vm4626, %v4573, 0
        %v4637 = vsel %vm4626, %v4574, 0
        %v4640 = vsel %vm4626, %v4575, 0
        %v4643 = vsel %vm4626, %v4576, 0
        %v4646 = vsel %vm4626, %v4577, 0
        %v4649 = vsel %vm4626, %v4578, 0
        %v4652 = vsel %vm4626, %v4579, 0
        %v4655 = vsel %vm4626, %v4580, 0
        %v4658 = vsel %vm4626, %v4581, 0
        %v4661 = vsel %vm4626, %v4582, 0
        %v4664 = vsel %vm4626, %v4583, 0
        %v4667 = vsel %vm4626, %v4584, 0
        %v4670 = vsel %vm4626, %v4585, 0
        %v4673 = vsel %vm4626, %v4586, 0
        %4675 = vmatprep.subr.bf16.mxu0 0
        %4676 = vmatpush1.bf16.msra.mxu0 0
        %4677 = vmatprep.subr.bf16.mxu0 0
        %4678 = vmatpush1.bf16.msra.mxu0 0
        %4679 = vmatprep.subr.bf16.mxu0 0
        %4680 = vmatpush1.bf16.msra.mxu0 0
        %4681 = vmatprep.subr.bf16.mxu0 0
        %4682 = vmatpush1.bf16.msra.mxu0 0
        %4683 = vmatprep.subr.bf16.mxu0 0
        %4684 = vmatpush1.bf16.msra.mxu0 %v4621
        %4685 = vmatprep.subr.bf16.mxu0 0
        %4686 = vmatpush1.bf16.msra.mxu0 %v4620
        %4687 = vmatprep.subr.bf16.mxu0 0
        %4688 = vmatpush1.bf16.msra.mxu0 %v4619
        %4689 = vmatprep.subr.bf16.mxu0 0
        %4690 = vmatpush1.bf16.msra.mxu0 %v4618
        %4691 = vmatprep.subr.bf16.mxu0 0
        %4692 = vmatpush2.bf16.msra.mxu0 0
        %4693 = vmatprep.subr.bf16.mxu0 0
        %4694 = vmatpush2.bf16.msra.mxu0 0
        %4695 = vmatprep.subr.bf16.mxu0 0
        %4696 = vmatpush2.bf16.msra.mxu0 0
        %4697 = vmatprep.subr.bf16.mxu0 0
        %4698 = vmatpush2.bf16.msra.mxu0 0
        %4699 = vmatprep.subr.bf16.mxu0 0
        %4700 = vmatpush2.bf16.msra.mxu0 0
        %4701 = vmatprep.subr.bf16.mxu0 0
        %4702 = vmatpush2.bf16.msra.mxu0 0
        %4703 = vmatprep.subr.bf16.mxu0 0
        %4704 = vmatpush2.bf16.msra.mxu0 0
        %4705 = vmatprep.subr.bf16.mxu0 0
        %4706 = vmatpush2.bf16.msra.mxu0 0
        %4707 = vmatprep.mubr.bf16.mxu0 0
        %4708 = vmatmul.mubr.bf16.gmra.mxu0 %v4628
        %v4709 = vpop.f32.mrf.mxu0
        %v4710 = vadd.f32 %v4600, %v4709
        %v4711 = vpop.f32.mrf.mxu0
        %v4712 = vpop.f32.mrf.mxu0
        %v4713 = vadd.f32 %v4600, %v4712
        %v4714 = vpop.f32.mrf.mxu0
        %4715 = vmatprep.mubr.bf16.mxu0 0
        %4716 = vmatmul.mubr.bf16.gmra.mxu0 %v4631
        %v4717 = vpop.f32.mrf.mxu0
        %v4718 = vadd.f32 %v4600, %v4717
        %v4719 = vpop.f32.mrf.mxu0
        %v4720 = vpop.f32.mrf.mxu0
        %v4721 = vadd.f32 %v4600, %v4720
        %v4722 = vpop.f32.mrf.mxu0
        %4723 = vmatprep.mubr.bf16.mxu0 0
        %4724 = vmatmul.mubr.bf16.gmra.mxu0 %v4634
        %v4725 = vpop.f32.mrf.mxu0
        %v4726 = vadd.f32 %v4600, %v4725
        %v4727 = vpop.f32.mrf.mxu0
        %v4728 = vpop.f32.mrf.mxu0
        %v4729 = vadd.f32 %v4600, %v4728
        %v4730 = vpop.f32.mrf.mxu0
        %4731 = vmatprep.mubr.bf16.mxu0 0
        %4732 = vmatmul.mubr.bf16.gmra.mxu0 %v4637
        %v4733 = vpop.f32.mrf.mxu0
        %v4734 = vadd.f32 %v4600, %v4733
        %v4735 = vpop.f32.mrf.mxu0
        %v4736 = vpop.f32.mrf.mxu0
        %v4737 = vadd.f32 %v4600, %v4736
        %v4738 = vpop.f32.mrf.mxu0
        %4739 = vmatprep.mubr.bf16.mxu0 0
        %4740 = vmatmul.mubr.bf16.gmra.mxu0 %v4640
        %v4741 = vpop.f32.mrf.mxu0
        %v4742 = vadd.f32 %v4600, %v4741
        %v4743 = vpop.f32.mrf.mxu0
        %v4744 = vpop.f32.mrf.mxu0
        %v4745 = vadd.f32 %v4600, %v4744
        %v4746 = vpop.f32.mrf.mxu0
        %4747 = vmatprep.mubr.bf16.mxu0 0
        %4748 = vmatmul.mubr.bf16.gmra.mxu0 %v4643
        %v4749 = vpop.f32.mrf.mxu0
        %v4750 = vadd.f32 %v4600, %v4749
        %v4751 = vpop.f32.mrf.mxu0
        %v4752 = vpop.f32.mrf.mxu0
        %v4753 = vadd.f32 %v4600, %v4752
        %v4754 = vpop.f32.mrf.mxu0
        %4755 = vmatprep.mubr.bf16.mxu0 0
        %4756 = vmatmul.mubr.bf16.gmra.mxu0 %v4646
        %v4757 = vpop.f32.mrf.mxu0
        %v4758 = vadd.f32 %v4600, %v4757
        %v4759 = vpop.f32.mrf.mxu0
        %v4760 = vpop.f32.mrf.mxu0
        %v4761 = vadd.f32 %v4600, %v4760
        %v4762 = vpop.f32.mrf.mxu0
        %4763 = vmatprep.mubr.bf16.mxu0 0
        %4764 = vmatmul.mubr.bf16.gmra.mxu0 %v4649
        %v4765 = vpop.f32.mrf.mxu0
        %v4766 = vadd.f32 %v4600, %v4765
        %v4767 = vpop.f32.mrf.mxu0
        %v4768 = vpop.f32.mrf.mxu0
        %v4769 = vadd.f32 %v4600, %v4768
        %v4770 = vpop.f32.mrf.mxu0
        %4771 = vmatprep.mubr.bf16.mxu0 0
        %4772 = vmatmul.mubr.bf16.gmra.mxu0 %v4652
        %v4773 = vpop.f32.mrf.mxu0
        %v4774 = vadd.f32 %v4600, %v4773
        %v4775 = vpop.f32.mrf.mxu0
        %v4776 = vpop.f32.mrf.mxu0
        %v4777 = vadd.f32 %v4600, %v4776
        %v4778 = vpop.f32.mrf.mxu0
        %4779 = vmatprep.mubr.bf16.mxu0 0
        %4780 = vmatmul.mubr.bf16.gmra.mxu0 %v4655
        %v4781 = vpop.f32.mrf.mxu0
        %v4782 = vadd.f32 %v4600, %v4781
        %v4783 = vpop.f32.mrf.mxu0
        %v4784 = vpop.f32.mrf.mxu0
        %v4785 = vadd.f32 %v4600, %v4784
        %v4786 = vpop.f32.mrf.mxu0
        %4787 = vmatprep.mubr.bf16.mxu0 0
        %4788 = vmatmul.mubr.bf16.gmra.mxu0 %v4658
        %v4789 = vpop.f32.mrf.mxu0
        %v4790 = vadd.f32 %v4600, %v4789
        %v4791 = vpop.f32.mrf.mxu0
        %v4792 = vpop.f32.mrf.mxu0
        %v4793 = vadd.f32 %v4600, %v4792
        %v4794 = vpop.f32.mrf.mxu0
        %4795 = vmatprep.mubr.bf16.mxu0 0
        %4796 = vmatmul.mubr.bf16.gmra.mxu0 %v4661
        %v4797 = vpop.f32.mrf.mxu0
        %v4798 = vadd.f32 %v4600, %v4797
        %v4799 = vpop.f32.mrf.mxu0
        %v4800 = vpop.f32.mrf.mxu0
        %v4801 = vadd.f32 %v4600, %v4800
        %v4802 = vpop.f32.mrf.mxu0
        %4803 = vmatprep.mubr.bf16.mxu0 0
        %4804 = vmatmul.mubr.bf16.gmra.mxu0 %v4664
        %v4805 = vpop.f32.mrf.mxu0
        %v4806 = vadd.f32 %v4600, %v4805
        %v4807 = vpop.f32.mrf.mxu0
        %v4808 = vpop.f32.mrf.mxu0
        %v4809 = vadd.f32 %v4600, %v4808
        %v4810 = vpop.f32.mrf.mxu0
        %4811 = vmatprep.mubr.bf16.mxu0 0
        %4812 = vmatmul.mubr.bf16.gmra.mxu0 %v4667
        %v4813 = vpop.f32.mrf.mxu0
        %v4814 = vadd.f32 %v4600, %v4813
        %v4815 = vpop.f32.mrf.mxu0
        %v4816 = vpop.f32.mrf.mxu0
        %v4817 = vadd.f32 %v4600, %v4816
        %v4818 = vpop.f32.mrf.mxu0
        %4819 = vmatprep.mubr.bf16.mxu0 0
        %4820 = vmatmul.mubr.bf16.gmra.mxu0 %v4670
        %v4821 = vpop.f32.mrf.mxu0
        %v4822 = vadd.f32 %v4600, %v4821
        %v4823 = vpop.f32.mrf.mxu0
        %v4824 = vpop.f32.mrf.mxu0
        %v4825 = vadd.f32 %v4600, %v4824
        %v4826 = vpop.f32.mrf.mxu0
        %4827 = vmatprep.mubr.bf16.mxu0 0
        %4828 = vmatmul.mubr.bf16.gmra.mxu0 %v4673
        %v4829 = vpop.f32.mrf.mxu0
        %v4830 = vadd.f32 %v4600, %v4829
        %v4831 = vpop.f32.mrf.mxu0
        %v4832 = vpop.f32.mrf.mxu0
        %v4833 = vadd.f32 %v4600, %v4832
        %v4834 = vpop.f32.mrf.mxu0
        %4835 = vdwg.mxu0
        %v4836 = vmax.f32 %v4710, 0.0
        %v4837 = vmax.f32 %v4713, 0.0
        %v4838 = vmax.f32 %v4718, 0.0
        %v4839 = vmax.f32 %v4721, 0.0
        %v4840 = vmax.f32 %v4726, 0.0
        %v4841 = vmax.f32 %v4729, 0.0
        %v4842 = vmax.f32 %v4734, 0.0
        %v4843 = vmax.f32 %v4737, 0.0
        %v4844 = vmax.f32 %v4742, 0.0
        %v4845 = vmax.f32 %v4745, 0.0
        %v4846 = vmax.f32 %v4750, 0.0
        %v4847 = vmax.f32 %v4753, 0.0
        %v4848 = vmax.f32 %v4758, 0.0
        %v4849 = vmax.f32 %v4761, 0.0
        %v4850 = vmax.f32 %v4766, 0.0
        %v4851 = vmax.f32 %v4769, 0.0
        %v4852 = vmax.f32 %v4774, 0.0
        %v4853 = vmax.f32 %v4777, 0.0
        %v4854 = vmax.f32 %v4782, 0.0
        %v4855 = vmax.f32 %v4785, 0.0
        %v4856 = vmax.f32 %v4790, 0.0
        %v4857 = vmax.f32 %v4793, 0.0
        %v4858 = vmax.f32 %v4798, 0.0
        %v4859 = vmax.f32 %v4801, 0.0
        %v4860 = vmax.f32 %v4806, 0.0
        %v4861 = vmax.f32 %v4809, 0.0
        %v4862 = vmax.f32 %v4814, 0.0
        %v4863 = vmax.f32 %v4817, 0.0
        %v4864 = vmax.f32 %v4822, 0.0
        %v4865 = vmax.f32 %v4825, 0.0
        %v4866 = vmax.f32 %v4830, 0.0
        %v4867 = vmax.f32 %v4833, 0.0
        %v4868 = vpack.c.bf16 %v4837, %v4836
        %v4869 = vpack.c.bf16 %v4839, %v4838
        %v4870 = vpack.c.bf16 %v4841, %v4840
        %v4871 = vpack.c.bf16 %v4843, %v4842
        %v4872 = vpack.c.bf16 %v4845, %v4844
        %v4873 = vpack.c.bf16 %v4847, %v4846
        %v4874 = vpack.c.bf16 %v4849, %v4848
        %v4875 = vpack.c.bf16 %v4851, %v4850
        %v4876 = vpack.c.bf16 %v4853, %v4852
        %v4877 = vpack.c.bf16 %v4855, %v4854
        %v4878 = vpack.c.bf16 %v4857, %v4856
        %v4879 = vpack.c.bf16 %v4859, %v4858
        %v4880 = vpack.c.bf16 %v4861, %v4860
        %v4881 = vpack.c.bf16 %v4863, %v4862
        %v4882 = vpack.c.bf16 %v4865, %v4864
        %v4883 = vpack.c.bf16 %v4867, %v4866
        %v4884 = vld [vmem:[%s6] sm:$0x3]
        %v4885 = vld [vmem:[%s7] sm:$0x7]
        %4887 = vset.pattern.permute.xlu0 0
        %4888 = vperm.xlu0 %4887, %v4885
        %v4889 = vpop.permute.xlu0 %4888
        %v4892 = vsel %vm4626, %v4884, 0
        %v4895 = vsel %vm4626, %v4868, 0
        %v4898 = vsel %vm4626, %v4869, 0
        %v4901 = vsel %vm4626, %v4870, 0
        %v4904 = vsel %vm4626, %v4871, 0
        %v4907 = vsel %vm4626, %v4872, 0
        %v4910 = vsel %vm4626, %v4873, 0
        %v4913 = vsel %vm4626, %v4874, 0
        %v4916 = vsel %vm4626, %v4875, 0
        %v4919 = vsel %vm4626, %v4876, 0
        %v4922 = vsel %vm4626, %v4877, 0
        %v4925 = vsel %vm4626, %v4878, 0
        %v4928 = vsel %vm4626, %v4879, 0
        %v4931 = vsel %vm4626, %v4880, 0
        %v4934 = vsel %vm4626, %v4881, 0
        %v4937 = vsel %vm4626, %v4882, 0
        %v4940 = vsel %vm4626, %v4883, 0
        %4942 = vmatprep.subr.bf16.mxu0 0
        %4943 = vmatpush1.bf16.xpose.msra.mxu0 %v4916
        %4944 = vmatprep.subr.bf16.mxu0 0
        %4945 = vmatpush1.bf16.xpose.msra.mxu0 %v4913
        %4946 = vmatprep.subr.bf16.mxu0 0
        %4947 = vmatpush1.bf16.xpose.msra.mxu0 %v4910
        %4948 = vmatprep.subr.bf16.mxu0 0
        %4949 = vmatpush1.bf16.xpose.msra.mxu0 %v4907
        %4950 = vmatprep.subr.bf16.mxu0 0
        %4951 = vmatpush1.bf16.xpose.msra.mxu0 %v4904
        %4952 = vmatprep.subr.bf16.mxu0 0
        %4953 = vmatpush1.bf16.xpose.msra.mxu0 %v4901
        %4954 = vmatprep.subr.bf16.mxu0 0
        %4955 = vmatpush1.bf16.xpose.msra.mxu0 %v4898
        %4956 = vmatprep.subr.bf16.mxu0 0
        %4957 = vmatpush1.bf16.xpose.msra.mxu0 %v4895
        %4958 = vmatprep.subr.bf16.mxu0 0
        %4959 = vmatpush2.bf16.xpose.msra.mxu0 %v4940
        %4960 = vmatprep.subr.bf16.mxu0 0
        %4961 = vmatpush2.bf16.xpose.msra.mxu0 %v4937
        %4962 = vmatprep.subr.bf16.mxu0 0
        %4963 = vmatpush2.bf16.xpose.msra.mxu0 %v4934
        %4964 = vmatprep.subr.bf16.mxu0 0
        %4965 = vmatpush2.bf16.xpose.msra.mxu0 %v4931
        %4966 = vmatprep.subr.bf16.mxu0 0
        %4967 = vmatpush2.bf16.xpose.msra.mxu0 %v4928
        %4968 = vmatprep.subr.bf16.mxu0 0
        %4969 = vmatpush2.bf16.xpose.msra.mxu0 %v4925
        %4970 = vmatprep.subr.bf16.mxu0 0
        %4971 = vmatpush2.bf16.xpose.msra.mxu0 %v4922
        %4972 = vmatprep.subr.bf16.mxu0 0
        %4973 = vmatpush2.bf16.xpose.msra.mxu0 %v4919
        %4974 = vmatprep.mubr.bf16.mxu0 0
        %4975 = vmatmul.mubr.bf16.gmra.mxu0 %v4892
        %v4976 = vpop.f32.mrf.mxu0
        %v4977 = vadd.f32 %v4889, %v4976
        %v4978 = vpop.f32.mrf.mxu0
        %v4979 = vadd.f32 %v4889, %v4978
        %v4980 = vpop.f32.mrf.mxu0
        %v4981 = vpop.f32.mrf.mxu0
        %4982 = vdwg.mxu0
        %4984 = vrot.lane.b32.xlu0 %v4977, 112
        %v4985 = vpop.permute.xlu0 %4984
        %4987 = vrot.lane.b32.xlu0 %v4977, 96
        %v4988 = vpop.permute.xlu0 %4987
        %4990 = vrot.lane.b32.xlu0 %v4977, 80
        %v4991 = vpop.permute.xlu0 %4990
        %4993 = vrot.lane.b32.xlu0 %v4977, 64
        %v4994 = vpop.permute.xlu0 %4993
        %4996 = vrot.lane.b32.xlu0 %v4977, 48
        %v4997 = vpop.permute.xlu0 %4996
        %4999 = vrot.lane.b32.xlu0 %v4977, 32
        %v5000 = vpop.permute.xlu0 %4999
        %5002 = vrot.lane.b32.xlu0 %v4977, 16
        %v5003 = vpop.permute.xlu0 %5002
        %5006 = vrot.lane.b32.xlu0 %v4979, 112
        %v5007 = vpop.permute.xlu0 %5006
        %5009 = vrot.lane.b32.xlu0 %v4979, 96
        %v5010 = vpop.permute.xlu0 %5009
        %5012 = vrot.lane.b32.xlu0 %v4979, 80
        %v5013 = vpop.permute.xlu0 %5012
        %5015 = vrot.lane.b32.xlu0 %v4979, 64
        %v5016 = vpop.permute.xlu0 %5015
        %5018 = vrot.lane.b32.xlu0 %v4979, 48
        %v5019 = vpop.permute.xlu0 %5018
        %5021 = vrot.lane.b32.xlu0 %v4979, 32
        %v5022 = vpop.permute.xlu0 %5021
        %5024 = vrot.lane.b32.xlu0 %v4979, 16
        %v5025 = vpop.permute.xlu0 %5024
        %v5027 = vcombine.low %v4977, %v4988
        %v5029 = vunpack.c.l.s4 1983009808
        %v5030 = vunpack.c.0.s8 %v5029
        %v5031 = vlaneseq
        %v5032 = vshrl.u32 %v5031, 7
        %v5033 = vsub.s32 %v5030, %v5032
        %v5034 = vrot.slane %v5027, %v5033
        %v5035 = vcombine.low %v4985, %v4991
        %v5037 = vunpack.c.l.s4 1983009808
        %v5038 = vunpack.c.0.s8 %v5037
        %v5039 = vlaneseq
        %v5040 = vshrl.u32 %v5039, 7
        %v5041 = vsub.s32 %v5038, %v5040
        %v5042 = vrot.slane %v5035, %v5041
        %v5043 = vcombine.low %v4994, %v5000
        %v5045 = vunpack.c.l.s4 1983009808
        %v5046 = vunpack.c.0.s8 %v5045
        %v5047 = vlaneseq
        %v5048 = vshrl.u32 %v5047, 7
        %v5049 = vsub.s32 %v5046, %v5048
        %v5050 = vrot.slane %v5043, %v5049
        %v5051 = vcombine.low %v4997, %v5003
        %v5053 = vunpack.c.l.s4 1983009808
        %v5054 = vunpack.c.0.s8 %v5053
        %v5055 = vlaneseq
        %v5056 = vshrl.u32 %v5055, 7
        %v5057 = vsub.s32 %v5054, %v5056
        %v5058 = vrot.slane %v5051, %v5057
        %v5059 = vcombine.low %v5034, %v5042
        %v5060 = vcombine.high %v5034, %v5042
        %v5062 = vunpack.c.l.s4 1934713408
        %v5063 = vunpack.c.0.s8 %v5062
        %v5064 = vlaneseq
        %v5065 = vshrl.u32 %v5064, 7
        %v5066 = vsub.s32 %v5063, %v5065
        %v5067 = vrot.slane %v5059, %v5066
        %v5069 = vunpack.c.l.s4 1934713408
        %v5070 = vunpack.c.0.s8 %v5069
        %v5071 = vlaneseq
        %v5072 = vshrl.u32 %v5071, 7
        %v5073 = vsub.s32 %v5070, %v5072
        %v5074 = vrot.slane %v5060, %v5073
        %v5075 = vcombine.low %v5050, %v5058
        %v5076 = vcombine.high %v5050, %v5058
        %v5078 = vunpack.c.l.s4 1934713408
        %v5079 = vunpack.c.0.s8 %v5078
        %v5080 = vlaneseq
        %v5081 = vshrl.u32 %v5080, 7
        %v5082 = vsub.s32 %v5079, %v5081
        %v5083 = vrot.slane %v5075, %v5082
        %v5085 = vunpack.c.l.s4 1934713408
        %v5086 = vunpack.c.0.s8 %v5085
        %v5087 = vlaneseq
        %v5088 = vshrl.u32 %v5087, 7
        %v5089 = vsub.s32 %v5086, %v5088
        %v5090 = vrot.slane %v5076, %v5089
        %v5091 = vcombine.low %v5067, %v5083
        %v5092 = vcombine.high %v5067, %v5083
        %v5093 = vcombine.low %v5074, %v5090
        %v5094 = vcombine.low %v4979, %v5010
        %v5096 = vunpack.c.l.s4 1983009808
        %v5097 = vunpack.c.0.s8 %v5096
        %v5098 = vlaneseq
        %v5099 = vshrl.u32 %v5098, 7
        %v5100 = vsub.s32 %v5097, %v5099
        %v5101 = vrot.slane %v5094, %v5100
        %v5102 = vcombine.low %v5007, %v5013
        %v5104 = vunpack.c.l.s4 1983009808
        %v5105 = vunpack.c.0.s8 %v5104
        %v5106 = vlaneseq
        %v5107 = vshrl.u32 %v5106, 7
        %v5108 = vsub.s32 %v5105, %v5107
        %v5109 = vrot.slane %v5102, %v5108
        %v5110 = vcombine.low %v5016, %v5022
        %v5112 = vunpack.c.l.s4 1983009808
        %v5113 = vunpack.c.0.s8 %v5112
        %v5114 = vlaneseq
        %v5115 = vshrl.u32 %v5114, 7
        %v5116 = vsub.s32 %v5113, %v5115
        %v5117 = vrot.slane %v5110, %v5116
        %v5118 = vcombine.low %v5019, %v5025
        %v5120 = vunpack.c.l.s4 1983009808
        %v5121 = vunpack.c.0.s8 %v5120
        %v5122 = vlaneseq
        %v5123 = vshrl.u32 %v5122, 7
        %v5124 = vsub.s32 %v5121, %v5123
        %v5125 = vrot.slane %v5118, %v5124
        %v5126 = vcombine.low %v5101, %v5109
        %v5127 = vcombine.high %v5101, %v5109
        %v5129 = vunpack.c.l.s4 1934713408
        %v5130 = vunpack.c.0.s8 %v5129
        %v5131 = vlaneseq
        %v5132 = vshrl.u32 %v5131, 7
        %v5133 = vsub.s32 %v5130, %v5132
        %v5134 = vrot.slane %v5126, %v5133
        %v5136 = vunpack.c.l.s4 1934713408
        %v5137 = vunpack.c.0.s8 %v5136
        %v5138 = vlaneseq
        %v5139 = vshrl.u32 %v5138, 7
        %v5140 = vsub.s32 %v5137, %v5139
        %v5141 = vrot.slane %v5127, %v5140
        %v5142 = vcombine.low %v5117, %v5125
        %v5143 = vcombine.high %v5117, %v5125
        %v5145 = vunpack.c.l.s4 1934713408
        %v5146 = vunpack.c.0.s8 %v5145
        %v5147 = vlaneseq
        %v5148 = vshrl.u32 %v5147, 7
        %v5149 = vsub.s32 %v5146, %v5148
        %v5150 = vrot.slane %v5142, %v5149
        %v5152 = vunpack.c.l.s4 1934713408
        %v5153 = vunpack.c.0.s8 %v5152
        %v5154 = vlaneseq
        %v5155 = vshrl.u32 %v5154, 7
        %v5156 = vsub.s32 %v5153, %v5155
        %v5157 = vrot.slane %v5143, %v5156
        %v5158 = vcombine.low %v5134, %v5150
        %v5159 = vcombine.high %v5134, %v5150
        %v5160 = vcombine.low %v5141, %v5157
        %v5161 = vld [vmem:[%s359] sm:$0xff]
        %v5162 = vld [vmem:[%s359 + $0x8] sm:$0xff]
        %v5163 = vld [vmem:[%s359 + $0x10] sm:$0xff]
        %v5164 = vld [vmem:[%s359 + $0x18] sm:$0xff]
        %v5165 = vld [vmem:[%s359 + $0x20] sm:$0xff]
        %v5166 = vld [vmem:[%s359 + $0x28] sm:$0xff]
        %v5167 = vadd.f32 %v5091, %v5161
        %v5168 = vadd.f32 %v5158, %v5162
        %v5169 = vadd.f32 %v5092, %v5163
        %v5170 = vadd.f32 %v5159, %v5164
        %v5171 = vadd.f32 %v5093, %v5165
        %v5172 = vadd.f32 %v5160, %v5166
        %vm5173 = vcmask 130048
        %5174 = vst.msk [vmem:[%s343] sm:$0xff] %vm5173, %v5167
        %5175 = vst.msk [vmem:[%s343 + $0x8] sm:$0xff] %vm5173, %v5168
        %5176 = vst.msk [vmem:[%s343 + $0x10] sm:$0xff] %vm5173, %v5169
        %5177 = vst.msk [vmem:[%s343 + $0x18] sm:$0xff] %vm5173, %v5170
        %5178 = vst.msk [vmem:[%s343 + $0x20] sm:$0xff] %vm5173, %v5171
        %5179 = vst.msk [vmem:[%s343 + $0x28] sm:$0xff] %vm5173, %v5172
        %s5180 = sand.u32 %s226, 1
        %s5181 = scalar_lea.sflag [#allocation3], %s5180
        %s5182 = sand.u32 %s226, 1
        %s5183 = smul.addr %s5182, 48
        %s5184 = scalar_lea.vmem [#allocation2], %s5183
        // Predicated region
        $region53: #{tpu_custom_call.1} parent=51 // pred_check
          %p5185 = pneg %p236
        $region54: #{tpu_custom_call.1} parent=51 // pred_check_branch
          %5187 = sbr.rel (%p5185) target = $region56
        $region55: #{tpu_custom_call.1} parent=51 // pred_region
          %s5188 = smul.u32 2, %s27
          %s5190 = ssub.s32 768, 768
          %5191 = vsyncadd %s5181, %s5190
          %s5192 = smul.addr %s26, 6
          %s5193 = sadd.s32 %s5188, %s5192
          %s5194 = smul.addr %s5193, 128
          %s5195 = scalar_lea.hbm %s8, %s5194
          %s5196 = sshll.u32 %s5184, 4
          %s5197 = int_to_ptr.vmem [resolvable:$true] %s5196
          %5202 = dma.vmem_to_hbm [thread:$0]  %s5197, 768, %s5195, %s5181, 128, 128, 8
        $region56: #{tpu_custom_call.1} parent=51 // pred_fallthru
          _
      $region52: #{tpu_custom_call.1} parent=5 // pred_fallthru
        _
      %p5203 = scmp.le.s32.totalorder 2, %s17
      // Predicated region
      $region57: #{tpu_custom_call.1} parent=5 // pred_check
        %p5204 = pneg %p5203
      $region58: #{tpu_custom_call.1} parent=5 // pred_check_branch
        %5206 = sbr.rel (%p5204) target = $region60
      $region59: #{tpu_custom_call.1} parent=5 // pred_region
        %s5207 = ssub.s32 %s17, 2
        // Predicated region
        $region61: #{tpu_custom_call.1} parent=59 // pred_check
          %p5208 = pneg %p242
        $region62: #{tpu_custom_call.1} parent=59 // pred_check_branch
          %5210 = sbr.rel (%p5208) target = $region64
        $region63: #{tpu_custom_call.1} parent=59 // pred_region
          %s5211 = sand.u32 %s227, 1
          %s5212 = scalar_lea.sflag [#allocation3], %s5211
          %s5213 = sand.u32 %s227, 1
          %s5214 = smul.addr %s5213, 48
          %s5215 = scalar_lea.vmem [#allocation2], %s5214
          %5216 = dma.done %s5212, 768
        $region64: #{tpu_custom_call.1} parent=59 // pred_fallthru
          _
      $region60: #{tpu_custom_call.1} parent=5 // pred_fallthru
        _
    $region6: #{tpu_custom_call.1} parent=1 // loop_footer
      %s21 = sadd.s32 1, %s17
    $region7: #{tpu_custom_call.1} parent=1 // loop_footer_branch
      %16 = sbr.rel target = $region3
    $region8: #{tpu_custom_call.1} parent=1 // loop_exit
      _
    %5217 = vsyncpa [#allocation3], 1
    %s5218 = scalar_lea.sflag [#allocation3], 1
    %5219 = vsyncpa %s5218, 1

</llo_original>
